<compile_context>
chip_gen: v5e
topology: v5e:2x2
jax: 0.10.0
libtpu: 0.0.40
codegen_flags: <defaults>
</compile_context>

<pallas_src>
import math

import jax
import jax.numpy as jnp
from jax.experimental import pallas as pl
from jax.experimental.pallas import tpu as pltpu

# ----------------------------- config (small) -------------------------------
VOCAB = 64
MAX_POS = 16
HIDDEN = 64
N_HEADS = 4
HEAD_DIM = HIDDEN // N_HEADS
FFN = 128
N_LAYERS = 2
N_CLASSES = 3
BATCH = 2
SEQ = 8
LN_EPS = 1e-12
LANE = 128          # lane-dense padded width for the classifier output


# ------------------------------ kernel helpers ------------------------------
def _layernorm(x, g, b):
    mu = jnp.mean(x, axis=-1, keepdims=True)
    var = jnp.mean((x - mu) * (x - mu), axis=-1, keepdims=True)
    return (x - mu) * jax.lax.rsqrt(var + LN_EPS) * g + b


# ------------------------ fused full-forward kernel --------------------------
def fused_forward_kernel(
    ids_ref, mask_ref,
    tokemb_ref, posemb_ref, embg_ref, embb_ref,
    wqkv_ref, bqkv_ref, wo_ref, bo_ref,
    ln1g_ref, ln1b_ref,
    w1_ref, b1_ref, w2_ref, b2_ref,
    ln2g_ref, ln2b_ref,
    clsw_ref, clsb_ref,
    out_ref,
):
    B = mask_ref.shape[0]
    S = mask_ref.shape[2]
    H = tokemb_ref.shape[1]
    BS = B * S
    scale = 1.0 / math.sqrt(HEAD_DIM)

    # --- embedding lookup: one-hot f32 matmul == exact row gather (MXU) ---
    vocab_iota = jax.lax.broadcasted_iota(jnp.int32, (BS, VOCAB), 1)
    onehot = (vocab_iota == ids_ref[...]).astype(jnp.float32)       # [BS, VOCAB]
    tok = jnp.dot(onehot, tokemb_ref[...],
                  preferred_element_type=jnp.float32)                # [BS, H]
    emb = tok.reshape(B, S, H) + posemb_ref[...][None, :, :]
    x = _layernorm(emb, embg_ref[...], embb_ref[...]).reshape(BS, H)  # f32

    # Additive attention-mask bias: [B, 1, S], 0 for valid keys, -1e9 for padding.
    mask_bias = (1.0 - mask_ref[...]) * -1e9

    # Static unroll over layers; stacked weights indexed with static l.
    for l in range(N_LAYERS):
        # --- fused QKV projection (bf16 operands, f32 accumulation) ---
        xb = x.astype(jnp.bfloat16)
        qkv = jnp.dot(xb, wqkv_ref[l],
                      preferred_element_type=jnp.float32) + bqkv_ref[l]   # [BS, 3H]
        qkv_b = qkv.astype(jnp.bfloat16)
        wo_l = wo_ref[l]                                                  # [H, H] bf16

        # --- per-head attention; output projection accumulated per head
        #     (avoids the lane-axis concatenate of 16-wide slices) ---
        attn = jnp.zeros((BS, H), jnp.float32)
        for h in range(N_HEADS):
            lo = h * HEAD_DIM
            qh = qkv_b[:, lo:lo + HEAD_DIM].reshape(B, S, HEAD_DIM)
            kh = qkv_b[:, H + lo:H + lo + HEAD_DIM].reshape(B, S, HEAD_DIM)
            vh = qkv_b[:, 2 * H + lo:2 * H + lo + HEAD_DIM].reshape(B, S, HEAD_DIM)

            s = jnp.einsum('bqd,bkd->bqk', qh, kh,
                           preferred_element_type=jnp.float32) * scale
            s = s + mask_bias                          # broadcast over query axis
            m = jnp.max(s, axis=-1, keepdims=True)
            p = jnp.exp(s - m)
            p = p * pl.reciprocal(jnp.sum(p, axis=-1, keepdims=True), approx=True)

            ctx = jnp.einsum('bqk,bkd->bqd', p.astype(jnp.bfloat16), vh,
                             preferred_element_type=jnp.float32)          # [B, S, hd]
            attn = attn + jnp.dot(
                ctx.reshape(BS, HEAD_DIM).astype(jnp.bfloat16),
                wo_l[lo:lo + HEAD_DIM, :],
                preferred_element_type=jnp.float32)

        attn = attn + bo_ref[l]
        h1 = _layernorm(x + attn, ln1g_ref[l], ln1b_ref[l])               # f32

        # --- feed-forward + residual + LN ---
        ff = jnp.dot(h1.astype(jnp.bfloat16), w1_ref[l],
                     preferred_element_type=jnp.float32) + b1_ref[l]
        # TODO(synk): HF BERT uses exact erf GELU; tanh approximation kept (EUP path),
        # numeric drift is ~1e-3.
        ff = jax.nn.gelu(ff, approximate=True)
        ff = jnp.dot(ff.astype(jnp.bfloat16), w2_ref[l],
                     preferred_element_type=jnp.float32) + b2_ref[l]
        x = _layernorm(h1 + ff, ln2g_ref[l], ln2b_ref[l])                 # [BS, H] f32

    # --- CLS token -> dropout(p=0.3, eval: identity) -> Linear head (lane-dense) ---
    cls = x.reshape(B, S, H)[:, 0, :]                                     # [B, H]
    out_ref[...] = jnp.dot(cls.astype(jnp.bfloat16), clsw_ref[...],
                           preferred_element_type=jnp.float32) + clsb_ref[...]


# ------------------------------- wrapper -------------------------------------
_VMEM_SPEC = pl.BlockSpec(memory_space=pltpu.MemorySpace.VMEM)


@jax.jit
def sentiment_classifier_forward(params, input_ids, attention_mask):
    B, S = input_ids.shape
    ids_col = input_ids.reshape(B * S, 1).astype(jnp.int32)
    mask3 = attention_mask.astype(jnp.float32).reshape(B, 1, S)

    args = (ids_col, mask3,
            params["tok_emb"], params["pos_emb"][:S],
            params["emb_ln_g"], params["emb_ln_b"],
            params["wqkv"], params["bqkv"], params["wo"], params["bo"],
            params["ln1g"], params["ln1b"],
            params["w1"], params["b1"], params["w2"], params["b2"],
            params["ln2g"], params["ln2b"],
            params["cls_w_pad"], params["cls_b_pad"])

    padded_logits = pl.pallas_call(
        fused_forward_kernel,
        out_shape=jax.ShapeDtypeStruct((B, LANE), jnp.float32),
        in_specs=[_VMEM_SPEC] * len(args),
        out_specs=_VMEM_SPEC,
    )(*args)
    return padded_logits[:, :N_CLASSES]


# ------------------------------ parameter init -------------------------------
def init_params(key):
    def nrm(k, shape, scale=0.02, dtype=jnp.float32):
        return (scale * jax.random.normal(k, shape)).astype(dtype)

    keys = jax.random.split(key, 3 + N_LAYERS)
    cls_w = nrm(keys[2], (HIDDEN, N_CLASSES), dtype=jnp.bfloat16)
    cls_b = jnp.zeros((N_CLASSES,), jnp.float32)
    params = {
        "tok_emb": nrm(keys[0], (VOCAB, HIDDEN)),
        "pos_emb": nrm(keys[1], (MAX_POS, HIDDEN)),
        "emb_ln_g": jnp.ones((1, HIDDEN), jnp.float32),
        "emb_ln_b": jnp.zeros((1, HIDDEN), jnp.float32),
        "cls_w": cls_w,
        "cls_b": cls_b,
        # Lane-dense classifier weights, padded once at init (not per call).
        "cls_w_pad": jnp.zeros((HIDDEN, LANE), jnp.bfloat16).at[:, :N_CLASSES].set(cls_w),
        "cls_b_pad": jnp.zeros((1, LANE), jnp.float32).at[:, :N_CLASSES].set(cls_b[None, :]),
    }
    wqkv, wo, w1, w2 = [], [], [], []
    for li in range(N_LAYERS):
        lk = jax.random.split(keys[3 + li], 4)
        wqkv.append(nrm(lk[0], (HIDDEN, 3 * HIDDEN), dtype=jnp.bfloat16))
        wo.append(nrm(lk[1], (HIDDEN, HIDDEN), dtype=jnp.bfloat16))
        w1.append(nrm(lk[2], (HIDDEN, FFN), dtype=jnp.bfloat16))
        w2.append(nrm(lk[3], (FFN, HIDDEN), dtype=jnp.bfloat16))
    params.update({
        "wqkv": jnp.stack(wqkv), "bqkv": jnp.zeros((N_LAYERS, 1, 3 * HIDDEN), jnp.float32),
        "wo": jnp.stack(wo),     "bo": jnp.zeros((N_LAYERS, 1, HIDDEN), jnp.float32),
        "ln1g": jnp.ones((N_LAYERS, 1, HIDDEN), jnp.float32),
        "ln1b": jnp.zeros((N_LAYERS, 1, HIDDEN), jnp.float32),
        "w1": jnp.stack(w1),     "b1": jnp.zeros((N_LAYERS, 1, FFN), jnp.float32),
        "w2": jnp.stack(w2),     "b2": jnp.zeros((N_LAYERS, 1, HIDDEN), jnp.float32),
        "ln2g": jnp.ones((N_LAYERS, 1, HIDDEN), jnp.float32),
        "ln2b": jnp.zeros((N_LAYERS, 1, HIDDEN), jnp.float32),
    })
    return params


# ------------------------- pure-JAX reference (f32) --------------------------
def forward_reference(params, input_ids, attention_mask):
    B, S = input_ids.shape
    emb = params["tok_emb"][input_ids] + params["pos_emb"][:S][None, :, :]
    mu = jnp.mean(emb, -1, keepdims=True)
    var = jnp.mean((emb - mu) ** 2, -1, keepdims=True)
    x = (emb - mu) * jax.lax.rsqrt(var + LN_EPS) * params["emb_ln_g"] + params["emb_ln_b"]
    mask_bias = ((1.0 - attention_mask.astype(jnp.float32)) * -1e9)[:, None, None, :]
    scale = 1.0 / math.sqrt(HEAD_DIM)
    x = x.reshape(B * S, HIDDEN)
    for l in range(N_LAYERS):
        qkv = x @ params["wqkv"][l].astype(jnp.float32) + params["bqkv"][l]
        q = qkv[:, :HIDDEN].reshape(B, S, N_HEADS, HEAD_DIM).transpose(0, 2, 1, 3)
        k = qkv[:, HIDDEN:2 * HIDDEN].reshape(B, S, N_HEADS, HEAD_DIM).transpose(0, 2, 1, 3)
        v = qkv[:, 2 * HIDDEN:].reshape(B, S, N_HEADS, HEAD_DIM).transpose(0, 2, 1, 3)
        s = jnp.einsum('bhqd,bhkd->bhqk', q, k) * scale + mask_bias
        p = jax.nn.softmax(s, axis=-1)
        ctx = jnp.einsum('bhqk,bhkd->bhqd', p, v).transpose(0, 2, 1, 3).reshape(B * S, HIDDEN)
        attn = ctx @ params["wo"][l].astype(jnp.float32) + params["bo"][l]
        h1 = _layernorm(x + attn, params["ln1g"][l], params["ln1b"][l])
        ff = jax.nn.gelu(h1 @ params["w1"][l].astype(jnp.float32) + params["b1"][l],
                         approximate=True)
        ff = ff @ params["w2"][l].astype(jnp.float32) + params["b2"][l]
        x = _layernorm(h1 + ff, params["ln2g"][l], params["ln2b"][l])
    cls = x.reshape(B, S, HIDDEN)[:, 0, :]
    return cls @ params["cls_w"].astype(jnp.float32) + params["cls_b"]


# ----------------------------------- main -------------------------------------
if __name__ == "__main__":
    key = jax.random.PRNGKey(0)
    pkey, ikey = jax.random.split(key)
    params = init_params(pkey)

    input_ids = jax.random.randint(ikey, (BATCH, SEQ), 0, VOCAB, dtype=jnp.int32)
    # First batch fully valid; second batch has last two tokens padded.
    attention_mask = jnp.array(
        [[1] * SEQ, [1] * (SEQ - 2) + [0, 0]], dtype=jnp.int32)

    logits = sentiment_classifier_forward(params, input_ids, attention_mask)
    jax.block_until_ready(logits)

    assert logits.shape == (BATCH, N_CLASSES), logits.shape
    assert bool(jnp.all(jnp.isfinite(logits)))

    ref = forward_reference(params, input_ids, attention_mask)
    assert bool(jnp.allclose(logits, ref, atol=5e-2, rtol=5e-2)), (logits, ref)

    print("KERNEL_OK")
</pallas_src>

<mosaic_0001>
module attributes {stable_mosaic.version = 11 : i64} {
  func.func @fused_forward_kernel(%arg0: memref<16x1xi32, #tpu.memory_space<vmem>>, %arg1: memref<2x1x8xf32, #tpu.memory_space<vmem>>, %arg2: memref<64x64xf32, #tpu.memory_space<vmem>>, %arg3: memref<8x64xf32, #tpu.memory_space<vmem>>, %arg4: memref<1x64xf32, #tpu.memory_space<vmem>>, %arg5: memref<1x64xf32, #tpu.memory_space<vmem>>, %arg6: memref<2x64x192xbf16, #tpu.memory_space<vmem>>, %arg7: memref<2x1x192xf32, #tpu.memory_space<vmem>>, %arg8: memref<2x64x64xbf16, #tpu.memory_space<vmem>>, %arg9: memref<2x1x64xf32, #tpu.memory_space<vmem>>, %arg10: memref<2x1x64xf32, #tpu.memory_space<vmem>>, %arg11: memref<2x1x64xf32, #tpu.memory_space<vmem>>, %arg12: memref<2x64x128xbf16, #tpu.memory_space<vmem>>, %arg13: memref<2x1x128xf32, #tpu.memory_space<vmem>>, %arg14: memref<2x128x64xbf16, #tpu.memory_space<vmem>>, %arg15: memref<2x1x64xf32, #tpu.memory_space<vmem>>, %arg16: memref<2x1x64xf32, #tpu.memory_space<vmem>>, %arg17: memref<2x1x64xf32, #tpu.memory_space<vmem>>, %arg18: memref<64x128xbf16, #tpu.memory_space<vmem>>, %arg19: memref<1x128xf32, #tpu.memory_space<vmem>>, %arg20: memref<2x128xf32, #tpu.memory_space<vmem>>) attributes {dimension_semantics = [], scalar_prefetch = 0 : i64, scratch_operands = 0 : i64, tpu.core_type = #tpu.core_type<tc>} {
    %0 = tpu.iota {dimensions = array<i32: 1>} : vector<16x64xi32>
    %c0 = arith.constant 0 : index
    %c0_0 = arith.constant 0 : index
    %1 = vector.load %arg0[%c0, %c0_0] : memref<16x1xi32, #tpu.memory_space<vmem>>, vector<16x1xi32>
    %2 = vector.broadcast %1 : vector<16x1xi32> to vector<16x64xi32>
    %3 = arith.cmpi eq, %0, %2 : vector<16x64xi32>
    %4 = arith.extui %3 : vector<16x64xi1> to vector<16x64xi32>
    %5 = arith.sitofp %4 : vector<16x64xi32> to vector<16x64xf32>
    %c0_1 = arith.constant 0 : index
    %c0_2 = arith.constant 0 : index
    %6 = vector.load %arg2[%c0_1, %c0_2] : memref<64x64xf32, #tpu.memory_space<vmem>>, vector<64x64xf32>
    %cst = arith.constant dense<0.000000e+00> : vector<16x64xf32>
    %7 = tpu.matmul %5, %6, %cst {dimension_numbers = #tpu.dot_dimension_numbers<[1], [0], [0], [1], [0, 0, 1, 1], [], []>} : vector<16x64xf32>, vector<64x64xf32>, vector<16x64xf32> -> vector<16x64xf32>
    %8 = vector.shape_cast %7 : vector<16x64xf32> to vector<2x8x64xf32>
    %c0_3 = arith.constant 0 : index
    %c0_4 = arith.constant 0 : index
    %9 = vector.load %arg3[%c0_3, %c0_4] : memref<8x64xf32, #tpu.memory_space<vmem>>, vector<8x64xf32>
    %10 = vector.shape_cast %9 : vector<8x64xf32> to vector<1x8x64xf32>
    %11 = vector.broadcast %10 : vector<1x8x64xf32> to vector<2x8x64xf32>
    %12 = arith.addf %8, %11 : vector<2x8x64xf32>
    %c0_5 = arith.constant 0 : index
    %c0_6 = arith.constant 0 : index
    %13 = vector.load %arg4[%c0_5, %c0_6] : memref<1x64xf32, #tpu.memory_space<vmem>>, vector<1x64xf32>
    %c0_7 = arith.constant 0 : index
    %c0_8 = arith.constant 0 : index
    %14 = vector.load %arg5[%c0_7, %c0_8] : memref<1x64xf32, #tpu.memory_space<vmem>>, vector<1x64xf32>
    %cst_9 = arith.constant dense<0.000000e+00> : vector<2x8xf32>
    %15 = vector.multi_reduction <add>, %12, %cst_9 [2] : vector<2x8x64xf32> to vector<2x8xf32>
    %16 = vector.shape_cast %15 : vector<2x8xf32> to vector<2x8x1xf32>
    %cst_10 = arith.constant 6.400000e+01 : f32
    %17 = vector.broadcast %cst_10 : f32 to vector<2x8x1xf32>
    %18 = arith.divf %16, %17 : vector<2x8x1xf32>
    %19 = vector.broadcast %18 : vector<2x8x1xf32> to vector<2x8x64xf32>
    %20 = arith.subf %12, %19 : vector<2x8x64xf32>
    %21 = vector.broadcast %18 : vector<2x8x1xf32> to vector<2x8x64xf32>
    %22 = arith.subf %12, %21 : vector<2x8x64xf32>
    %23 = arith.mulf %20, %22 : vector<2x8x64xf32>
    %cst_11 = arith.constant dense<0.000000e+00> : vector<2x8xf32>
    %24 = vector.multi_reduction <add>, %23, %cst_11 [2] : vector<2x8x64xf32> to vector<2x8xf32>
    %25 = vector.shape_cast %24 : vector<2x8xf32> to vector<2x8x1xf32>
    %cst_12 = arith.constant 6.400000e+01 : f32
    %26 = vector.broadcast %cst_12 : f32 to vector<2x8x1xf32>
    %27 = arith.divf %25, %26 : vector<2x8x1xf32>
    %28 = vector.broadcast %18 : vector<2x8x1xf32> to vector<2x8x64xf32>
    %29 = arith.subf %12, %28 : vector<2x8x64xf32>
    %cst_13 = arith.constant 9.99999996E-13 : f32
    %30 = vector.broadcast %cst_13 : f32 to vector<2x8x1xf32>
    %31 = arith.addf %27, %30 : vector<2x8x1xf32>
    %32 = math.rsqrt %31 : vector<2x8x1xf32>
    %33 = vector.broadcast %32 : vector<2x8x1xf32> to vector<2x8x64xf32>
    %34 = arith.mulf %29, %33 : vector<2x8x64xf32>
    %35 = vector.shape_cast %13 : vector<1x64xf32> to vector<1x1x64xf32>
    %36 = vector.broadcast %35 : vector<1x1x64xf32> to vector<2x8x64xf32>
    %37 = arith.mulf %34, %36 : vector<2x8x64xf32>
    %38 = vector.shape_cast %14 : vector<1x64xf32> to vector<1x1x64xf32>
    %39 = vector.broadcast %38 : vector<1x1x64xf32> to vector<2x8x64xf32>
    %40 = arith.addf %37, %39 : vector<2x8x64xf32>
    %41 = vector.shape_cast %40 : vector<2x8x64xf32> to vector<16x64xf32>
    %c0_14 = arith.constant 0 : index
    %c0_15 = arith.constant 0 : index
    %c0_16 = arith.constant 0 : index
    %42 = vector.load %arg1[%c0_14, %c0_15, %c0_16] : memref<2x1x8xf32, #tpu.memory_space<vmem>>, vector<2x1x8xf32>
    %cst_17 = arith.constant 1.000000e+00 : f32
    %43 = vector.broadcast %cst_17 : f32 to vector<2x1x8xf32>
    %44 = arith.subf %43, %42 : vector<2x1x8xf32>
    %cst_18 = arith.constant -1.000000e+09 : f32
    %45 = vector.broadcast %cst_18 : f32 to vector<2x1x8xf32>
    %46 = arith.mulf %44, %45 : vector<2x1x8xf32>
    %47 = arith.truncf %41 : vector<16x64xf32> to vector<16x64xbf16>
    %c0_19 = arith.constant 0 : index
    %c0_20 = arith.constant 0 : index
    %c0_21 = arith.constant 0 : index
    %48 = vector.load %arg6[%c0_19, %c0_20, %c0_21] : memref<2x64x192xbf16, #tpu.memory_space<vmem>>, vector<1x64x192xbf16>
    %49 = vector.shape_cast %48 : vector<1x64x192xbf16> to vector<64x192xbf16>
    %cst_22 = arith.constant dense<0.000000e+00> : vector<16x192xf32>
    %50 = tpu.matmul %47, %49, %cst_22 {dimension_numbers = #tpu.dot_dimension_numbers<[1], [0], [0], [1], [0, 0, 1, 1], [], []>} : vector<16x64xbf16>, vector<64x192xbf16>, vector<16x192xf32> -> vector<16x192xf32>
    %c0_23 = arith.constant 0 : index
    %c0_24 = arith.constant 0 : index
    %c0_25 = arith.constant 0 : index
    %51 = vector.load %arg7[%c0_23, %c0_24, %c0_25] : memref<2x1x192xf32, #tpu.memory_space<vmem>>, vector<1x1x192xf32>
    %52 = vector.shape_cast %51 : vector<1x1x192xf32> to vector<1x192xf32>
    %53 = vector.broadcast %52 : vector<1x192xf32> to vector<16x192xf32>
    %54 = arith.addf %50, %53 : vector<16x192xf32>
    %55 = arith.truncf %54 : vector<16x192xf32> to vector<16x192xbf16>
    %c0_26 = arith.constant 0 : index
    %c0_27 = arith.constant 0 : index
    %c0_28 = arith.constant 0 : index
    %56 = vector.load %arg8[%c0_26, %c0_27, %c0_28] : memref<2x64x64xbf16, #tpu.memory_space<vmem>>, vector<1x64x64xbf16>
    %57 = vector.shape_cast %56 : vector<1x64x64xbf16> to vector<64x64xbf16>
    %cst_29 = arith.constant 0.000000e+00 : f32
    %58 = vector.broadcast %cst_29 : f32 to vector<16x64xf32>
    %59 = vector.extract_strided_slice %55 {offsets = [0, 0], sizes = [16, 16], strides = [1, 1]} : vector<16x192xbf16> to vector<16x16xbf16>
    %60 = vector.shape_cast %59 : vector<16x16xbf16> to vector<2x8x16xbf16>
    %61 = vector.extract_strided_slice %55 {offsets = [0, 64], sizes = [16, 16], strides = [1, 1]} : vector<16x192xbf16> to vector<16x16xbf16>
    %62 = vector.shape_cast %61 : vector<16x16xbf16> to vector<2x8x16xbf16>
    %63 = vector.extract_strided_slice %55 {offsets = [0, 128], sizes = [16, 16], strides = [1, 1]} : vector<16x192xbf16> to vector<16x16xbf16>
    %64 = vector.shape_cast %63 : vector<16x16xbf16> to vector<2x8x16xbf16>
    "tpu.trace_start"() <{level = 10 : i32, message = "bqd,bkd->bqk"}> : () -> ()
    %cst_30 = arith.constant dense<0.000000e+00> : vector<2x8x8xf32>
    %65 = tpu.matmul %60, %62, %cst_30 {dimension_numbers = #tpu.dot_dimension_numbers<[2], [2], [1], [1], [0, 0, 0, 1, 1, 1], [0], [0]>} : vector<2x8x16xbf16>, vector<2x8x16xbf16>, vector<2x8x8xf32> -> vector<2x8x8xf32>
    "tpu.trace_stop"() : () -> ()
    %cst_31 = arith.constant 2.500000e-01 : f32
    %66 = vector.broadcast %cst_31 : f32 to vector<2x8x8xf32>
    %67 = arith.mulf %65, %66 : vector<2x8x8xf32>
    %68 = vector.broadcast %46 : vector<2x1x8xf32> to vector<2x8x8xf32>
    %69 = arith.addf %67, %68 : vector<2x8x8xf32>
    %cst_32 = arith.constant dense<0xFF800000> : vector<2x8xf32>
    %70 = vector.multi_reduction <maximumf>, %69, %cst_32 [2] : vector<2x8x8xf32> to vector<2x8xf32>
    %71 = vector.shape_cast %70 : vector<2x8xf32> to vector<2x8x1xf32>
    %72 = vector.broadcast %71 : vector<2x8x1xf32> to vector<2x8x8xf32>
    %73 = arith.subf %69, %72 : vector<2x8x8xf32>
    %74 = math.exp %73 : vector<2x8x8xf32>
    %cst_33 = arith.constant dense<0.000000e+00> : vector<2x8xf32>
    %75 = vector.multi_reduction <add>, %74, %cst_33 [2] : vector<2x8x8xf32> to vector<2x8xf32>
    %76 = vector.shape_cast %75 : vector<2x8xf32> to vector<2x8x1xf32>
    %77 = tpu.reciprocal %76 {approx = true} : vector<2x8x1xf32> -> vector<2x8x1xf32>
    %78 = vector.broadcast %77 : vector<2x8x1xf32> to vector<2x8x8xf32>
    %79 = arith.mulf %74, %78 : vector<2x8x8xf32>
    %80 = arith.truncf %79 : vector<2x8x8xf32> to vector<2x8x8xbf16>
    "tpu.trace_start"() <{level = 10 : i32, message = "bqk,bkd->bqd"}> : () -> ()
    %cst_34 = arith.constant dense<0.000000e+00> : vector<2x8x16xf32>
    %81 = tpu.matmul %80, %64, %cst_34 {dimension_numbers = #tpu.dot_dimension_numbers<[2], [1], [1], [2], [0, 0, 0, 1, 1, 2], [0], [0]>} : vector<2x8x8xbf16>, vector<2x8x16xbf16>, vector<2x8x16xf32> -> vector<2x8x16xf32>
    "tpu.trace_stop"() : () -> ()
    %82 = vector.shape_cast %81 : vector<2x8x16xf32> to vector<16x16xf32>
    %83 = arith.truncf %82 : vector<16x16xf32> to vector<16x16xbf16>
    %84 = vector.extract_strided_slice %57 {offsets = [0, 0], sizes = [16, 64], strides = [1, 1]} : vector<64x64xbf16> to vector<16x64xbf16>
    %cst_35 = arith.constant dense<0.000000e+00> : vector<16x64xf32>
    %85 = tpu.matmul %83, %84, %cst_35 {dimension_numbers = #tpu.dot_dimension_numbers<[1], [0], [0], [1], [0, 0, 1, 1], [], []>} : vector<16x16xbf16>, vector<16x64xbf16>, vector<16x64xf32> -> vector<16x64xf32>
    %86 = arith.addf %58, %85 : vector<16x64xf32>
    %87 = vector.extract_strided_slice %55 {offsets = [0, 16], sizes = [16, 16], strides = [1, 1]} : vector<16x192xbf16> to vector<16x16xbf16>
    %88 = vector.shape_cast %87 : vector<16x16xbf16> to vector<2x8x16xbf16>
    %89 = vector.extract_strided_slice %55 {offsets = [0, 80], sizes = [16, 16], strides = [1, 1]} : vector<16x192xbf16> to vector<16x16xbf16>
    %90 = vector.shape_cast %89 : vector<16x16xbf16> to vector<2x8x16xbf16>
    %91 = vector.extract_strided_slice %55 {offsets = [0, 144], sizes = [16, 16], strides = [1, 1]} : vector<16x192xbf16> to vector<16x16xbf16>
    %92 = vector.shape_cast %91 : vector<16x16xbf16> to vector<2x8x16xbf16>
    "tpu.trace_start"() <{level = 10 : i32, message = "bqd,bkd->bqk"}> : () -> ()
    %cst_36 = arith.constant dense<0.000000e+00> : vector<2x8x8xf32>
    %93 = tpu.matmul %88, %90, %cst_36 {dimension_numbers = #tpu.dot_dimension_numbers<[2], [2], [1], [1], [0, 0, 0, 1, 1, 1], [0], [0]>} : vector<2x8x16xbf16>, vector<2x8x16xbf16>, vector<2x8x8xf32> -> vector<2x8x8xf32>
    "tpu.trace_stop"() : () -> ()
    %cst_37 = arith.constant 2.500000e-01 : f32
    %94 = vector.broadcast %cst_37 : f32 to vector<2x8x8xf32>
    %95 = arith.mulf %93, %94 : vector<2x8x8xf32>
    %96 = vector.broadcast %46 : vector<2x1x8xf32> to vector<2x8x8xf32>
    %97 = arith.addf %95, %96 : vector<2x8x8xf32>
    %cst_38 = arith.constant dense<0xFF800000> : vector<2x8xf32>
    %98 = vector.multi_reduction <maximumf>, %97, %cst_38 [2] : vector<2x8x8xf32> to vector<2x8xf32>
    %99 = vector.shape_cast %98 : vector<2x8xf32> to vector<2x8x1xf32>
    %100 = vector.broadcast %99 : vector<2x8x1xf32> to vector<2x8x8xf32>
    %101 = arith.subf %97, %100 : vector<2x8x8xf32>
    %102 = math.exp %101 : vector<2x8x8xf32>
    %cst_39 = arith.constant dense<0.000000e+00> : vector<2x8xf32>
    %103 = vector.multi_reduction <add>, %102, %cst_39 [2] : vector<2x8x8xf32> to vector<2x8xf32>
    %104 = vector.shape_cast %103 : vector<2x8xf32> to vector<2x8x1xf32>
    %105 = tpu.reciprocal %104 {approx = true} : vector<2x8x1xf32> -> vector<2x8x1xf32>
    %106 = vector.broadcast %105 : vector<2x8x1xf32> to vector<2x8x8xf32>
    %107 = arith.mulf %102, %106 : vector<2x8x8xf32>
    %108 = arith.truncf %107 : vector<2x8x8xf32> to vector<2x8x8xbf16>
    "tpu.trace_start"() <{level = 10 : i32, message = "bqk,bkd->bqd"}> : () -> ()
    %cst_40 = arith.constant dense<0.000000e+00> : vector<2x8x16xf32>
    %109 = tpu.matmul %108, %92, %cst_40 {dimension_numbers = #tpu.dot_dimension_numbers<[2], [1], [1], [2], [0, 0, 0, 1, 1, 2], [0], [0]>} : vector<2x8x8xbf16>, vector<2x8x16xbf16>, vector<2x8x16xf32> -> vector<2x8x16xf32>
    "tpu.trace_stop"() : () -> ()
    %110 = vector.shape_cast %109 : vector<2x8x16xf32> to vector<16x16xf32>
    %111 = arith.truncf %110 : vector<16x16xf32> to vector<16x16xbf16>
    %112 = vector.extract_strided_slice %57 {offsets = [16, 0], sizes = [16, 64], strides = [1, 1]} : vector<64x64xbf16> to vector<16x64xbf16>
    %cst_41 = arith.constant dense<0.000000e+00> : vector<16x64xf32>
    %113 = tpu.matmul %111, %112, %cst_41 {dimension_numbers = #tpu.dot_dimension_numbers<[1], [0], [0], [1], [0, 0, 1, 1], [], []>} : vector<16x16xbf16>, vector<16x64xbf16>, vector<16x64xf32> -> vector<16x64xf32>
    %114 = arith.addf %86, %113 : vector<16x64xf32>
    %115 = vector.extract_strided_slice %55 {offsets = [0, 32], sizes = [16, 16], strides = [1, 1]} : vector<16x192xbf16> to vector<16x16xbf16>
    %116 = vector.shape_cast %115 : vector<16x16xbf16> to vector<2x8x16xbf16>
    %117 = vector.extract_strided_slice %55 {offsets = [0, 96], sizes = [16, 16], strides = [1, 1]} : vector<16x192xbf16> to vector<16x16xbf16>
    %118 = vector.shape_cast %117 : vector<16x16xbf16> to vector<2x8x16xbf16>
    %119 = vector.extract_strided_slice %55 {offsets = [0, 160], sizes = [16, 16], strides = [1, 1]} : vector<16x192xbf16> to vector<16x16xbf16>
    %120 = vector.shape_cast %119 : vector<16x16xbf16> to vector<2x8x16xbf16>
    "tpu.trace_start"() <{level = 10 : i32, message = "bqd,bkd->bqk"}> : () -> ()
    %cst_42 = arith.constant dense<0.000000e+00> : vector<2x8x8xf32>
    %121 = tpu.matmul %116, %118, %cst_42 {dimension_numbers = #tpu.dot_dimension_numbers<[2], [2], [1], [1], [0, 0, 0, 1, 1, 1], [0], [0]>} : vector<2x8x16xbf16>, vector<2x8x16xbf16>, vector<2x8x8xf32> -> vector<2x8x8xf32>
    "tpu.trace_stop"() : () -> ()
    %cst_43 = arith.constant 2.500000e-01 : f32
    %122 = vector.broadcast %cst_43 : f32 to vector<2x8x8xf32>
    %123 = arith.mulf %121, %122 : vector<2x8x8xf32>
    %124 = vector.broadcast %46 : vector<2x1x8xf32> to vector<2x8x8xf32>
    %125 = arith.addf %123, %124 : vector<2x8x8xf32>
    %cst_44 = arith.constant dense<0xFF800000> : vector<2x8xf32>
    %126 = vector.multi_reduction <maximumf>, %125, %cst_44 [2] : vector<2x8x8xf32> to vector<2x8xf32>
    %127 = vector.shape_cast %126 : vector<2x8xf32> to vector<2x8x1xf32>
    %128 = vector.broadcast %127 : vector<2x8x1xf32> to vector<2x8x8xf32>
    %129 = arith.subf %125, %128 : vector<2x8x8xf32>
    %130 = math.exp %129 : vector<2x8x8xf32>
    %cst_45 = arith.constant dense<0.000000e+00> : vector<2x8xf32>
    %131 = vector.multi_reduction <add>, %130, %cst_45 [2] : vector<2x8x8xf32> to vector<2x8xf32>
    %132 = vector.shape_cast %131 : vector<2x8xf32> to vector<2x8x1xf32>
    %133 = tpu.reciprocal %132 {approx = true} : vector<2x8x1xf32> -> vector<2x8x1xf32>
    %134 = vector.broadcast %133 : vector<2x8x1xf32> to vector<2x8x8xf32>
    %135 = arith.mulf %130, %134 : vector<2x8x8xf32>
    %136 = arith.truncf %135 : vector<2x8x8xf32> to vector<2x8x8xbf16>
    "tpu.trace_start"() <{level = 10 : i32, message = "bqk,bkd->bqd"}> : () -> ()
    %cst_46 = arith.constant dense<0.000000e+00> : vector<2x8x16xf32>
    %137 = tpu.matmul %136, %120, %cst_46 {dimension_numbers = #tpu.dot_dimension_numbers<[2], [1], [1], [2], [0, 0, 0, 1, 1, 2], [0], [0]>} : vector<2x8x8xbf16>, vector<2x8x16xbf16>, vector<2x8x16xf32> -> vector<2x8x16xf32>
    "tpu.trace_stop"() : () -> ()
    %138 = vector.shape_cast %137 : vector<2x8x16xf32> to vector<16x16xf32>
    %139 = arith.truncf %138 : vector<16x16xf32> to vector<16x16xbf16>
    %140 = vector.extract_strided_slice %57 {offsets = [32, 0], sizes = [16, 64], strides = [1, 1]} : vector<64x64xbf16> to vector<16x64xbf16>
    %cst_47 = arith.constant dense<0.000000e+00> : vector<16x64xf32>
    %141 = tpu.matmul %139, %140, %cst_47 {dimension_numbers = #tpu.dot_dimension_numbers<[1], [0], [0], [1], [0, 0, 1, 1], [], []>} : vector<16x16xbf16>, vector<16x64xbf16>, vector<16x64xf32> -> vector<16x64xf32>
    %142 = arith.addf %114, %141 : vector<16x64xf32>
    %143 = vector.extract_strided_slice %55 {offsets = [0, 48], sizes = [16, 16], strides = [1, 1]} : vector<16x192xbf16> to vector<16x16xbf16>
    %144 = vector.shape_cast %143 : vector<16x16xbf16> to vector<2x8x16xbf16>
    %145 = vector.extract_strided_slice %55 {offsets = [0, 112], sizes = [16, 16], strides = [1, 1]} : vector<16x192xbf16> to vector<16x16xbf16>
    %146 = vector.shape_cast %145 : vector<16x16xbf16> to vector<2x8x16xbf16>
    %147 = vector.extract_strided_slice %55 {offsets = [0, 176], sizes = [16, 16], strides = [1, 1]} : vector<16x192xbf16> to vector<16x16xbf16>
    %148 = vector.shape_cast %147 : vector<16x16xbf16> to vector<2x8x16xbf16>
    "tpu.trace_start"() <{level = 10 : i32, message = "bqd,bkd->bqk"}> : () -> ()
    %cst_48 = arith.constant dense<0.000000e+00> : vector<2x8x8xf32>
    %149 = tpu.matmul %144, %146, %cst_48 {dimension_numbers = #tpu.dot_dimension_numbers<[2], [2], [1], [1], [0, 0, 0, 1, 1, 1], [0], [0]>} : vector<2x8x16xbf16>, vector<2x8x16xbf16>, vector<2x8x8xf32> -> vector<2x8x8xf32>
    "tpu.trace_stop"() : () -> ()
    %cst_49 = arith.constant 2.500000e-01 : f32
    %150 = vector.broadcast %cst_49 : f32 to vector<2x8x8xf32>
    %151 = arith.mulf %149, %150 : vector<2x8x8xf32>
    %152 = vector.broadcast %46 : vector<2x1x8xf32> to vector<2x8x8xf32>
    %153 = arith.addf %151, %152 : vector<2x8x8xf32>
    %cst_50 = arith.constant dense<0xFF800000> : vector<2x8xf32>
    %154 = vector.multi_reduction <maximumf>, %153, %cst_50 [2] : vector<2x8x8xf32> to vector<2x8xf32>
    %155 = vector.shape_cast %154 : vector<2x8xf32> to vector<2x8x1xf32>
    %156 = vector.broadcast %155 : vector<2x8x1xf32> to vector<2x8x8xf32>
    %157 = arith.subf %153, %156 : vector<2x8x8xf32>
    %158 = math.exp %157 : vector<2x8x8xf32>
    %cst_51 = arith.constant dense<0.000000e+00> : vector<2x8xf32>
    %159 = vector.multi_reduction <add>, %158, %cst_51 [2] : vector<2x8x8xf32> to vector<2x8xf32>
    %160 = vector.shape_cast %159 : vector<2x8xf32> to vector<2x8x1xf32>
    %161 = tpu.reciprocal %160 {approx = true} : vector<2x8x1xf32> -> vector<2x8x1xf32>
    %162 = vector.broadcast %161 : vector<2x8x1xf32> to vector<2x8x8xf32>
    %163 = arith.mulf %158, %162 : vector<2x8x8xf32>
    %164 = arith.truncf %163 : vector<2x8x8xf32> to vector<2x8x8xbf16>
    "tpu.trace_start"() <{level = 10 : i32, message = "bqk,bkd->bqd"}> : () -> ()
    %cst_52 = arith.constant dense<0.000000e+00> : vector<2x8x16xf32>
    %165 = tpu.matmul %164, %148, %cst_52 {dimension_numbers = #tpu.dot_dimension_numbers<[2], [1], [1], [2], [0, 0, 0, 1, 1, 2], [0], [0]>} : vector<2x8x8xbf16>, vector<2x8x16xbf16>, vector<2x8x16xf32> -> vector<2x8x16xf32>
    "tpu.trace_stop"() : () -> ()
    %166 = vector.shape_cast %165 : vector<2x8x16xf32> to vector<16x16xf32>
    %167 = arith.truncf %166 : vector<16x16xf32> to vector<16x16xbf16>
    %168 = vector.extract_strided_slice %57 {offsets = [48, 0], sizes = [16, 64], strides = [1, 1]} : vector<64x64xbf16> to vector<16x64xbf16>
    %cst_53 = arith.constant dense<0.000000e+00> : vector<16x64xf32>
    %169 = tpu.matmul %167, %168, %cst_53 {dimension_numbers = #tpu.dot_dimension_numbers<[1], [0], [0], [1], [0, 0, 1, 1], [], []>} : vector<16x16xbf16>, vector<16x64xbf16>, vector<16x64xf32> -> vector<16x64xf32>
    %170 = arith.addf %142, %169 : vector<16x64xf32>
    %c0_54 = arith.constant 0 : index
    %c0_55 = arith.constant 0 : index
    %c0_56 = arith.constant 0 : index
    %171 = vector.load %arg9[%c0_54, %c0_55, %c0_56] : memref<2x1x64xf32, #tpu.memory_space<vmem>>, vector<1x1x64xf32>
    %172 = vector.shape_cast %171 : vector<1x1x64xf32> to vector<1x64xf32>
    %173 = vector.broadcast %172 : vector<1x64xf32> to vector<16x64xf32>
    %174 = arith.addf %170, %173 : vector<16x64xf32>
    %175 = arith.addf %41, %174 : vector<16x64xf32>
    %c0_57 = arith.constant 0 : index
    %c0_58 = arith.constant 0 : index
    %c0_59 = arith.constant 0 : index
    %176 = vector.load %arg10[%c0_57, %c0_58, %c0_59] : memref<2x1x64xf32, #tpu.memory_space<vmem>>, vector<1x1x64xf32>
    %177 = vector.shape_cast %176 : vector<1x1x64xf32> to vector<1x64xf32>
    %c0_60 = arith.constant 0 : index
    %c0_61 = arith.constant 0 : index
    %c0_62 = arith.constant 0 : index
    %178 = vector.load %arg11[%c0_60, %c0_61, %c0_62] : memref<2x1x64xf32, #tpu.memory_space<vmem>>, vector<1x1x64xf32>
    %179 = vector.shape_cast %178 : vector<1x1x64xf32> to vector<1x64xf32>
    %cst_63 = arith.constant dense<0.000000e+00> : vector<16xf32>
    %180 = vector.multi_reduction <add>, %175, %cst_63 [1] : vector<16x64xf32> to vector<16xf32>
    %181 = vector.shape_cast %180 : vector<16xf32> to vector<16x1xf32>
    %cst_64 = arith.constant 6.400000e+01 : f32
    %182 = vector.broadcast %cst_64 : f32 to vector<16x1xf32>
    %183 = arith.divf %181, %182 : vector<16x1xf32>
    %184 = vector.broadcast %183 : vector<16x1xf32> to vector<16x64xf32>
    %185 = arith.subf %175, %184 : vector<16x64xf32>
    %186 = vector.broadcast %183 : vector<16x1xf32> to vector<16x64xf32>
    %187 = arith.subf %175, %186 : vector<16x64xf32>
    %188 = arith.mulf %185, %187 : vector<16x64xf32>
    %cst_65 = arith.constant dense<0.000000e+00> : vector<16xf32>
    %189 = vector.multi_reduction <add>, %188, %cst_65 [1] : vector<16x64xf32> to vector<16xf32>
    %190 = vector.shape_cast %189 : vector<16xf32> to vector<16x1xf32>
    %cst_66 = arith.constant 6.400000e+01 : f32
    %191 = vector.broadcast %cst_66 : f32 to vector<16x1xf32>
    %192 = arith.divf %190, %191 : vector<16x1xf32>
    %193 = vector.broadcast %183 : vector<16x1xf32> to vector<16x64xf32>
    %194 = arith.subf %175, %193 : vector<16x64xf32>
    %cst_67 = arith.constant 9.99999996E-13 : f32
    %195 = vector.broadcast %cst_67 : f32 to vector<16x1xf32>
    %196 = arith.addf %192, %195 : vector<16x1xf32>
    %197 = math.rsqrt %196 : vector<16x1xf32>
    %198 = vector.broadcast %197 : vector<16x1xf32> to vector<16x64xf32>
    %199 = arith.mulf %194, %198 : vector<16x64xf32>
    %200 = vector.broadcast %177 : vector<1x64xf32> to vector<16x64xf32>
    %201 = arith.mulf %199, %200 : vector<16x64xf32>
    %202 = vector.broadcast %179 : vector<1x64xf32> to vector<16x64xf32>
    %203 = arith.addf %201, %202 : vector<16x64xf32>
    %204 = arith.truncf %203 : vector<16x64xf32> to vector<16x64xbf16>
    %c0_68 = arith.constant 0 : index
    %c0_69 = arith.constant 0 : index
    %c0_70 = arith.constant 0 : index
    %205 = vector.load %arg12[%c0_68, %c0_69, %c0_70] : memref<2x64x128xbf16, #tpu.memory_space<vmem>>, vector<1x64x128xbf16>
    %206 = vector.shape_cast %205 : vector<1x64x128xbf16> to vector<64x128xbf16>
    %cst_71 = arith.constant dense<0.000000e+00> : vector<16x128xf32>
    %207 = tpu.matmul %204, %206, %cst_71 {dimension_numbers = #tpu.dot_dimension_numbers<[1], [0], [0], [1], [0, 0, 1, 1], [], []>} : vector<16x64xbf16>, vector<64x128xbf16>, vector<16x128xf32> -> vector<16x128xf32>
    %c0_72 = arith.constant 0 : index
    %c0_73 = arith.constant 0 : index
    %c0_74 = arith.constant 0 : index
    %208 = vector.load %arg13[%c0_72, %c0_73, %c0_74] : memref<2x1x128xf32, #tpu.memory_space<vmem>>, vector<1x1x128xf32>
    %209 = vector.shape_cast %208 : vector<1x1x128xf32> to vector<1x128xf32>
    %210 = vector.broadcast %209 : vector<1x128xf32> to vector<16x128xf32>
    %211 = arith.addf %207, %210 : vector<16x128xf32>
    %212 = arith.mulf %211, %211 : vector<16x128xf32>
    %213 = arith.mulf %211, %212 : vector<16x128xf32>
    %cst_75 = arith.constant 4.471500e-02 : f32
    %214 = vector.broadcast %cst_75 : f32 to vector<16x128xf32>
    %215 = arith.mulf %214, %213 : vector<16x128xf32>
    %216 = arith.addf %211, %215 : vector<16x128xf32>
    %cst_76 = arith.constant 0.797884583 : f32
    %217 = vector.broadcast %cst_76 : f32 to vector<16x128xf32>
    %218 = arith.mulf %217, %216 : vector<16x128xf32>
    %219 = math.tanh %218 : vector<16x128xf32>
    %cst_77 = arith.constant 1.000000e+00 : f32
    %220 = vector.broadcast %cst_77 : f32 to vector<16x128xf32>
    %221 = arith.addf %220, %219 : vector<16x128xf32>
    %cst_78 = arith.constant 5.000000e-01 : f32
    %222 = vector.broadcast %cst_78 : f32 to vector<16x128xf32>
    %223 = arith.mulf %222, %221 : vector<16x128xf32>
    %224 = arith.mulf %211, %223 : vector<16x128xf32>
    %225 = arith.truncf %224 : vector<16x128xf32> to vector<16x128xbf16>
    %c0_79 = arith.constant 0 : index
    %c0_80 = arith.constant 0 : index
    %c0_81 = arith.constant 0 : index
    %226 = vector.load %arg14[%c0_79, %c0_80, %c0_81] : memref<2x128x64xbf16, #tpu.memory_space<vmem>>, vector<1x128x64xbf16>
    %227 = vector.shape_cast %226 : vector<1x128x64xbf16> to vector<128x64xbf16>
    %cst_82 = arith.constant dense<0.000000e+00> : vector<16x64xf32>
    %228 = tpu.matmul %225, %227, %cst_82 {dimension_numbers = #tpu.dot_dimension_numbers<[1], [0], [0], [1], [0, 0, 1, 1], [], []>} : vector<16x128xbf16>, vector<128x64xbf16>, vector<16x64xf32> -> vector<16x64xf32>
    %c0_83 = arith.constant 0 : index
    %c0_84 = arith.constant 0 : index
    %c0_85 = arith.constant 0 : index
    %229 = vector.load %arg15[%c0_83, %c0_84, %c0_85] : memref<2x1x64xf32, #tpu.memory_space<vmem>>, vector<1x1x64xf32>
    %230 = vector.shape_cast %229 : vector<1x1x64xf32> to vector<1x64xf32>
    %231 = vector.broadcast %230 : vector<1x64xf32> to vector<16x64xf32>
    %232 = arith.addf %228, %231 : vector<16x64xf32>
    %233 = arith.addf %203, %232 : vector<16x64xf32>
    %c0_86 = arith.constant 0 : index
    %c0_87 = arith.constant 0 : index
    %c0_88 = arith.constant 0 : index
    %234 = vector.load %arg16[%c0_86, %c0_87, %c0_88] : memref<2x1x64xf32, #tpu.memory_space<vmem>>, vector<1x1x64xf32>
    %235 = vector.shape_cast %234 : vector<1x1x64xf32> to vector<1x64xf32>
    %c0_89 = arith.constant 0 : index
    %c0_90 = arith.constant 0 : index
    %c0_91 = arith.constant 0 : index
    %236 = vector.load %arg17[%c0_89, %c0_90, %c0_91] : memref<2x1x64xf32, #tpu.memory_space<vmem>>, vector<1x1x64xf32>
    %237 = vector.shape_cast %236 : vector<1x1x64xf32> to vector<1x64xf32>
    %cst_92 = arith.constant dense<0.000000e+00> : vector<16xf32>
    %238 = vector.multi_reduction <add>, %233, %cst_92 [1] : vector<16x64xf32> to vector<16xf32>
    %239 = vector.shape_cast %238 : vector<16xf32> to vector<16x1xf32>
    %cst_93 = arith.constant 6.400000e+01 : f32
    %240 = vector.broadcast %cst_93 : f32 to vector<16x1xf32>
    %241 = arith.divf %239, %240 : vector<16x1xf32>
    %242 = vector.broadcast %241 : vector<16x1xf32> to vector<16x64xf32>
    %243 = arith.subf %233, %242 : vector<16x64xf32>
    %244 = vector.broadcast %241 : vector<16x1xf32> to vector<16x64xf32>
    %245 = arith.subf %233, %244 : vector<16x64xf32>
    %246 = arith.mulf %243, %245 : vector<16x64xf32>
    %cst_94 = arith.constant dense<0.000000e+00> : vector<16xf32>
    %247 = vector.multi_reduction <add>, %246, %cst_94 [1] : vector<16x64xf32> to vector<16xf32>
    %248 = vector.shape_cast %247 : vector<16xf32> to vector<16x1xf32>
    %cst_95 = arith.constant 6.400000e+01 : f32
    %249 = vector.broadcast %cst_95 : f32 to vector<16x1xf32>
    %250 = arith.divf %248, %249 : vector<16x1xf32>
    %251 = vector.broadcast %241 : vector<16x1xf32> to vector<16x64xf32>
    %252 = arith.subf %233, %251 : vector<16x64xf32>
    %cst_96 = arith.constant 9.99999996E-13 : f32
    %253 = vector.broadcast %cst_96 : f32 to vector<16x1xf32>
    %254 = arith.addf %250, %253 : vector<16x1xf32>
    %255 = math.rsqrt %254 : vector<16x1xf32>
    %256 = vector.broadcast %255 : vector<16x1xf32> to vector<16x64xf32>
    %257 = arith.mulf %252, %256 : vector<16x64xf32>
    %258 = vector.broadcast %235 : vector<1x64xf32> to vector<16x64xf32>
    %259 = arith.mulf %257, %258 : vector<16x64xf32>
    %260 = vector.broadcast %237 : vector<1x64xf32> to vector<16x64xf32>
    %261 = arith.addf %259, %260 : vector<16x64xf32>
    %262 = arith.truncf %261 : vector<16x64xf32> to vector<16x64xbf16>
    %c1 = arith.constant 1 : index
    %c0_97 = arith.constant 0 : index
    %c0_98 = arith.constant 0 : index
    %263 = vector.load %arg6[%c1, %c0_97, %c0_98] : memref<2x64x192xbf16, #tpu.memory_space<vmem>>, vector<1x64x192xbf16>
    %264 = vector.shape_cast %263 : vector<1x64x192xbf16> to vector<64x192xbf16>
    %cst_99 = arith.constant dense<0.000000e+00> : vector<16x192xf32>
    %265 = tpu.matmul %262, %264, %cst_99 {dimension_numbers = #tpu.dot_dimension_numbers<[1], [0], [0], [1], [0, 0, 1, 1], [], []>} : vector<16x64xbf16>, vector<64x192xbf16>, vector<16x192xf32> -> vector<16x192xf32>
    %c1_100 = arith.constant 1 : index
    %c0_101 = arith.constant 0 : index
    %c0_102 = arith.constant 0 : index
    %266 = vector.load %arg7[%c1_100, %c0_101, %c0_102] : memref<2x1x192xf32, #tpu.memory_space<vmem>>, vector<1x1x192xf32>
    %267 = vector.shape_cast %266 : vector<1x1x192xf32> to vector<1x192xf32>
    %268 = vector.broadcast %267 : vector<1x192xf32> to vector<16x192xf32>
    %269 = arith.addf %265, %268 : vector<16x192xf32>
    %270 = arith.truncf %269 : vector<16x192xf32> to vector<16x192xbf16>
    %c1_103 = arith.constant 1 : index
    %c0_104 = arith.constant 0 : index
    %c0_105 = arith.constant 0 : index
    %271 = vector.load %arg8[%c1_103, %c0_104, %c0_105] : memref<2x64x64xbf16, #tpu.memory_space<vmem>>, vector<1x64x64xbf16>
    %272 = vector.shape_cast %271 : vector<1x64x64xbf16> to vector<64x64xbf16>
    %cst_106 = arith.constant 0.000000e+00 : f32
    %273 = vector.broadcast %cst_106 : f32 to vector<16x64xf32>
    %274 = vector.extract_strided_slice %270 {offsets = [0, 0], sizes = [16, 16], strides = [1, 1]} : vector<16x192xbf16> to vector<16x16xbf16>
    %275 = vector.shape_cast %274 : vector<16x16xbf16> to vector<2x8x16xbf16>
    %276 = vector.extract_strided_slice %270 {offsets = [0, 64], sizes = [16, 16], strides = [1, 1]} : vector<16x192xbf16> to vector<16x16xbf16>
    %277 = vector.shape_cast %276 : vector<16x16xbf16> to vector<2x8x16xbf16>
    %278 = vector.extract_strided_slice %270 {offsets = [0, 128], sizes = [16, 16], strides = [1, 1]} : vector<16x192xbf16> to vector<16x16xbf16>
    %279 = vector.shape_cast %278 : vector<16x16xbf16> to vector<2x8x16xbf16>
    "tpu.trace_start"() <{level = 10 : i32, message = "bqd,bkd->bqk"}> : () -> ()
    %cst_107 = arith.constant dense<0.000000e+00> : vector<2x8x8xf32>
    %280 = tpu.matmul %275, %277, %cst_107 {dimension_numbers = #tpu.dot_dimension_numbers<[2], [2], [1], [1], [0, 0, 0, 1, 1, 1], [0], [0]>} : vector<2x8x16xbf16>, vector<2x8x16xbf16>, vector<2x8x8xf32> -> vector<2x8x8xf32>
    "tpu.trace_stop"() : () -> ()
    %cst_108 = arith.constant 2.500000e-01 : f32
    %281 = vector.broadcast %cst_108 : f32 to vector<2x8x8xf32>
    %282 = arith.mulf %280, %281 : vector<2x8x8xf32>
    %283 = vector.broadcast %46 : vector<2x1x8xf32> to vector<2x8x8xf32>
    %284 = arith.addf %282, %283 : vector<2x8x8xf32>
    %cst_109 = arith.constant dense<0xFF800000> : vector<2x8xf32>
    %285 = vector.multi_reduction <maximumf>, %284, %cst_109 [2] : vector<2x8x8xf32> to vector<2x8xf32>
    %286 = vector.shape_cast %285 : vector<2x8xf32> to vector<2x8x1xf32>
    %287 = vector.broadcast %286 : vector<2x8x1xf32> to vector<2x8x8xf32>
    %288 = arith.subf %284, %287 : vector<2x8x8xf32>
    %289 = math.exp %288 : vector<2x8x8xf32>
    %cst_110 = arith.constant dense<0.000000e+00> : vector<2x8xf32>
    %290 = vector.multi_reduction <add>, %289, %cst_110 [2] : vector<2x8x8xf32> to vector<2x8xf32>
    %291 = vector.shape_cast %290 : vector<2x8xf32> to vector<2x8x1xf32>
    %292 = tpu.reciprocal %291 {approx = true} : vector<2x8x1xf32> -> vector<2x8x1xf32>
    %293 = vector.broadcast %292 : vector<2x8x1xf32> to vector<2x8x8xf32>
    %294 = arith.mulf %289, %293 : vector<2x8x8xf32>
    %295 = arith.truncf %294 : vector<2x8x8xf32> to vector<2x8x8xbf16>
    "tpu.trace_start"() <{level = 10 : i32, message = "bqk,bkd->bqd"}> : () -> ()
    %cst_111 = arith.constant dense<0.000000e+00> : vector<2x8x16xf32>
    %296 = tpu.matmul %295, %279, %cst_111 {dimension_numbers = #tpu.dot_dimension_numbers<[2], [1], [1], [2], [0, 0, 0, 1, 1, 2], [0], [0]>} : vector<2x8x8xbf16>, vector<2x8x16xbf16>, vector<2x8x16xf32> -> vector<2x8x16xf32>
    "tpu.trace_stop"() : () -> ()
    %297 = vector.shape_cast %296 : vector<2x8x16xf32> to vector<16x16xf32>
    %298 = arith.truncf %297 : vector<16x16xf32> to vector<16x16xbf16>
    %299 = vector.extract_strided_slice %272 {offsets = [0, 0], sizes = [16, 64], strides = [1, 1]} : vector<64x64xbf16> to vector<16x64xbf16>
    %cst_112 = arith.constant dense<0.000000e+00> : vector<16x64xf32>
    %300 = tpu.matmul %298, %299, %cst_112 {dimension_numbers = #tpu.dot_dimension_numbers<[1], [0], [0], [1], [0, 0, 1, 1], [], []>} : vector<16x16xbf16>, vector<16x64xbf16>, vector<16x64xf32> -> vector<16x64xf32>
    %301 = arith.addf %273, %300 : vector<16x64xf32>
    %302 = vector.extract_strided_slice %270 {offsets = [0, 16], sizes = [16, 16], strides = [1, 1]} : vector<16x192xbf16> to vector<16x16xbf16>
    %303 = vector.shape_cast %302 : vector<16x16xbf16> to vector<2x8x16xbf16>
    %304 = vector.extract_strided_slice %270 {offsets = [0, 80], sizes = [16, 16], strides = [1, 1]} : vector<16x192xbf16> to vector<16x16xbf16>
    %305 = vector.shape_cast %304 : vector<16x16xbf16> to vector<2x8x16xbf16>
    %306 = vector.extract_strided_slice %270 {offsets = [0, 144], sizes = [16, 16], strides = [1, 1]} : vector<16x192xbf16> to vector<16x16xbf16>
    %307 = vector.shape_cast %306 : vector<16x16xbf16> to vector<2x8x16xbf16>
    "tpu.trace_start"() <{level = 10 : i32, message = "bqd,bkd->bqk"}> : () -> ()
    %cst_113 = arith.constant dense<0.000000e+00> : vector<2x8x8xf32>
    %308 = tpu.matmul %303, %305, %cst_113 {dimension_numbers = #tpu.dot_dimension_numbers<[2], [2], [1], [1], [0, 0, 0, 1, 1, 1], [0], [0]>} : vector<2x8x16xbf16>, vector<2x8x16xbf16>, vector<2x8x8xf32> -> vector<2x8x8xf32>
    "tpu.trace_stop"() : () -> ()
    %cst_114 = arith.constant 2.500000e-01 : f32
    %309 = vector.broadcast %cst_114 : f32 to vector<2x8x8xf32>
    %310 = arith.mulf %308, %309 : vector<2x8x8xf32>
    %311 = vector.broadcast %46 : vector<2x1x8xf32> to vector<2x8x8xf32>
    %312 = arith.addf %310, %311 : vector<2x8x8xf32>
    %cst_115 = arith.constant dense<0xFF800000> : vector<2x8xf32>
    %313 = vector.multi_reduction <maximumf>, %312, %cst_115 [2] : vector<2x8x8xf32> to vector<2x8xf32>
    %314 = vector.shape_cast %313 : vector<2x8xf32> to vector<2x8x1xf32>
    %315 = vector.broadcast %314 : vector<2x8x1xf32> to vector<2x8x8xf32>
    %316 = arith.subf %312, %315 : vector<2x8x8xf32>
    %317 = math.exp %316 : vector<2x8x8xf32>
    %cst_116 = arith.constant dense<0.000000e+00> : vector<2x8xf32>
    %318 = vector.multi_reduction <add>, %317, %cst_116 [2] : vector<2x8x8xf32> to vector<2x8xf32>
    %319 = vector.shape_cast %318 : vector<2x8xf32> to vector<2x8x1xf32>
    %320 = tpu.reciprocal %319 {approx = true} : vector<2x8x1xf32> -> vector<2x8x1xf32>
    %321 = vector.broadcast %320 : vector<2x8x1xf32> to vector<2x8x8xf32>
    %322 = arith.mulf %317, %321 : vector<2x8x8xf32>
    %323 = arith.truncf %322 : vector<2x8x8xf32> to vector<2x8x8xbf16>
    "tpu.trace_start"() <{level = 10 : i32, message = "bqk,bkd->bqd"}> : () -> ()
    %cst_117 = arith.constant dense<0.000000e+00> : vector<2x8x16xf32>
    %324 = tpu.matmul %323, %307, %cst_117 {dimension_numbers = #tpu.dot_dimension_numbers<[2], [1], [1], [2], [0, 0, 0, 1, 1, 2], [0], [0]>} : vector<2x8x8xbf16>, vector<2x8x16xbf16>, vector<2x8x16xf32> -> vector<2x8x16xf32>
    "tpu.trace_stop"() : () -> ()
    %325 = vector.shape_cast %324 : vector<2x8x16xf32> to vector<16x16xf32>
    %326 = arith.truncf %325 : vector<16x16xf32> to vector<16x16xbf16>
    %327 = vector.extract_strided_slice %272 {offsets = [16, 0], sizes = [16, 64], strides = [1, 1]} : vector<64x64xbf16> to vector<16x64xbf16>
    %cst_118 = arith.constant dense<0.000000e+00> : vector<16x64xf32>
    %328 = tpu.matmul %326, %327, %cst_118 {dimension_numbers = #tpu.dot_dimension_numbers<[1], [0], [0], [1], [0, 0, 1, 1], [], []>} : vector<16x16xbf16>, vector<16x64xbf16>, vector<16x64xf32> -> vector<16x64xf32>
    %329 = arith.addf %301, %328 : vector<16x64xf32>
    %330 = vector.extract_strided_slice %270 {offsets = [0, 32], sizes = [16, 16], strides = [1, 1]} : vector<16x192xbf16> to vector<16x16xbf16>
    %331 = vector.shape_cast %330 : vector<16x16xbf16> to vector<2x8x16xbf16>
    %332 = vector.extract_strided_slice %270 {offsets = [0, 96], sizes = [16, 16], strides = [1, 1]} : vector<16x192xbf16> to vector<16x16xbf16>
    %333 = vector.shape_cast %332 : vector<16x16xbf16> to vector<2x8x16xbf16>
    %334 = vector.extract_strided_slice %270 {offsets = [0, 160], sizes = [16, 16], strides = [1, 1]} : vector<16x192xbf16> to vector<16x16xbf16>
    %335 = vector.shape_cast %334 : vector<16x16xbf16> to vector<2x8x16xbf16>
    "tpu.trace_start"() <{level = 10 : i32, message = "bqd,bkd->bqk"}> : () -> ()
    %cst_119 = arith.constant dense<0.000000e+00> : vector<2x8x8xf32>
    %336 = tpu.matmul %331, %333, %cst_119 {dimension_numbers = #tpu.dot_dimension_numbers<[2], [2], [1], [1], [0, 0, 0, 1, 1, 1], [0], [0]>} : vector<2x8x16xbf16>, vector<2x8x16xbf16>, vector<2x8x8xf32> -> vector<2x8x8xf32>
    "tpu.trace_stop"() : () -> ()
    %cst_120 = arith.constant 2.500000e-01 : f32
    %337 = vector.broadcast %cst_120 : f32 to vector<2x8x8xf32>
    %338 = arith.mulf %336, %337 : vector<2x8x8xf32>
    %339 = vector.broadcast %46 : vector<2x1x8xf32> to vector<2x8x8xf32>
    %340 = arith.addf %338, %339 : vector<2x8x8xf32>
    %cst_121 = arith.constant dense<0xFF800000> : vector<2x8xf32>
    %341 = vector.multi_reduction <maximumf>, %340, %cst_121 [2] : vector<2x8x8xf32> to vector<2x8xf32>
    %342 = vector.shape_cast %341 : vector<2x8xf32> to vector<2x8x1xf32>
    %343 = vector.broadcast %342 : vector<2x8x1xf32> to vector<2x8x8xf32>
    %344 = arith.subf %340, %343 : vector<2x8x8xf32>
    %345 = math.exp %344 : vector<2x8x8xf32>
    %cst_122 = arith.constant dense<0.000000e+00> : vector<2x8xf32>
    %346 = vector.multi_reduction <add>, %345, %cst_122 [2] : vector<2x8x8xf32> to vector<2x8xf32>
    %347 = vector.shape_cast %346 : vector<2x8xf32> to vector<2x8x1xf32>
    %348 = tpu.reciprocal %347 {approx = true} : vector<2x8x1xf32> -> vector<2x8x1xf32>
    %349 = vector.broadcast %348 : vector<2x8x1xf32> to vector<2x8x8xf32>
    %350 = arith.mulf %345, %349 : vector<2x8x8xf32>
    %351 = arith.truncf %350 : vector<2x8x8xf32> to vector<2x8x8xbf16>
    "tpu.trace_start"() <{level = 10 : i32, message = "bqk,bkd->bqd"}> : () -> ()
    %cst_123 = arith.constant dense<0.000000e+00> : vector<2x8x16xf32>
    %352 = tpu.matmul %351, %335, %cst_123 {dimension_numbers = #tpu.dot_dimension_numbers<[2], [1], [1], [2], [0, 0, 0, 1, 1, 2], [0], [0]>} : vector<2x8x8xbf16>, vector<2x8x16xbf16>, vector<2x8x16xf32> -> vector<2x8x16xf32>
    "tpu.trace_stop"() : () -> ()
    %353 = vector.shape_cast %352 : vector<2x8x16xf32> to vector<16x16xf32>
    %354 = arith.truncf %353 : vector<16x16xf32> to vector<16x16xbf16>
    %355 = vector.extract_strided_slice %272 {offsets = [32, 0], sizes = [16, 64], strides = [1, 1]} : vector<64x64xbf16> to vector<16x64xbf16>
    %cst_124 = arith.constant dense<0.000000e+00> : vector<16x64xf32>
    %356 = tpu.matmul %354, %355, %cst_124 {dimension_numbers = #tpu.dot_dimension_numbers<[1], [0], [0], [1], [0, 0, 1, 1], [], []>} : vector<16x16xbf16>, vector<16x64xbf16>, vector<16x64xf32> -> vector<16x64xf32>
    %357 = arith.addf %329, %356 : vector<16x64xf32>
    %358 = vector.extract_strided_slice %270 {offsets = [0, 48], sizes = [16, 16], strides = [1, 1]} : vector<16x192xbf16> to vector<16x16xbf16>
    %359 = vector.shape_cast %358 : vector<16x16xbf16> to vector<2x8x16xbf16>
    %360 = vector.extract_strided_slice %270 {offsets = [0, 112], sizes = [16, 16], strides = [1, 1]} : vector<16x192xbf16> to vector<16x16xbf16>
    %361 = vector.shape_cast %360 : vector<16x16xbf16> to vector<2x8x16xbf16>
    %362 = vector.extract_strided_slice %270 {offsets = [0, 176], sizes = [16, 16], strides = [1, 1]} : vector<16x192xbf16> to vector<16x16xbf16>
    %363 = vector.shape_cast %362 : vector<16x16xbf16> to vector<2x8x16xbf16>
    "tpu.trace_start"() <{level = 10 : i32, message = "bqd,bkd->bqk"}> : () -> ()
    %cst_125 = arith.constant dense<0.000000e+00> : vector<2x8x8xf32>
    %364 = tpu.matmul %359, %361, %cst_125 {dimension_numbers = #tpu.dot_dimension_numbers<[2], [2], [1], [1], [0, 0, 0, 1, 1, 1], [0], [0]>} : vector<2x8x16xbf16>, vector<2x8x16xbf16>, vector<2x8x8xf32> -> vector<2x8x8xf32>
    "tpu.trace_stop"() : () -> ()
    %cst_126 = arith.constant 2.500000e-01 : f32
    %365 = vector.broadcast %cst_126 : f32 to vector<2x8x8xf32>
    %366 = arith.mulf %364, %365 : vector<2x8x8xf32>
    %367 = vector.broadcast %46 : vector<2x1x8xf32> to vector<2x8x8xf32>
    %368 = arith.addf %366, %367 : vector<2x8x8xf32>
    %cst_127 = arith.constant dense<0xFF800000> : vector<2x8xf32>
    %369 = vector.multi_reduction <maximumf>, %368, %cst_127 [2] : vector<2x8x8xf32> to vector<2x8xf32>
    %370 = vector.shape_cast %369 : vector<2x8xf32> to vector<2x8x1xf32>
    %371 = vector.broadcast %370 : vector<2x8x1xf32> to vector<2x8x8xf32>
    %372 = arith.subf %368, %371 : vector<2x8x8xf32>
    %373 = math.exp %372 : vector<2x8x8xf32>
    %cst_128 = arith.constant dense<0.000000e+00> : vector<2x8xf32>
    %374 = vector.multi_reduction <add>, %373, %cst_128 [2] : vector<2x8x8xf32> to vector<2x8xf32>
    %375 = vector.shape_cast %374 : vector<2x8xf32> to vector<2x8x1xf32>
    %376 = tpu.reciprocal %375 {approx = true} : vector<2x8x1xf32> -> vector<2x8x1xf32>
    %377 = vector.broadcast %376 : vector<2x8x1xf32> to vector<2x8x8xf32>
    %378 = arith.mulf %373, %377 : vector<2x8x8xf32>
    %379 = arith.truncf %378 : vector<2x8x8xf32> to vector<2x8x8xbf16>
    "tpu.trace_start"() <{level = 10 : i32, message = "bqk,bkd->bqd"}> : () -> ()
    %cst_129 = arith.constant dense<0.000000e+00> : vector<2x8x16xf32>
    %380 = tpu.matmul %379, %363, %cst_129 {dimension_numbers = #tpu.dot_dimension_numbers<[2], [1], [1], [2], [0, 0, 0, 1, 1, 2], [0], [0]>} : vector<2x8x8xbf16>, vector<2x8x16xbf16>, vector<2x8x16xf32> -> vector<2x8x16xf32>
    "tpu.trace_stop"() : () -> ()
    %381 = vector.shape_cast %380 : vector<2x8x16xf32> to vector<16x16xf32>
    %382 = arith.truncf %381 : vector<16x16xf32> to vector<16x16xbf16>
    %383 = vector.extract_strided_slice %272 {offsets = [48, 0], sizes = [16, 64], strides = [1, 1]} : vector<64x64xbf16> to vector<16x64xbf16>
    %cst_130 = arith.constant dense<0.000000e+00> : vector<16x64xf32>
    %384 = tpu.matmul %382, %383, %cst_130 {dimension_numbers = #tpu.dot_dimension_numbers<[1], [0], [0], [1], [0, 0, 1, 1], [], []>} : vector<16x16xbf16>, vector<16x64xbf16>, vector<16x64xf32> -> vector<16x64xf32>
    %385 = arith.addf %357, %384 : vector<16x64xf32>
    %c1_131 = arith.constant 1 : index
    %c0_132 = arith.constant 0 : index
    %c0_133 = arith.constant 0 : index
    %386 = vector.load %arg9[%c1_131, %c0_132, %c0_133] : memref<2x1x64xf32, #tpu.memory_space<vmem>>, vector<1x1x64xf32>
    %387 = vector.shape_cast %386 : vector<1x1x64xf32> to vector<1x64xf32>
    %388 = vector.broadcast %387 : vector<1x64xf32> to vector<16x64xf32>
    %389 = arith.addf %385, %388 : vector<16x64xf32>
    %390 = arith.addf %261, %389 : vector<16x64xf32>
    %c1_134 = arith.constant 1 : index
    %c0_135 = arith.constant 0 : index
    %c0_136 = arith.constant 0 : index
    %391 = vector.load %arg10[%c1_134, %c0_135, %c0_136] : memref<2x1x64xf32, #tpu.memory_space<vmem>>, vector<1x1x64xf32>
    %392 = vector.shape_cast %391 : vector<1x1x64xf32> to vector<1x64xf32>
    %c1_137 = arith.constant 1 : index
    %c0_138 = arith.constant 0 : index
    %c0_139 = arith.constant 0 : index
    %393 = vector.load %arg11[%c1_137, %c0_138, %c0_139] : memref<2x1x64xf32, #tpu.memory_space<vmem>>, vector<1x1x64xf32>
    %394 = vector.shape_cast %393 : vector<1x1x64xf32> to vector<1x64xf32>
    %cst_140 = arith.constant dense<0.000000e+00> : vector<16xf32>
    %395 = vector.multi_reduction <add>, %390, %cst_140 [1] : vector<16x64xf32> to vector<16xf32>
    %396 = vector.shape_cast %395 : vector<16xf32> to vector<16x1xf32>
    %cst_141 = arith.constant 6.400000e+01 : f32
    %397 = vector.broadcast %cst_141 : f32 to vector<16x1xf32>
    %398 = arith.divf %396, %397 : vector<16x1xf32>
    %399 = vector.broadcast %398 : vector<16x1xf32> to vector<16x64xf32>
    %400 = arith.subf %390, %399 : vector<16x64xf32>
    %401 = vector.broadcast %398 : vector<16x1xf32> to vector<16x64xf32>
    %402 = arith.subf %390, %401 : vector<16x64xf32>
    %403 = arith.mulf %400, %402 : vector<16x64xf32>
    %cst_142 = arith.constant dense<0.000000e+00> : vector<16xf32>
    %404 = vector.multi_reduction <add>, %403, %cst_142 [1] : vector<16x64xf32> to vector<16xf32>
    %405 = vector.shape_cast %404 : vector<16xf32> to vector<16x1xf32>
    %cst_143 = arith.constant 6.400000e+01 : f32
    %406 = vector.broadcast %cst_143 : f32 to vector<16x1xf32>
    %407 = arith.divf %405, %406 : vector<16x1xf32>
    %408 = vector.broadcast %398 : vector<16x1xf32> to vector<16x64xf32>
    %409 = arith.subf %390, %408 : vector<16x64xf32>
    %cst_144 = arith.constant 9.99999996E-13 : f32
    %410 = vector.broadcast %cst_144 : f32 to vector<16x1xf32>
    %411 = arith.addf %407, %410 : vector<16x1xf32>
    %412 = math.rsqrt %411 : vector<16x1xf32>
    %413 = vector.broadcast %412 : vector<16x1xf32> to vector<16x64xf32>
    %414 = arith.mulf %409, %413 : vector<16x64xf32>
    %415 = vector.broadcast %392 : vector<1x64xf32> to vector<16x64xf32>
    %416 = arith.mulf %414, %415 : vector<16x64xf32>
    %417 = vector.broadcast %394 : vector<1x64xf32> to vector<16x64xf32>
    %418 = arith.addf %416, %417 : vector<16x64xf32>
    %419 = arith.truncf %418 : vector<16x64xf32> to vector<16x64xbf16>
    %c1_145 = arith.constant 1 : index
    %c0_146 = arith.constant 0 : index
    %c0_147 = arith.constant 0 : index
    %420 = vector.load %arg12[%c1_145, %c0_146, %c0_147] : memref<2x64x128xbf16, #tpu.memory_space<vmem>>, vector<1x64x128xbf16>
    %421 = vector.shape_cast %420 : vector<1x64x128xbf16> to vector<64x128xbf16>
    %cst_148 = arith.constant dense<0.000000e+00> : vector<16x128xf32>
    %422 = tpu.matmul %419, %421, %cst_148 {dimension_numbers = #tpu.dot_dimension_numbers<[1], [0], [0], [1], [0, 0, 1, 1], [], []>} : vector<16x64xbf16>, vector<64x128xbf16>, vector<16x128xf32> -> vector<16x128xf32>
    %c1_149 = arith.constant 1 : index
    %c0_150 = arith.constant 0 : index
    %c0_151 = arith.constant 0 : index
    %423 = vector.load %arg13[%c1_149, %c0_150, %c0_151] : memref<2x1x128xf32, #tpu.memory_space<vmem>>, vector<1x1x128xf32>
    %424 = vector.shape_cast %423 : vector<1x1x128xf32> to vector<1x128xf32>
    %425 = vector.broadcast %424 : vector<1x128xf32> to vector<16x128xf32>
    %426 = arith.addf %422, %425 : vector<16x128xf32>
    %427 = arith.mulf %426, %426 : vector<16x128xf32>
    %428 = arith.mulf %426, %427 : vector<16x128xf32>
    %cst_152 = arith.constant 4.471500e-02 : f32
    %429 = vector.broadcast %cst_152 : f32 to vector<16x128xf32>
    %430 = arith.mulf %429, %428 : vector<16x128xf32>
    %431 = arith.addf %426, %430 : vector<16x128xf32>
    %cst_153 = arith.constant 0.797884583 : f32
    %432 = vector.broadcast %cst_153 : f32 to vector<16x128xf32>
    %433 = arith.mulf %432, %431 : vector<16x128xf32>
    %434 = math.tanh %433 : vector<16x128xf32>
    %cst_154 = arith.constant 1.000000e+00 : f32
    %435 = vector.broadcast %cst_154 : f32 to vector<16x128xf32>
    %436 = arith.addf %435, %434 : vector<16x128xf32>
    %cst_155 = arith.constant 5.000000e-01 : f32
    %437 = vector.broadcast %cst_155 : f32 to vector<16x128xf32>
    %438 = arith.mulf %437, %436 : vector<16x128xf32>
    %439 = arith.mulf %426, %438 : vector<16x128xf32>
    %440 = arith.truncf %439 : vector<16x128xf32> to vector<16x128xbf16>
    %c1_156 = arith.constant 1 : index
    %c0_157 = arith.constant 0 : index
    %c0_158 = arith.constant 0 : index
    %441 = vector.load %arg14[%c1_156, %c0_157, %c0_158] : memref<2x128x64xbf16, #tpu.memory_space<vmem>>, vector<1x128x64xbf16>
    %442 = vector.shape_cast %441 : vector<1x128x64xbf16> to vector<128x64xbf16>
    %cst_159 = arith.constant dense<0.000000e+00> : vector<16x64xf32>
    %443 = tpu.matmul %440, %442, %cst_159 {dimension_numbers = #tpu.dot_dimension_numbers<[1], [0], [0], [1], [0, 0, 1, 1], [], []>} : vector<16x128xbf16>, vector<128x64xbf16>, vector<16x64xf32> -> vector<16x64xf32>
    %c1_160 = arith.constant 1 : index
    %c0_161 = arith.constant 0 : index
    %c0_162 = arith.constant 0 : index
    %444 = vector.load %arg15[%c1_160, %c0_161, %c0_162] : memref<2x1x64xf32, #tpu.memory_space<vmem>>, vector<1x1x64xf32>
    %445 = vector.shape_cast %444 : vector<1x1x64xf32> to vector<1x64xf32>
    %446 = vector.broadcast %445 : vector<1x64xf32> to vector<16x64xf32>
    %447 = arith.addf %443, %446 : vector<16x64xf32>
    %448 = arith.addf %418, %447 : vector<16x64xf32>
    %c1_163 = arith.constant 1 : index
    %c0_164 = arith.constant 0 : index
    %c0_165 = arith.constant 0 : index
    %449 = vector.load %arg16[%c1_163, %c0_164, %c0_165] : memref<2x1x64xf32, #tpu.memory_space<vmem>>, vector<1x1x64xf32>
    %450 = vector.shape_cast %449 : vector<1x1x64xf32> to vector<1x64xf32>
    %c1_166 = arith.constant 1 : index
    %c0_167 = arith.constant 0 : index
    %c0_168 = arith.constant 0 : index
    %451 = vector.load %arg17[%c1_166, %c0_167, %c0_168] : memref<2x1x64xf32, #tpu.memory_space<vmem>>, vector<1x1x64xf32>
    %452 = vector.shape_cast %451 : vector<1x1x64xf32> to vector<1x64xf32>
    %cst_169 = arith.constant dense<0.000000e+00> : vector<16xf32>
    %453 = vector.multi_reduction <add>, %448, %cst_169 [1] : vector<16x64xf32> to vector<16xf32>
    %454 = vector.shape_cast %453 : vector<16xf32> to vector<16x1xf32>
    %cst_170 = arith.constant 6.400000e+01 : f32
    %455 = vector.broadcast %cst_170 : f32 to vector<16x1xf32>
    %456 = arith.divf %454, %455 : vector<16x1xf32>
    %457 = vector.broadcast %456 : vector<16x1xf32> to vector<16x64xf32>
    %458 = arith.subf %448, %457 : vector<16x64xf32>
    %459 = vector.broadcast %456 : vector<16x1xf32> to vector<16x64xf32>
    %460 = arith.subf %448, %459 : vector<16x64xf32>
    %461 = arith.mulf %458, %460 : vector<16x64xf32>
    %cst_171 = arith.constant dense<0.000000e+00> : vector<16xf32>
    %462 = vector.multi_reduction <add>, %461, %cst_171 [1] : vector<16x64xf32> to vector<16xf32>
    %463 = vector.shape_cast %462 : vector<16xf32> to vector<16x1xf32>
    %cst_172 = arith.constant 6.400000e+01 : f32
    %464 = vector.broadcast %cst_172 : f32 to vector<16x1xf32>
    %465 = arith.divf %463, %464 : vector<16x1xf32>
    %466 = vector.broadcast %456 : vector<16x1xf32> to vector<16x64xf32>
    %467 = arith.subf %448, %466 : vector<16x64xf32>
    %cst_173 = arith.constant 9.99999996E-13 : f32
    %468 = vector.broadcast %cst_173 : f32 to vector<16x1xf32>
    %469 = arith.addf %465, %468 : vector<16x1xf32>
    %470 = math.rsqrt %469 : vector<16x1xf32>
    %471 = vector.broadcast %470 : vector<16x1xf32> to vector<16x64xf32>
    %472 = arith.mulf %467, %471 : vector<16x64xf32>
    %473 = vector.broadcast %450 : vector<1x64xf32> to vector<16x64xf32>
    %474 = arith.mulf %472, %473 : vector<16x64xf32>
    %475 = vector.broadcast %452 : vector<1x64xf32> to vector<16x64xf32>
    %476 = arith.addf %474, %475 : vector<16x64xf32>
    %477 = vector.shape_cast %476 : vector<16x64xf32> to vector<2x8x64xf32>
    %478 = vector.extract_strided_slice %477 {offsets = [0, 0, 0], sizes = [2, 1, 64], strides = [1, 1, 1]} : vector<2x8x64xf32> to vector<2x1x64xf32>
    %479 = vector.shape_cast %478 : vector<2x1x64xf32> to vector<2x64xf32>
    %480 = arith.truncf %479 : vector<2x64xf32> to vector<2x64xbf16>
    %c0_174 = arith.constant 0 : index
    %c0_175 = arith.constant 0 : index
    %481 = vector.load %arg18[%c0_174, %c0_175] : memref<64x128xbf16, #tpu.memory_space<vmem>>, vector<64x128xbf16>
    %cst_176 = arith.constant dense<0.000000e+00> : vector<2x128xf32>
    %482 = tpu.matmul %480, %481, %cst_176 {dimension_numbers = #tpu.dot_dimension_numbers<[1], [0], [0], [1], [0, 0, 1, 1], [], []>} : vector<2x64xbf16>, vector<64x128xbf16>, vector<2x128xf32> -> vector<2x128xf32>
    %c0_177 = arith.constant 0 : index
    %c0_178 = arith.constant 0 : index
    %483 = vector.load %arg19[%c0_177, %c0_178] : memref<1x128xf32, #tpu.memory_space<vmem>>, vector<1x128xf32>
    %484 = vector.broadcast %483 : vector<1x128xf32> to vector<2x128xf32>
    %485 = arith.addf %482, %484 : vector<2x128xf32>
    %c0_179 = arith.constant 0 : index
    %c0_180 = arith.constant 0 : index
    %486 = vector.load %arg20[%c0_179, %c0_180] : memref<2x128xf32, #tpu.memory_space<vmem>>, vector<2x128xf32>
    tpu.vector_store %arg20[%c0_179, %c0_180], %485 {strides = array<i32>} : memref<2x128xf32, #tpu.memory_space<vmem>>, vector<2x128xf32>,
    return
  }
}

</mosaic_0001>

<llo_original>
// kernel: sentiment_classifier_forward.1
$region0: #{sentiment_classifier_forward.1}
  #allocation0 [shape = 'u32[]', space=smem, size = 0x4, offset = 0x4, fixed_abs, tag = 'smem constant byte address 0x4 - core index']
  #allocation1 [shape = 'u32[72,128]{1,0:T(1,128)}', space=vmem, size = 0x9000, scoped, tag = 'internal scratch']
  %s0 = inlined_call_operand.vmem [shape: s32[16,1], index: 0, kind: input, shape index: {}]
  %s1 = inlined_call_operand.vmem [shape: f32[2,1,8], index: 1, kind: input, shape index: {}]
  %s2 = inlined_call_operand.vmem [shape: f32[64,64], index: 2, kind: input, shape index: {}]
  %s3 = inlined_call_operand.vmem [shape: f32[8,64], index: 3, kind: input, shape index: {}]
  %s4 = inlined_call_operand.vmem [shape: f32[1,64], index: 4, kind: input, shape index: {}]
  %s5 = inlined_call_operand.vmem [shape: f32[1,64], index: 5, kind: input, shape index: {}]
  %s6 = inlined_call_operand.vmem [shape: bf16[2,64,192], index: 6, kind: input, shape index: {}]
  %s7 = inlined_call_operand.vmem [shape: f32[2,1,192], index: 7, kind: input, shape index: {}]
  %s8 = inlined_call_operand.hbm [shape: bf16[2,64,64], index: 8, kind: input, shape index: {}]
  %s9 = inlined_call_operand.vmem [shape: f32[2,1,64], index: 9, kind: input, shape index: {}]
  %s10 = inlined_call_operand.vmem [shape: f32[2,1,64], index: 10, kind: input, shape index: {}]
  %s11 = inlined_call_operand.vmem [shape: f32[2,1,64], index: 11, kind: input, shape index: {}]
  %s12 = inlined_call_operand.hbm [shape: bf16[2,64,128], index: 12, kind: input, shape index: {}]
  %s13 = inlined_call_operand.vmem [shape: f32[2,1,128], index: 13, kind: input, shape index: {}]
  %s14 = inlined_call_operand.vmem [shape: bf16[2,128,64], index: 14, kind: input, shape index: {}]
  %s15 = inlined_call_operand.vmem [shape: f32[2,1,64], index: 15, kind: input, shape index: {}]
  %s16 = inlined_call_operand.vmem [shape: f32[2,1,64], index: 16, kind: input, shape index: {}]
  %s17 = inlined_call_operand.vmem [shape: f32[2,1,64], index: 17, kind: input, shape index: {}]
  %s18 = inlined_call_operand.hbm [shape: bf16[64,128], index: 18, kind: input, shape index: {}]
  %s19 = inlined_call_operand.vmem [shape: f32[1,128], index: 19, kind: input, shape index: {}]
  %s20 = inlined_call_operand.hbm [shape: f32[2,128], index: 20, kind: output, shape index: {}]
  %s21 = sld [smem:[#allocation0]]
  $region102: #{sentiment_classifier_forward.1} parent=0
    _
  %s23 = ssub.s32 1, %s21
  %s24 = scalar_select 0, %s23, %s21
  $region1: #{sentiment_classifier_forward.1} parent=0
    #allocation2 [shape = 'u8[32768]{0}', space=vmem, size = 0x8000, scoped, tag = 'input window, operand 8, single buffered']
    #allocation3 [shape = 's32[1]{0}', space=sflag, size = 0x4, scoped, tag = 'scoped memory for sentiment_classifier_forward.1']
    #allocation4 [shape = 's32[1]{0}', space=sflag, size = 0x4, scoped, tag = 'scoped memory for sentiment_classifier_forward.1']
    #allocation5 [shape = 'u8[32768]{0}', space=vmem, size = 0x8000, scoped, tag = 'input window, operand 12, single buffered']
    #allocation6 [shape = 's32[1]{0}', space=sflag, size = 0x4, scoped, tag = 'scoped memory for sentiment_classifier_forward.1']
    #allocation7 [shape = 'u8[16384]{0}', space=vmem, size = 0x4000, scoped, tag = 'input window, operand 18, single buffered']
    #allocation8 [shape = 'u8[1024]{0}', space=vmem, size = 0x400, scoped, tag = 'output window, operand 0, single buffered']
    %25 = vsyncpa [#allocation3], 0
    %26 = vsyncpa [#allocation6], 0
    %27 = vsyncpa [#allocation4], 0
    // Predicated region
    $region2: #{sentiment_classifier_forward.1} parent=1 // pred_check
      _
    $region3: #{sentiment_classifier_forward.1} parent=1 // pred_check_branch
      %29 = sbr.rel (0) target = $region5
    $region4: #{sentiment_classifier_forward.1} parent=1 // pred_region
      _
    $region5: #{sentiment_classifier_forward.1} parent=1 // pred_fallthru
      _
    // Predicated region
    $region6: #{sentiment_classifier_forward.1} parent=1 // pred_check
      _
    $region7: #{sentiment_classifier_forward.1} parent=1 // pred_check_branch
      %31 = sbr.rel (0) target = $region9
    $region8: #{sentiment_classifier_forward.1} parent=1 // pred_region
      _
    $region9: #{sentiment_classifier_forward.1} parent=1 // pred_fallthru
      _
    // Predicated region
    $region10: #{sentiment_classifier_forward.1} parent=1 // pred_check
      _
    $region11: #{sentiment_classifier_forward.1} parent=1 // pred_check_branch
      %33 = sbr.rel (0) target = $region13
    $region12: #{sentiment_classifier_forward.1} parent=1 // pred_region
      _
    $region13: #{sentiment_classifier_forward.1} parent=1 // pred_fallthru
      _
    // Predicated region
    $region14: #{sentiment_classifier_forward.1} parent=1 // pred_check
      _
    $region15: #{sentiment_classifier_forward.1} parent=1 // pred_check_branch
      %35 = sbr.rel (0) target = $region17
    $region16: #{sentiment_classifier_forward.1} parent=1 // pred_region
      _
    $region17: #{sentiment_classifier_forward.1} parent=1 // pred_fallthru
      _
    // Predicated region
    $region18: #{sentiment_classifier_forward.1} parent=1 // pred_check
      _
    $region19: #{sentiment_classifier_forward.1} parent=1 // pred_check_branch
      %37 = sbr.rel (0) target = $region21
    $region20: #{sentiment_classifier_forward.1} parent=1 // pred_region
      _
    $region21: #{sentiment_classifier_forward.1} parent=1 // pred_fallthru
      _
    // Predicated region
    $region22: #{sentiment_classifier_forward.1} parent=1 // pred_check
      _
    $region23: #{sentiment_classifier_forward.1} parent=1 // pred_check_branch
      %39 = sbr.rel (0) target = $region25
    $region24: #{sentiment_classifier_forward.1} parent=1 // pred_region
      _
    $region25: #{sentiment_classifier_forward.1} parent=1 // pred_fallthru
      _
    // Predicated region
    $region26: #{sentiment_classifier_forward.1} parent=1 // pred_check
      _
    $region27: #{sentiment_classifier_forward.1} parent=1 // pred_check_branch
      %41 = sbr.rel (0) target = $region29
    $region28: #{sentiment_classifier_forward.1} parent=1 // pred_region
      _
    $region29: #{sentiment_classifier_forward.1} parent=1 // pred_fallthru
      _
    // Predicated region
    $region30: #{sentiment_classifier_forward.1} parent=1 // pred_check
      _
    $region31: #{sentiment_classifier_forward.1} parent=1 // pred_check_branch
      %43 = sbr.rel (0) target = $region33
    $region32: #{sentiment_classifier_forward.1} parent=1 // pred_region
      _
    $region33: #{sentiment_classifier_forward.1} parent=1 // pred_fallthru
      _
    // Predicated region
    $region34: #{sentiment_classifier_forward.1} parent=1 // pred_check
      _
    $region35: #{sentiment_classifier_forward.1} parent=1 // pred_check_branch
      %45 = sbr.rel (0) target = $region37
    $region36: #{sentiment_classifier_forward.1} parent=1 // pred_region
      %47 = vsyncadd [#allocation3], 0
      %s48 = sshll.u32 %s8, 4
      %s49 = int_to_ptr.hbm [resolvable:$true] %s48
      %s50 = sshll.u32 [#allocation2], 4
      %s51 = int_to_ptr.vmem [resolvable:$true] %s50
      %56 = dma.hbm_to_vmem [thread:$0]  %s49, 1024, %s51, [#allocation3], 64, 64, 4
    $region37: #{sentiment_classifier_forward.1} parent=1 // pred_fallthru
      _
    // Predicated region
    $region38: #{sentiment_classifier_forward.1} parent=1 // pred_check
      _
    $region39: #{sentiment_classifier_forward.1} parent=1 // pred_check_branch
      %58 = sbr.rel (0) target = $region41
    $region40: #{sentiment_classifier_forward.1} parent=1 // pred_region
      _
    $region41: #{sentiment_classifier_forward.1} parent=1 // pred_fallthru
      _
    // Predicated region
    $region42: #{sentiment_classifier_forward.1} parent=1 // pred_check
      _
    $region43: #{sentiment_classifier_forward.1} parent=1 // pred_check_branch
      %60 = sbr.rel (0) target = $region45
    $region44: #{sentiment_classifier_forward.1} parent=1 // pred_region
      _
    $region45: #{sentiment_classifier_forward.1} parent=1 // pred_fallthru
      _
    // Predicated region
    $region46: #{sentiment_classifier_forward.1} parent=1 // pred_check
      _
    $region47: #{sentiment_classifier_forward.1} parent=1 // pred_check_branch
      %62 = sbr.rel (0) target = $region49
    $region48: #{sentiment_classifier_forward.1} parent=1 // pred_region
      _
    $region49: #{sentiment_classifier_forward.1} parent=1 // pred_fallthru
      _
    // Predicated region
    $region50: #{sentiment_classifier_forward.1} parent=1 // pred_check
      _
    $region51: #{sentiment_classifier_forward.1} parent=1 // pred_check_branch
      %64 = sbr.rel (0) target = $region53
    $region52: #{sentiment_classifier_forward.1} parent=1 // pred_region
      %66 = vsyncadd [#allocation6], 0
      %s67 = sshll.u32 %s12, 4
      %s68 = int_to_ptr.hbm [resolvable:$true] %s67
      %s69 = sshll.u32 [#allocation5], 4
      %s70 = int_to_ptr.vmem [resolvable:$true] %s69
      %75 = dma.hbm_to_vmem [thread:$0]  %s68, 1024, %s70, [#allocation6], 64, 64, 4
    $region53: #{sentiment_classifier_forward.1} parent=1 // pred_fallthru
      _
    // Predicated region
    $region54: #{sentiment_classifier_forward.1} parent=1 // pred_check
      _
    $region55: #{sentiment_classifier_forward.1} parent=1 // pred_check_branch
      %77 = sbr.rel (0) target = $region57
    $region56: #{sentiment_classifier_forward.1} parent=1 // pred_region
      _
    $region57: #{sentiment_classifier_forward.1} parent=1 // pred_fallthru
      _
    // Predicated region
    $region58: #{sentiment_classifier_forward.1} parent=1 // pred_check
      _
    $region59: #{sentiment_classifier_forward.1} parent=1 // pred_check_branch
      %79 = sbr.rel (0) target = $region61
    $region60: #{sentiment_classifier_forward.1} parent=1 // pred_region
      _
    $region61: #{sentiment_classifier_forward.1} parent=1 // pred_fallthru
      _
    // Predicated region
    $region62: #{sentiment_classifier_forward.1} parent=1 // pred_check
      _
    $region63: #{sentiment_classifier_forward.1} parent=1 // pred_check_branch
      %81 = sbr.rel (0) target = $region65
    $region64: #{sentiment_classifier_forward.1} parent=1 // pred_region
      _
    $region65: #{sentiment_classifier_forward.1} parent=1 // pred_fallthru
      _
    // Predicated region
    $region66: #{sentiment_classifier_forward.1} parent=1 // pred_check
      _
    $region67: #{sentiment_classifier_forward.1} parent=1 // pred_check_branch
      %83 = sbr.rel (0) target = $region69
    $region68: #{sentiment_classifier_forward.1} parent=1 // pred_region
      _
    $region69: #{sentiment_classifier_forward.1} parent=1 // pred_fallthru
      _
    // Predicated region
    $region70: #{sentiment_classifier_forward.1} parent=1 // pred_check
      _
    $region71: #{sentiment_classifier_forward.1} parent=1 // pred_check_branch
      %85 = sbr.rel (0) target = $region73
    $region72: #{sentiment_classifier_forward.1} parent=1 // pred_region
      _
    $region73: #{sentiment_classifier_forward.1} parent=1 // pred_fallthru
      _
    // Predicated region
    $region74: #{sentiment_classifier_forward.1} parent=1 // pred_check
      _
    $region75: #{sentiment_classifier_forward.1} parent=1 // pred_check_branch
      %87 = sbr.rel (0) target = $region77
    $region76: #{sentiment_classifier_forward.1} parent=1 // pred_region
      %89 = vsyncadd [#allocation6], 0
      %s90 = sshll.u32 %s18, 4
      %s91 = int_to_ptr.hbm [resolvable:$true] %s90
      %s92 = sshll.u32 [#allocation7], 4
      %s93 = int_to_ptr.vmem [resolvable:$true] %s92
      %98 = dma.hbm_to_vmem [thread:$0]  %s91, 512, %s93, [#allocation6], 64, 64, 4
    $region77: #{sentiment_classifier_forward.1} parent=1 // pred_fallthru
      _
    // Predicated region
    $region78: #{sentiment_classifier_forward.1} parent=1 // pred_check
      _
    $region79: #{sentiment_classifier_forward.1} parent=1 // pred_check_branch
      %100 = sbr.rel (0) target = $region81
    $region80: #{sentiment_classifier_forward.1} parent=1 // pred_region
      _
    $region81: #{sentiment_classifier_forward.1} parent=1 // pred_fallthru
      _
    // Predicated region
    $region82: #{sentiment_classifier_forward.1} parent=1 // pred_check
      _
    $region83: #{sentiment_classifier_forward.1} parent=1 // pred_check_branch
      %102 = sbr.rel (0) target = $region85
    $region84: #{sentiment_classifier_forward.1} parent=1 // pred_region
      %104 = dma.done [#allocation3], 1024
    $region85: #{sentiment_classifier_forward.1} parent=1 // pred_fallthru
      _
    // Predicated region
    $region86: #{sentiment_classifier_forward.1} parent=1 // pred_check
      _
    $region87: #{sentiment_classifier_forward.1} parent=1 // pred_check_branch
      %106 = sbr.rel (0) target = $region89
    $region88: #{sentiment_classifier_forward.1} parent=1 // pred_region
      %108 = dma.done [#allocation6], 1024
    $region89: #{sentiment_classifier_forward.1} parent=1 // pred_fallthru
      _
    // Predicated region
    $region90: #{sentiment_classifier_forward.1} parent=1 // pred_check
      _
    $region91: #{sentiment_classifier_forward.1} parent=1 // pred_check_branch
      %110 = sbr.rel (0) target = $region93
    $region92: #{sentiment_classifier_forward.1} parent=1 // pred_region
      %112 = dma.done [#allocation6], 512
    $region93: #{sentiment_classifier_forward.1} parent=1 // pred_fallthru
      _
    %v114 = vlaneseq
    %v115 = vand.u32 %v114, 127
    %v116 = vld [vmem:[%s0] sm:$0xff]
    %v117 = vld [vmem:[%s0 + $0x8] sm:$0xff]
    %118 = vset.pattern.permute.xlu0 0
    %119 = vperm.xlu0 %118, %v116
    %v120 = vpop.permute.xlu0 %119
    %121 = vset.pattern.permute.xlu0 0
    %122 = vperm.xlu0 %121, %v117
    %v123 = vpop.permute.xlu0 %122
    %vm124 = vcmp.eq.s32.totalorder %v115, %v120
    %vm125 = vcmp.eq.s32.totalorder %v115, %v123
    %v126 = vsel %vm124, 1, 0
    %v127 = vsel %vm125, 1, 0
    %v128 = vcvt.s32.f32 %v126
    %v129 = vcvt.s32.f32 %v127
    %v130 = vld [vmem:[%s2] sm:$0xff]
    %v131 = vld [vmem:[%s2 + $0x8] sm:$0xff]
    %v132 = vld [vmem:[%s2 + $0x10] sm:$0xff]
    %v133 = vld [vmem:[%s2 + $0x18] sm:$0xff]
    %v134 = vld [vmem:[%s2 + $0x20] sm:$0xff]
    %v135 = vld [vmem:[%s2 + $0x28] sm:$0xff]
    %v136 = vld [vmem:[%s2 + $0x30] sm:$0xff]
    %v137 = vld [vmem:[%s2 + $0x38] sm:$0xff]
    %vm138 = vcmask 523264
    %v140 = vsel %vm138, %v128, 0
    %v143 = vsel %vm138, %v129, 0
    %145 = vmatpush.msra.mxu0 0.0
    %146 = vmatpush.msra.mxu0 0.0
    %147 = vmatpush.msra.mxu0 0.0
    %148 = vmatpush.msra.mxu0 0.0
    %149 = vmatpush.msra.mxu0 0.0
    %150 = vmatpush.msra.mxu0 0.0
    %151 = vmatpush.msra.mxu0 0.0
    %152 = vmatpush.msra.mxu0 0.0
    %153 = vmatpush.msra.mxu0 %v137
    %154 = vmatpush.msra.mxu0 %v136
    %155 = vmatpush.msra.mxu0 %v135
    %156 = vmatpush.msra.mxu0 %v134
    %157 = vmatpush.msra.mxu0 %v133
    %158 = vmatpush.msra.mxu0 %v132
    %159 = vmatpush.msra.mxu0 %v131
    %160 = vmatpush.msra.mxu0 %v130
    %161 = vmatmul.f32.gmra.mxu0 %v140
    %v162 = vpop.f32.mrf.mxu0
    %v163 = vadd.f32 0.0, %v162
    %164 = vmatmul.f32.gmra.mxu0 %v143
    %v165 = vpop.f32.mrf.mxu0
    %v166 = vadd.f32 0.0, %v165
    %167 = vdwg.mxu0
    %v168 = vld [vmem:[%s3] sm:$0xff]
    %v169 = vadd.f32 %v163, %v168
    %v170 = vadd.f32 %v166, %v168
    %v171 = vld [vmem:[%s4] sm:$0x1]
    %v172 = vld [vmem:[%s5] sm:$0x1]
    %v173 = vsel %vm138, %v169, 0.0
    %174 = vadd.xlane.f32.xlu0 %v173
    %v175 = vpop.xlane.xlu0 %174
    %v176 = vsel %vm138, %v170, 0.0
    %177 = vadd.xlane.f32.xlu0 %v176
    %v178 = vpop.xlane.xlu0 %177
    %v179 = vrcp.pop 64.0
    %v180 = vmul.f32 64.0, %v179
    %v181 = vsub.f32 1.0, %v180
    %v182 = vmul.f32 %v179, %v181
    %v183 = vadd.f32 %v179, %v182
    %vm184 = vweird.f32 %v179
    %v185 = vsel %vm184, %v179, %v183
    %v186 = vmul.f32 %v175, %v185
    %v187 = vmul.f32 %v178, %v185
    %v188 = vsub.f32 %v169, %v186
    %v189 = vsub.f32 %v170, %v187
    %v190 = vmul.f32 %v188, %v188
    %v191 = vmul.f32 %v189, %v189
    %v192 = vsel %vm138, %v190, 0.0
    %193 = vadd.xlane.f32.xlu0 %v192
    %v194 = vpop.xlane.xlu0 %193
    %v195 = vsel %vm138, %v191, 0.0
    %196 = vadd.xlane.f32.xlu0 %v195
    %v197 = vpop.xlane.xlu0 %196
    %v198 = vmul.f32 %v194, %v185
    %v199 = vmul.f32 %v197, %v185
    %v200 = vadd.f32 %v198, 1e-12
    %v201 = vadd.f32 %v199, 1e-12
    %v202 = vrsqrt.pop %v200
    %v203 = vmul.f32 %v202, %v200
    %v204 = vmul.f32 %v203, %v202
    %v205 = vmul.f32 0.5, %v204
    %v206 = vsub.f32 1.5, %v205
    %v207 = vmul.f32 %v202, %v206
    %vm208 = vweird.f32 %v200
    %vm209 = vweird.f32 %v202
    %vm210 = vmor %vm208, %vm209
    %v211 = vsel %vm210, %v202, %v207
    %v212 = vrsqrt.pop %v201
    %v213 = vmul.f32 %v212, %v201
    %v214 = vmul.f32 %v213, %v212
    %v215 = vmul.f32 0.5, %v214
    %v216 = vsub.f32 1.5, %v215
    %v217 = vmul.f32 %v212, %v216
    %vm218 = vweird.f32 %v201
    %vm219 = vweird.f32 %v212
    %vm220 = vmor %vm218, %vm219
    %v221 = vsel %vm220, %v212, %v217
    %v222 = vmul.f32 %v188, %v211
    %v223 = vmul.f32 %v189, %v221
    %v225 = vperm.slane %v171, 0
    %v227 = vmul.f32 %v222, %v225
    %v228 = vmul.f32 %v223, %v225
    %v230 = vperm.slane %v172, 0
    %v232 = vadd.f32 %v227, %v230
    %v233 = vadd.f32 %v228, %v230
    %v234 = vld [vmem:[%s1] sm:$0x1]
    %v235 = vld [vmem:[%s1 + $0x1] sm:$0x1]
    %v236 = vsub.f32 1.0, %v234
    %v237 = vsub.f32 1.0, %v235
    %v238 = vmul.f32 %v236, -1e+09
    %v239 = vmul.f32 %v237, -1e+09
    %v240 = vpack.c.bf16 %v233, %v232
    %v241 = vld [vmem:[%s6] sm:$0xff]
    %v242 = vld [vmem:[%s6 + $0x8] sm:$0xff]
    %v243 = vld [vmem:[%s6 + $0x10] sm:$0xff]
    %v244 = vld [vmem:[%s6 + $0x18] sm:$0xff]
    %v245 = vld [vmem:[%s6 + $0x20] sm:$0xff]
    %v246 = vld [vmem:[%s6 + $0x28] sm:$0xff]
    %v247 = vld [vmem:[%s6 + $0x30] sm:$0xff]
    %v248 = vld [vmem:[%s6 + $0x38] sm:$0xff]
    %v249 = vld [vmem:[%s7] sm:$0x3]
    %v251 = vperm.slane %v249, 0
    %v252 = vperm.slane %v249, 1
    %v263 = vunpack.c.l.b16 %v241
    %v264 = vunpack.c.h.b16 %v241
    %v265 = vunpack.c.l.b16 %v242
    %v266 = vunpack.c.h.b16 %v242
    %v267 = vunpack.c.l.b16 %v243
    %v268 = vunpack.c.h.b16 %v243
    %v269 = vunpack.c.l.b16 %v244
    %v270 = vunpack.c.h.b16 %v244
    %v271 = vunpack.c.l.b16 %v245
    %v272 = vunpack.c.h.b16 %v245
    %v273 = vunpack.c.l.b16 %v246
    %v274 = vunpack.c.h.b16 %v246
    %v275 = vunpack.c.l.b16 %v247
    %v276 = vunpack.c.h.b16 %v247
    %v277 = vunpack.c.l.b16 %v248
    %v278 = vunpack.c.h.b16 %v248
    %v279 = vpack.c.b16 %v265, %v263
    %v280 = vpack.c.b16 %v266, %v264
    %v281 = vpack.c.b16 %v269, %v267
    %v282 = vpack.c.b16 %v270, %v268
    %v283 = vpack.c.b16 %v273, %v271
    %v284 = vpack.c.b16 %v274, %v272
    %v285 = vpack.c.b16 %v277, %v275
    %v286 = vpack.c.b16 %v278, %v276
    %v296 = vsel %vm138, %v240, 0
    %298 = vmatpush.bf16.msra.mxu0 0
    %299 = vmatpush.bf16.msra.mxu0 0
    %300 = vmatpush.bf16.msra.mxu0 0
    %301 = vmatpush.bf16.msra.mxu0 0
    %302 = vmatpush.bf16.msra.mxu0 %v285
    %303 = vmatpush.bf16.msra.mxu0 %v283
    %304 = vmatpush.bf16.msra.mxu0 %v281
    %305 = vmatpush.bf16.msra.mxu0 %v279
    %306 = vmatmul.bf16.gmra.mxu0 %v296
    %v307 = vpop.f32.mrf.mxu0
    %v308 = vadd.f32 %v251, %v307
    %v309 = vpop.f32.mrf.mxu0
    %v310 = vadd.f32 %v251, %v309
    %311 = vdwg.mxu0
    %312 = vmatpush.bf16.msra.mxu0 0
    %313 = vmatpush.bf16.msra.mxu0 0
    %314 = vmatpush.bf16.msra.mxu0 0
    %315 = vmatpush.bf16.msra.mxu0 0
    %316 = vmatpush.bf16.msra.mxu0 %v286
    %317 = vmatpush.bf16.msra.mxu0 %v284
    %318 = vmatpush.bf16.msra.mxu0 %v282
    %319 = vmatpush.bf16.msra.mxu0 %v280
    %320 = vmatmul.bf16.gmra.mxu0 %v296
    %v321 = vpop.f32.mrf.mxu0
    %v322 = vadd.f32 %v252, %v321
    %v323 = vpop.f32.mrf.mxu0
    %v324 = vadd.f32 %v252, %v323
    %325 = vdwg.mxu0
    %v326 = vpack.c.bf16 %v322, %v308
    %v327 = vpack.c.bf16 %v324, %v310
    %v328 = vld [vmem:[#allocation2] sm:$0xf]
    %v329 = vld [vmem:[#allocation2 + $0x4] sm:$0xf]
    %v330 = vld [vmem:[#allocation2 + $0x8] sm:$0xf]
    %v331 = vld [vmem:[#allocation2 + $0xc] sm:$0xf]
    %v332 = vld [vmem:[#allocation2 + $0x10] sm:$0xf]
    %v333 = vld [vmem:[#allocation2 + $0x14] sm:$0xf]
    %v334 = vld [vmem:[#allocation2 + $0x18] sm:$0xf]
    %v335 = vld [vmem:[#allocation2 + $0x1c] sm:$0xf]
    %v338 = vrot.slane %v326, 4
    %v339 = vrot.slane %v327, 4
    %v340 = vunpack.c.l.b16 %v326
    %v341 = vpack.c.b16 %v340, %v340
    %342 = vrot.lane.b32.xlu0 %v341, 64
    %v343 = vpop.permute.xlu0 %342
    %vm344 = vcmask 130048
    %v346 = vsel %vm344, %v326, 0
    %v349 = vsel %vm344, %v343, 0
    %351 = vmatpush.bf16.xpose.msra.mxu0 0
    %352 = vmatpush.bf16.xpose.msra.mxu0 0
    %353 = vmatpush.bf16.xpose.msra.mxu0 0
    %354 = vmatpush.bf16.xpose.msra.mxu0 0
    %355 = vmatpush.bf16.xpose.msra.mxu0 0
    %356 = vmatpush.bf16.xpose.msra.mxu0 0
    %357 = vmatpush.bf16.xpose.msra.mxu0 0
    %358 = vmatpush.bf16.xpose.msra.mxu0 %v349
    %359 = vmatmul.bf16.gmra.mxu0 %v346
    %v360 = vpop.f32.mrf.mxu0
    %v361 = vadd.f32 0.0, %v360
    %v362 = vpop.f32.mrf.mxu0
    %363 = vdwg.mxu0
    %v364 = vunpack.c.l.b16 %v327
    %v365 = vpack.c.b16 %v364, %v364
    %366 = vrot.lane.b32.xlu0 %v365, 64
    %v367 = vpop.permute.xlu0 %366
    %v369 = vsel %vm344, %v327, 0
    %v372 = vsel %vm344, %v367, 0
    %374 = vmatpush.bf16.xpose.msra.mxu0 0
    %375 = vmatpush.bf16.xpose.msra.mxu0 0
    %376 = vmatpush.bf16.xpose.msra.mxu0 0
    %377 = vmatpush.bf16.xpose.msra.mxu0 0
    %378 = vmatpush.bf16.xpose.msra.mxu0 0
    %379 = vmatpush.bf16.xpose.msra.mxu0 0
    %380 = vmatpush.bf16.xpose.msra.mxu0 0
    %381 = vmatpush.bf16.xpose.msra.mxu0 %v372
    %382 = vmatmul.bf16.gmra.mxu0 %v369
    %v383 = vpop.f32.mrf.mxu0
    %v384 = vadd.f32 0.0, %v383
    %v385 = vpop.f32.mrf.mxu0
    %386 = vdwg.mxu0
    %v387 = vmul.f32 %v361, 0.25
    %v388 = vmul.f32 %v384, 0.25
    %v391 = vperm.slane %v238, 0
    %v392 = vperm.slane %v239, 0
    %v395 = vadd.f32 %v387, %v391
    %v396 = vadd.f32 %v388, %v392
    %vm397 = vcmask 64512
    %v398 = vsel %vm397, %v395, -inf
    %399 = vmax.xlane.f32.xlu0 %v398
    %v400 = vpop.xlane.xlu0 %399
    %v401 = vsel %vm397, %v396, -inf
    %402 = vmax.xlane.f32.xlu0 %v401
    %v403 = vpop.xlane.xlu0 %402
    %v404 = vsub.f32 %v395, %v400
    %v405 = vsub.f32 %v396, %v403
    %v406 = vmul.f32 %v404, 1.442695
    %v407 = vpow.pop %v406
    %v408 = vmul.f32 %v405, 1.442695
    %v409 = vpow.pop %v408
    %v410 = vsel %vm397, %v407, 0.0
    %411 = vadd.xlane.f32.xlu0 %v410
    %v412 = vpop.xlane.xlu0 %411
    %v413 = vsel %vm397, %v409, 0.0
    %414 = vadd.xlane.f32.xlu0 %v413
    %v415 = vpop.xlane.xlu0 %414
    %v416 = vrcp.pop %v412
    %v417 = vrcp.pop %v415
    %v418 = vmul.f32 %v407, %v416
    %v419 = vmul.f32 %v409, %v417
    %v420 = vpack.c.bf16 %v418, %v418
    %v421 = vpack.c.bf16 %v419, %v419
    %v423 = vsel %vm397, %v420, 0
    %vm425 = vcmask 1043456
    %v427 = vsel %vm425, %v338, 0
    %429 = vmatpush.bf16.msra.mxu0 0
    %430 = vmatpush.bf16.msra.mxu0 0
    %431 = vmatpush.bf16.msra.mxu0 0
    %432 = vmatpush.bf16.msra.mxu0 0
    %433 = vmatpush.bf16.msra.mxu0 0
    %434 = vmatpush.bf16.msra.mxu0 0
    %435 = vmatpush.bf16.msra.mxu0 0
    %436 = vmatpush.bf16.msra.mxu0 %v427
    %437 = vmatmul.bf16.gmra.mxu0 %v423
    %v438 = vpop.f32.mrf.mxu0
    %v439 = vadd.f32 0.0, %v438
    %v440 = vpop.f32.mrf.mxu0
    %441 = vdwg.mxu0
    %v443 = vsel %vm397, %v421, 0
    %v446 = vsel %vm425, %v339, 0
    %448 = vmatpush.bf16.msra.mxu0 0
    %449 = vmatpush.bf16.msra.mxu0 0
    %450 = vmatpush.bf16.msra.mxu0 0
    %451 = vmatpush.bf16.msra.mxu0 0
    %452 = vmatpush.bf16.msra.mxu0 0
    %453 = vmatpush.bf16.msra.mxu0 0
    %454 = vmatpush.bf16.msra.mxu0 0
    %455 = vmatpush.bf16.msra.mxu0 %v446
    %456 = vmatmul.bf16.gmra.mxu0 %v443
    %v457 = vpop.f32.mrf.mxu0
    %v458 = vadd.f32 0.0, %v457
    %v459 = vpop.f32.mrf.mxu0
    %460 = vdwg.mxu0
    %v461 = vpack.c.bf16 %v458, %v439
    %462 = vrot.lane.b32.xlu0 %v326, 112
    %v463 = vpop.permute.xlu0 %462
    %464 = vrot.lane.b32.xlu0 %v327, 112
    %v465 = vpop.permute.xlu0 %464
    %v466 = vrot.slane %v463, 4
    %v467 = vrot.slane %v465, 4
    %468 = vrot.lane.b32.xlu0 %v341, 112
    %v469 = vpop.permute.xlu0 %468
    %470 = vrot.lane.b32.xlu0 %v341, 48
    %v471 = vpop.permute.xlu0 %470
    %v473 = vsel %vm344, %v469, 0
    %v476 = vsel %vm344, %v471, 0
    %478 = vmatpush.bf16.xpose.msra.mxu0 0
    %479 = vmatpush.bf16.xpose.msra.mxu0 0
    %480 = vmatpush.bf16.xpose.msra.mxu0 0
    %481 = vmatpush.bf16.xpose.msra.mxu0 0
    %482 = vmatpush.bf16.xpose.msra.mxu0 0
    %483 = vmatpush.bf16.xpose.msra.mxu0 0
    %484 = vmatpush.bf16.xpose.msra.mxu0 0
    %485 = vmatpush.bf16.xpose.msra.mxu0 %v476
    %486 = vmatmul.bf16.gmra.mxu0 %v473
    %v487 = vpop.f32.mrf.mxu0
    %v488 = vadd.f32 0.0, %v487
    %v489 = vpop.f32.mrf.mxu0
    %490 = vdwg.mxu0
    %491 = vrot.lane.b32.xlu0 %v365, 112
    %v492 = vpop.permute.xlu0 %491
    %493 = vrot.lane.b32.xlu0 %v365, 48
    %v494 = vpop.permute.xlu0 %493
    %v496 = vsel %vm344, %v492, 0
    %v499 = vsel %vm344, %v494, 0
    %501 = vmatpush.bf16.xpose.msra.mxu0 0
    %502 = vmatpush.bf16.xpose.msra.mxu0 0
    %503 = vmatpush.bf16.xpose.msra.mxu0 0
    %504 = vmatpush.bf16.xpose.msra.mxu0 0
    %505 = vmatpush.bf16.xpose.msra.mxu0 0
    %506 = vmatpush.bf16.xpose.msra.mxu0 0
    %507 = vmatpush.bf16.xpose.msra.mxu0 0
    %508 = vmatpush.bf16.xpose.msra.mxu0 %v499
    %509 = vmatmul.bf16.gmra.mxu0 %v496
    %v510 = vpop.f32.mrf.mxu0
    %v511 = vadd.f32 0.0, %v510
    %v512 = vpop.f32.mrf.mxu0
    %513 = vdwg.mxu0
    %v514 = vmul.f32 %v488, 0.25
    %v515 = vmul.f32 %v511, 0.25
    %v516 = vadd.f32 %v514, %v391
    %v517 = vadd.f32 %v515, %v392
    %v518 = vsel %vm397, %v516, -inf
    %519 = vmax.xlane.f32.xlu0 %v518
    %v520 = vpop.xlane.xlu0 %519
    %v521 = vsel %vm397, %v517, -inf
    %522 = vmax.xlane.f32.xlu0 %v521
    %v523 = vpop.xlane.xlu0 %522
    %v524 = vsub.f32 %v516, %v520
    %v525 = vsub.f32 %v517, %v523
    %v526 = vmul.f32 %v524, 1.442695
    %v527 = vpow.pop %v526
    %v528 = vmul.f32 %v525, 1.442695
    %v529 = vpow.pop %v528
    %v530 = vsel %vm397, %v527, 0.0
    %531 = vadd.xlane.f32.xlu0 %v530
    %v532 = vpop.xlane.xlu0 %531
    %v533 = vsel %vm397, %v529, 0.0
    %534 = vadd.xlane.f32.xlu0 %v533
    %v535 = vpop.xlane.xlu0 %534
    %v536 = vrcp.pop %v532
    %v537 = vrcp.pop %v535
    %v538 = vmul.f32 %v527, %v536
    %v539 = vmul.f32 %v529, %v537
    %v540 = vpack.c.bf16 %v538, %v538
    %v541 = vpack.c.bf16 %v539, %v539
    %v543 = vsel %vm397, %v540, 0
    %v546 = vsel %vm425, %v466, 0
    %548 = vmatpush.bf16.msra.mxu0 0
    %549 = vmatpush.bf16.msra.mxu0 0
    %550 = vmatpush.bf16.msra.mxu0 0
    %551 = vmatpush.bf16.msra.mxu0 0
    %552 = vmatpush.bf16.msra.mxu0 0
    %553 = vmatpush.bf16.msra.mxu0 0
    %554 = vmatpush.bf16.msra.mxu0 0
    %555 = vmatpush.bf16.msra.mxu0 %v546
    %556 = vmatmul.bf16.gmra.mxu0 %v543
    %v557 = vpop.f32.mrf.mxu0
    %v558 = vadd.f32 0.0, %v557
    %v559 = vpop.f32.mrf.mxu0
    %560 = vdwg.mxu0
    %v562 = vsel %vm397, %v541, 0
    %v565 = vsel %vm425, %v467, 0
    %567 = vmatpush.bf16.msra.mxu0 0
    %568 = vmatpush.bf16.msra.mxu0 0
    %569 = vmatpush.bf16.msra.mxu0 0
    %570 = vmatpush.bf16.msra.mxu0 0
    %571 = vmatpush.bf16.msra.mxu0 0
    %572 = vmatpush.bf16.msra.mxu0 0
    %573 = vmatpush.bf16.msra.mxu0 0
    %574 = vmatpush.bf16.msra.mxu0 %v565
    %575 = vmatmul.bf16.gmra.mxu0 %v562
    %v576 = vpop.f32.mrf.mxu0
    %v577 = vadd.f32 0.0, %v576
    %v578 = vpop.f32.mrf.mxu0
    %579 = vdwg.mxu0
    %v580 = vpack.c.bf16 %v577, %v558
    %v583 = vunpack.c.l.b16 %v330
    %v584 = vunpack.c.l.b16 %v331
    %v585 = vpack.c.b16 %v584, %v583
    %v588 = vsel %vm344, %v580, 0
    %590 = vmatpush.bf16.msra.mxu0 0
    %591 = vmatpush.bf16.msra.mxu0 0
    %592 = vmatpush.bf16.msra.mxu0 0
    %593 = vmatpush.bf16.msra.mxu0 0
    %594 = vmatpush.bf16.msra.mxu0 0
    %595 = vmatpush.bf16.msra.mxu0 0
    %596 = vmatpush.bf16.msra.mxu0 0
    %597 = vmatpush.bf16.msra.mxu0 %v585
    %598 = vmatmul.bf16.gmra.mxu0 %v588
    %v599 = vpop.f32.mrf.mxu0
    %v600 = vadd.f32 0.0, %v599
    %v601 = vpop.f32.mrf.mxu0
    %v602 = vadd.f32 0.0, %v601
    %603 = vdwg.mxu0
    %v606 = vunpack.c.l.b16 %v328
    %v607 = vunpack.c.l.b16 %v329
    %v608 = vpack.c.b16 %v607, %v606
    %v611 = vsel %vm344, %v461, 0
    %613 = vmatpush.bf16.msra.mxu0 0
    %614 = vmatpush.bf16.msra.mxu0 0
    %615 = vmatpush.bf16.msra.mxu0 0
    %616 = vmatpush.bf16.msra.mxu0 0
    %617 = vmatpush.bf16.msra.mxu0 0
    %618 = vmatpush.bf16.msra.mxu0 0
    %619 = vmatpush.bf16.msra.mxu0 0
    %620 = vmatpush.bf16.msra.mxu0 %v608
    %621 = vmatmul.bf16.gmra.mxu0 %v611
    %v622 = vpop.f32.mrf.mxu0
    %v623 = vadd.f32 %v600, %v622
    %v624 = vpop.f32.mrf.mxu0
    %v625 = vadd.f32 %v602, %v624
    %626 = vdwg.mxu0
    %627 = vrot.lane.b32.xlu0 %v326, 96
    %v628 = vpop.permute.xlu0 %627
    %629 = vrot.lane.b32.xlu0 %v327, 96
    %v630 = vpop.permute.xlu0 %629
    %v631 = vrot.slane %v628, 4
    %v632 = vrot.slane %v630, 4
    %633 = vrot.lane.b32.xlu0 %v341, 96
    %v634 = vpop.permute.xlu0 %633
    %635 = vrot.lane.b32.xlu0 %v341, 32
    %v636 = vpop.permute.xlu0 %635
    %v638 = vsel %vm344, %v634, 0
    %v641 = vsel %vm344, %v636, 0
    %643 = vmatpush.bf16.xpose.msra.mxu0 0
    %644 = vmatpush.bf16.xpose.msra.mxu0 0
    %645 = vmatpush.bf16.xpose.msra.mxu0 0
    %646 = vmatpush.bf16.xpose.msra.mxu0 0
    %647 = vmatpush.bf16.xpose.msra.mxu0 0
    %648 = vmatpush.bf16.xpose.msra.mxu0 0
    %649 = vmatpush.bf16.xpose.msra.mxu0 0
    %650 = vmatpush.bf16.xpose.msra.mxu0 %v641
    %651 = vmatmul.bf16.gmra.mxu0 %v638
    %v652 = vpop.f32.mrf.mxu0
    %v653 = vadd.f32 0.0, %v652
    %v654 = vpop.f32.mrf.mxu0
    %655 = vdwg.mxu0
    %656 = vrot.lane.b32.xlu0 %v365, 96
    %v657 = vpop.permute.xlu0 %656
    %658 = vrot.lane.b32.xlu0 %v365, 32
    %v659 = vpop.permute.xlu0 %658
    %v661 = vsel %vm344, %v657, 0
    %v664 = vsel %vm344, %v659, 0
    %666 = vmatpush.bf16.xpose.msra.mxu0 0
    %667 = vmatpush.bf16.xpose.msra.mxu0 0
    %668 = vmatpush.bf16.xpose.msra.mxu0 0
    %669 = vmatpush.bf16.xpose.msra.mxu0 0
    %670 = vmatpush.bf16.xpose.msra.mxu0 0
    %671 = vmatpush.bf16.xpose.msra.mxu0 0
    %672 = vmatpush.bf16.xpose.msra.mxu0 0
    %673 = vmatpush.bf16.xpose.msra.mxu0 %v664
    %674 = vmatmul.bf16.gmra.mxu0 %v661
    %v675 = vpop.f32.mrf.mxu0
    %v676 = vadd.f32 0.0, %v675
    %v677 = vpop.f32.mrf.mxu0
    %678 = vdwg.mxu0
    %v679 = vmul.f32 %v653, 0.25
    %v680 = vmul.f32 %v676, 0.25
    %v681 = vadd.f32 %v679, %v391
    %v682 = vadd.f32 %v680, %v392
    %v683 = vsel %vm397, %v681, -inf
    %684 = vmax.xlane.f32.xlu0 %v683
    %v685 = vpop.xlane.xlu0 %684
    %v686 = vsel %vm397, %v682, -inf
    %687 = vmax.xlane.f32.xlu0 %v686
    %v688 = vpop.xlane.xlu0 %687
    %v689 = vsub.f32 %v681, %v685
    %v690 = vsub.f32 %v682, %v688
    %v691 = vmul.f32 %v689, 1.442695
    %v692 = vpow.pop %v691
    %v693 = vmul.f32 %v690, 1.442695
    %v694 = vpow.pop %v693
    %v695 = vsel %vm397, %v692, 0.0
    %696 = vadd.xlane.f32.xlu0 %v695
    %v697 = vpop.xlane.xlu0 %696
    %v698 = vsel %vm397, %v694, 0.0
    %699 = vadd.xlane.f32.xlu0 %v698
    %v700 = vpop.xlane.xlu0 %699
    %v701 = vrcp.pop %v697
    %v702 = vrcp.pop %v700
    %v703 = vmul.f32 %v692, %v701
    %v704 = vmul.f32 %v694, %v702
    %v705 = vpack.c.bf16 %v703, %v703
    %v706 = vpack.c.bf16 %v704, %v704
    %v708 = vsel %vm397, %v705, 0
    %v711 = vsel %vm425, %v631, 0
    %713 = vmatpush.bf16.msra.mxu0 0
    %714 = vmatpush.bf16.msra.mxu0 0
    %715 = vmatpush.bf16.msra.mxu0 0
    %716 = vmatpush.bf16.msra.mxu0 0
    %717 = vmatpush.bf16.msra.mxu0 0
    %718 = vmatpush.bf16.msra.mxu0 0
    %719 = vmatpush.bf16.msra.mxu0 0
    %720 = vmatpush.bf16.msra.mxu0 %v711
    %721 = vmatmul.bf16.gmra.mxu0 %v708
    %v722 = vpop.f32.mrf.mxu0
    %v723 = vadd.f32 0.0, %v722
    %v724 = vpop.f32.mrf.mxu0
    %725 = vdwg.mxu0
    %v727 = vsel %vm397, %v706, 0
    %v730 = vsel %vm425, %v632, 0
    %732 = vmatpush.bf16.msra.mxu0 0
    %733 = vmatpush.bf16.msra.mxu0 0
    %734 = vmatpush.bf16.msra.mxu0 0
    %735 = vmatpush.bf16.msra.mxu0 0
    %736 = vmatpush.bf16.msra.mxu0 0
    %737 = vmatpush.bf16.msra.mxu0 0
    %738 = vmatpush.bf16.msra.mxu0 0
    %739 = vmatpush.bf16.msra.mxu0 %v730
    %740 = vmatmul.bf16.gmra.mxu0 %v727
    %v741 = vpop.f32.mrf.mxu0
    %v742 = vadd.f32 0.0, %v741
    %v743 = vpop.f32.mrf.mxu0
    %744 = vdwg.mxu0
    %v745 = vpack.c.bf16 %v742, %v723
    %v748 = vunpack.c.l.b16 %v332
    %v749 = vunpack.c.l.b16 %v333
    %v750 = vpack.c.b16 %v749, %v748
    %v753 = vsel %vm344, %v745, 0
    %755 = vmatpush.bf16.msra.mxu0 0
    %756 = vmatpush.bf16.msra.mxu0 0
    %757 = vmatpush.bf16.msra.mxu0 0
    %758 = vmatpush.bf16.msra.mxu0 0
    %759 = vmatpush.bf16.msra.mxu0 0
    %760 = vmatpush.bf16.msra.mxu0 0
    %761 = vmatpush.bf16.msra.mxu0 0
    %762 = vmatpush.bf16.msra.mxu0 %v750
    %763 = vmatmul.bf16.gmra.mxu0 %v753
    %v764 = vpop.f32.mrf.mxu0
    %v765 = vadd.f32 0.0, %v764
    %v766 = vpop.f32.mrf.mxu0
    %v767 = vadd.f32 0.0, %v766
    %768 = vdwg.mxu0
    %v769 = vadd.f32 %v623, %v765
    %v770 = vadd.f32 %v625, %v767
    %771 = vrot.lane.b32.xlu0 %v326, 80
    %v772 = vpop.permute.xlu0 %771
    %773 = vrot.lane.b32.xlu0 %v327, 80
    %v774 = vpop.permute.xlu0 %773
    %v775 = vrot.slane %v772, 4
    %v776 = vrot.slane %v774, 4
    %777 = vrot.lane.b32.xlu0 %v341, 80
    %v778 = vpop.permute.xlu0 %777
    %779 = vrot.lane.b32.xlu0 %v341, 16
    %v780 = vpop.permute.xlu0 %779
    %v782 = vsel %vm344, %v778, 0
    %v785 = vsel %vm344, %v780, 0
    %787 = vmatpush.bf16.xpose.msra.mxu0 0
    %788 = vmatpush.bf16.xpose.msra.mxu0 0
    %789 = vmatpush.bf16.xpose.msra.mxu0 0
    %790 = vmatpush.bf16.xpose.msra.mxu0 0
    %791 = vmatpush.bf16.xpose.msra.mxu0 0
    %792 = vmatpush.bf16.xpose.msra.mxu0 0
    %793 = vmatpush.bf16.xpose.msra.mxu0 0
    %794 = vmatpush.bf16.xpose.msra.mxu0 %v785
    %795 = vmatmul.bf16.gmra.mxu0 %v782
    %v796 = vpop.f32.mrf.mxu0
    %v797 = vadd.f32 0.0, %v796
    %v798 = vpop.f32.mrf.mxu0
    %799 = vdwg.mxu0
    %800 = vrot.lane.b32.xlu0 %v365, 80
    %v801 = vpop.permute.xlu0 %800
    %802 = vrot.lane.b32.xlu0 %v365, 16
    %v803 = vpop.permute.xlu0 %802
    %v805 = vsel %vm344, %v801, 0
    %v808 = vsel %vm344, %v803, 0
    %810 = vmatpush.bf16.xpose.msra.mxu0 0
    %811 = vmatpush.bf16.xpose.msra.mxu0 0
    %812 = vmatpush.bf16.xpose.msra.mxu0 0
    %813 = vmatpush.bf16.xpose.msra.mxu0 0
    %814 = vmatpush.bf16.xpose.msra.mxu0 0
    %815 = vmatpush.bf16.xpose.msra.mxu0 0
    %816 = vmatpush.bf16.xpose.msra.mxu0 0
    %817 = vmatpush.bf16.xpose.msra.mxu0 %v808
    %818 = vmatmul.bf16.gmra.mxu0 %v805
    %v819 = vpop.f32.mrf.mxu0
    %v820 = vadd.f32 0.0, %v819
    %v821 = vpop.f32.mrf.mxu0
    %822 = vdwg.mxu0
    %v823 = vmul.f32 %v797, 0.25
    %v824 = vmul.f32 %v820, 0.25
    %v825 = vadd.f32 %v823, %v391
    %v826 = vadd.f32 %v824, %v392
    %v827 = vsel %vm397, %v825, -inf
    %828 = vmax.xlane.f32.xlu0 %v827
    %v829 = vpop.xlane.xlu0 %828
    %v830 = vsel %vm397, %v826, -inf
    %831 = vmax.xlane.f32.xlu0 %v830
    %v832 = vpop.xlane.xlu0 %831
    %v833 = vsub.f32 %v825, %v829
    %v834 = vsub.f32 %v826, %v832
    %v835 = vmul.f32 %v833, 1.442695
    %v836 = vpow.pop %v835
    %v837 = vmul.f32 %v834, 1.442695
    %v838 = vpow.pop %v837
    %v839 = vsel %vm397, %v836, 0.0
    %840 = vadd.xlane.f32.xlu0 %v839
    %v841 = vpop.xlane.xlu0 %840
    %v842 = vsel %vm397, %v838, 0.0
    %843 = vadd.xlane.f32.xlu0 %v842
    %v844 = vpop.xlane.xlu0 %843
    %v845 = vrcp.pop %v841
    %v846 = vrcp.pop %v844
    %v847 = vmul.f32 %v836, %v845
    %v848 = vmul.f32 %v838, %v846
    %v849 = vpack.c.bf16 %v847, %v847
    %v850 = vpack.c.bf16 %v848, %v848
    %v852 = vsel %vm397, %v849, 0
    %v855 = vsel %vm425, %v775, 0
    %857 = vmatpush.bf16.msra.mxu0 0
    %858 = vmatpush.bf16.msra.mxu0 0
    %859 = vmatpush.bf16.msra.mxu0 0
    %860 = vmatpush.bf16.msra.mxu0 0
    %861 = vmatpush.bf16.msra.mxu0 0
    %862 = vmatpush.bf16.msra.mxu0 0
    %863 = vmatpush.bf16.msra.mxu0 0
    %864 = vmatpush.bf16.msra.mxu0 %v855
    %865 = vmatmul.bf16.gmra.mxu0 %v852
    %v866 = vpop.f32.mrf.mxu0
    %v867 = vadd.f32 0.0, %v866
    %v868 = vpop.f32.mrf.mxu0
    %869 = vdwg.mxu0
    %v871 = vsel %vm397, %v850, 0
    %v874 = vsel %vm425, %v776, 0
    %876 = vmatpush.bf16.msra.mxu0 0
    %877 = vmatpush.bf16.msra.mxu0 0
    %878 = vmatpush.bf16.msra.mxu0 0
    %879 = vmatpush.bf16.msra.mxu0 0
    %880 = vmatpush.bf16.msra.mxu0 0
    %881 = vmatpush.bf16.msra.mxu0 0
    %882 = vmatpush.bf16.msra.mxu0 0
    %883 = vmatpush.bf16.msra.mxu0 %v874
    %884 = vmatmul.bf16.gmra.mxu0 %v871
    %v885 = vpop.f32.mrf.mxu0
    %v886 = vadd.f32 0.0, %v885
    %v887 = vpop.f32.mrf.mxu0
    %888 = vdwg.mxu0
    %v889 = vpack.c.bf16 %v886, %v867
    %v892 = vunpack.c.l.b16 %v334
    %v893 = vunpack.c.l.b16 %v335
    %v894 = vpack.c.b16 %v893, %v892
    %v897 = vsel %vm344, %v889, 0
    %899 = vmatpush.bf16.msra.mxu0 0
    %900 = vmatpush.bf16.msra.mxu0 0
    %901 = vmatpush.bf16.msra.mxu0 0
    %902 = vmatpush.bf16.msra.mxu0 0
    %903 = vmatpush.bf16.msra.mxu0 0
    %904 = vmatpush.bf16.msra.mxu0 0
    %905 = vmatpush.bf16.msra.mxu0 0
    %906 = vmatpush.bf16.msra.mxu0 %v894
    %907 = vmatmul.bf16.gmra.mxu0 %v897
    %v908 = vpop.f32.mrf.mxu0
    %v909 = vadd.f32 0.0, %v908
    %v910 = vpop.f32.mrf.mxu0
    %v911 = vadd.f32 0.0, %v910
    %912 = vdwg.mxu0
    %v913 = vadd.f32 %v769, %v909
    %v914 = vadd.f32 %v770, %v911
    %v915 = vld [vmem:[%s9] sm:$0x1]
    %v917 = vperm.slane %v915, 0
    %v919 = vadd.f32 %v913, %v917
    %v920 = vadd.f32 %v914, %v917
    %v921 = vadd.f32 %v232, %v919
    %v922 = vadd.f32 %v233, %v920
    %v923 = vld [vmem:[%s10] sm:$0x1]
    %v924 = vld [vmem:[%s11] sm:$0x1]
    %v925 = vsel %vm138, %v921, 0.0
    %926 = vadd.xlane.f32.xlu0 %v925
    %v927 = vpop.xlane.xlu0 %926
    %v928 = vsel %vm138, %v922, 0.0
    %929 = vadd.xlane.f32.xlu0 %v928
    %v930 = vpop.xlane.xlu0 %929
    %v931 = vmul.f32 %v927, %v185
    %v932 = vmul.f32 %v930, %v185
    %v933 = vsub.f32 %v921, %v931
    %v934 = vsub.f32 %v922, %v932
    %v935 = vmul.f32 %v933, %v933
    %v936 = vmul.f32 %v934, %v934
    %v937 = vsel %vm138, %v935, 0.0
    %938 = vadd.xlane.f32.xlu0 %v937
    %v939 = vpop.xlane.xlu0 %938
    %v940 = vsel %vm138, %v936, 0.0
    %941 = vadd.xlane.f32.xlu0 %v940
    %v942 = vpop.xlane.xlu0 %941
    %v943 = vmul.f32 %v939, %v185
    %v944 = vmul.f32 %v942, %v185
    %v945 = vadd.f32 %v943, 1e-12
    %v946 = vadd.f32 %v944, 1e-12
    %v947 = vrsqrt.pop %v945
    %v948 = vmul.f32 %v947, %v945
    %v949 = vmul.f32 %v948, %v947
    %v950 = vmul.f32 0.5, %v949
    %v951 = vsub.f32 1.5, %v950
    %v952 = vmul.f32 %v947, %v951
    %vm953 = vweird.f32 %v945
    %vm954 = vweird.f32 %v947
    %vm955 = vmor %vm953, %vm954
    %v956 = vsel %vm955, %v947, %v952
    %v957 = vrsqrt.pop %v946
    %v958 = vmul.f32 %v957, %v946
    %v959 = vmul.f32 %v958, %v957
    %v960 = vmul.f32 0.5, %v959
    %v961 = vsub.f32 1.5, %v960
    %v962 = vmul.f32 %v957, %v961
    %vm963 = vweird.f32 %v946
    %vm964 = vweird.f32 %v957
    %vm965 = vmor %vm963, %vm964
    %v966 = vsel %vm965, %v957, %v962
    %v967 = vmul.f32 %v933, %v956
    %v968 = vmul.f32 %v934, %v966
    %v970 = vperm.slane %v923, 0
    %v972 = vmul.f32 %v967, %v970
    %v973 = vmul.f32 %v968, %v970
    %v975 = vperm.slane %v924, 0
    %v977 = vadd.f32 %v972, %v975
    %v978 = vadd.f32 %v973, %v975
    %v979 = vpack.c.bf16 %v978, %v977
    %v980 = vld [vmem:[#allocation5] sm:$0xf]
    %v981 = vld [vmem:[#allocation5 + $0x4] sm:$0xf]
    %v982 = vld [vmem:[#allocation5 + $0x8] sm:$0xf]
    %v983 = vld [vmem:[#allocation5 + $0xc] sm:$0xf]
    %v984 = vld [vmem:[#allocation5 + $0x10] sm:$0xf]
    %v985 = vld [vmem:[#allocation5 + $0x14] sm:$0xf]
    %v986 = vld [vmem:[#allocation5 + $0x18] sm:$0xf]
    %v987 = vld [vmem:[#allocation5 + $0x1c] sm:$0xf]
    %v988 = vld [vmem:[%s13] sm:$0x1]
    %v990 = vperm.slane %v988, 0
    %v1000 = vunpack.c.l.b16 %v980
    %v1001 = vunpack.c.l.b16 %v981
    %v1002 = vunpack.c.l.b16 %v982
    %v1003 = vunpack.c.l.b16 %v983
    %v1004 = vunpack.c.l.b16 %v984
    %v1005 = vunpack.c.l.b16 %v985
    %v1006 = vunpack.c.l.b16 %v986
    %v1007 = vunpack.c.l.b16 %v987
    %v1008 = vpack.c.b16 %v1001, %v1000
    %v1009 = vpack.c.b16 %v1003, %v1002
    %v1010 = vpack.c.b16 %v1005, %v1004
    %v1011 = vpack.c.b16 %v1007, %v1006
    %v1017 = vsel %vm138, %v979, 0
    %1019 = vmatpush.bf16.msra.mxu0 0
    %1020 = vmatpush.bf16.msra.mxu0 0
    %1021 = vmatpush.bf16.msra.mxu0 0
    %1022 = vmatpush.bf16.msra.mxu0 0
    %1023 = vmatpush.bf16.msra.mxu0 %v1011
    %1024 = vmatpush.bf16.msra.mxu0 %v1010
    %1025 = vmatpush.bf16.msra.mxu0 %v1009
    %1026 = vmatpush.bf16.msra.mxu0 %v1008
    %1027 = vmatmul.bf16.gmra.mxu0 %v1017
    %v1028 = vpop.f32.mrf.mxu0
    %v1029 = vadd.f32 %v990, %v1028
    %v1030 = vpop.f32.mrf.mxu0
    %v1031 = vadd.f32 %v990, %v1030
    %1032 = vdwg.mxu0
    %v1033 = vmul.f32 %v1029, %v1029
    %v1034 = vmul.f32 %v1031, %v1031
    %v1035 = vmul.f32 %v1029, %v1033
    %v1036 = vmul.f32 %v1031, %v1034
    %v1037 = vmul.f32 %v1035, 0.044715
    %v1038 = vmul.f32 %v1036, 0.044715
    %v1039 = vadd.f32 %v1029, %v1037
    %v1040 = vadd.f32 %v1031, %v1038
    %v1041 = vmul.f32 %v1039, 0.7978846
    %v1042 = vmul.f32 %v1040, 0.7978846
    %v1043 = vtanh.pop %v1041
    %v1044 = vtanh.pop %v1042
    %v1045 = vadd.f32 %v1043, 1.0
    %v1046 = vadd.f32 %v1044, 1.0
    %v1047 = vmul.f32 %v1045, 0.5
    %v1048 = vmul.f32 %v1046, 0.5
    %v1049 = vmul.f32 %v1029, %v1047
    %v1050 = vmul.f32 %v1031, %v1048
    %v1051 = vpack.c.bf16 %v1050, %v1049
    %v1052 = vld [vmem:[%s14] sm:$0xf]
    %v1053 = vld [vmem:[%s14 + $0x4] sm:$0xf]
    %v1054 = vld [vmem:[%s14 + $0x8] sm:$0xf]
    %v1055 = vld [vmem:[%s14 + $0xc] sm:$0xf]
    %v1056 = vld [vmem:[%s14 + $0x10] sm:$0xf]
    %v1057 = vld [vmem:[%s14 + $0x14] sm:$0xf]
    %v1058 = vld [vmem:[%s14 + $0x18] sm:$0xf]
    %v1059 = vld [vmem:[%s14 + $0x1c] sm:$0xf]
    %v1060 = vld [vmem:[%s14 + $0x20] sm:$0xf]
    %v1061 = vld [vmem:[%s14 + $0x24] sm:$0xf]
    %v1062 = vld [vmem:[%s14 + $0x28] sm:$0xf]
    %v1063 = vld [vmem:[%s14 + $0x2c] sm:$0xf]
    %v1064 = vld [vmem:[%s14 + $0x30] sm:$0xf]
    %v1065 = vld [vmem:[%s14 + $0x34] sm:$0xf]
    %v1066 = vld [vmem:[%s14 + $0x38] sm:$0xf]
    %v1067 = vld [vmem:[%s14 + $0x3c] sm:$0xf]
    %v1068 = vld [vmem:[%s15] sm:$0x1]
    %v1070 = vperm.slane %v1068, 0
    %v1088 = vunpack.c.l.b16 %v1052
    %v1089 = vunpack.c.l.b16 %v1053
    %v1090 = vunpack.c.l.b16 %v1054
    %v1091 = vunpack.c.l.b16 %v1055
    %v1092 = vunpack.c.l.b16 %v1056
    %v1093 = vunpack.c.l.b16 %v1057
    %v1094 = vunpack.c.l.b16 %v1058
    %v1095 = vunpack.c.l.b16 %v1059
    %v1096 = vunpack.c.l.b16 %v1060
    %v1097 = vunpack.c.l.b16 %v1061
    %v1098 = vunpack.c.l.b16 %v1062
    %v1099 = vunpack.c.l.b16 %v1063
    %v1100 = vunpack.c.l.b16 %v1064
    %v1101 = vunpack.c.l.b16 %v1065
    %v1102 = vunpack.c.l.b16 %v1066
    %v1103 = vunpack.c.l.b16 %v1067
    %v1104 = vpack.c.b16 %v1089, %v1088
    %v1105 = vpack.c.b16 %v1091, %v1090
    %v1106 = vpack.c.b16 %v1093, %v1092
    %v1107 = vpack.c.b16 %v1095, %v1094
    %v1108 = vpack.c.b16 %v1097, %v1096
    %v1109 = vpack.c.b16 %v1099, %v1098
    %v1110 = vpack.c.b16 %v1101, %v1100
    %v1111 = vpack.c.b16 %v1103, %v1102
    %1120 = vmatpush.bf16.msra.mxu0 %v1111
    %1121 = vmatpush.bf16.msra.mxu0 %v1110
    %1122 = vmatpush.bf16.msra.mxu0 %v1109
    %1123 = vmatpush.bf16.msra.mxu0 %v1108
    %1124 = vmatpush.bf16.msra.mxu0 %v1107
    %1125 = vmatpush.bf16.msra.mxu0 %v1106
    %1126 = vmatpush.bf16.msra.mxu0 %v1105
    %1127 = vmatpush.bf16.msra.mxu0 %v1104
    %1128 = vmatmul.bf16.gmra.mxu0 %v1051
    %v1129 = vpop.f32.mrf.mxu0
    %v1130 = vadd.f32 %v1070, %v1129
    %v1131 = vpop.f32.mrf.mxu0
    %v1132 = vadd.f32 %v1070, %v1131
    %1133 = vdwg.mxu0
    %v1134 = vadd.f32 %v977, %v1130
    %v1135 = vadd.f32 %v978, %v1132
    %v1136 = vld [vmem:[%s16] sm:$0x1]
    %v1137 = vld [vmem:[%s17] sm:$0x1]
    %v1138 = vsel %vm138, %v1134, 0.0
    %1139 = vadd.xlane.f32.xlu0 %v1138
    %v1140 = vpop.xlane.xlu0 %1139
    %v1141 = vsel %vm138, %v1135, 0.0
    %1142 = vadd.xlane.f32.xlu0 %v1141
    %v1143 = vpop.xlane.xlu0 %1142
    %v1144 = vmul.f32 %v1140, %v185
    %v1145 = vmul.f32 %v1143, %v185
    %v1146 = vsub.f32 %v1134, %v1144
    %v1147 = vsub.f32 %v1135, %v1145
    %v1148 = vmul.f32 %v1146, %v1146
    %v1149 = vmul.f32 %v1147, %v1147
    %v1150 = vsel %vm138, %v1148, 0.0
    %1151 = vadd.xlane.f32.xlu0 %v1150
    %v1152 = vpop.xlane.xlu0 %1151
    %v1153 = vsel %vm138, %v1149, 0.0
    %1154 = vadd.xlane.f32.xlu0 %v1153
    %v1155 = vpop.xlane.xlu0 %1154
    %v1156 = vmul.f32 %v1152, %v185
    %v1157 = vmul.f32 %v1155, %v185
    %v1158 = vadd.f32 %v1156, 1e-12
    %v1159 = vadd.f32 %v1157, 1e-12
    %v1160 = vrsqrt.pop %v1158
    %v1161 = vmul.f32 %v1160, %v1158
    %v1162 = vmul.f32 %v1161, %v1160
    %v1163 = vmul.f32 0.5, %v1162
    %v1164 = vsub.f32 1.5, %v1163
    %v1165 = vmul.f32 %v1160, %v1164
    %vm1166 = vweird.f32 %v1158
    %vm1167 = vweird.f32 %v1160
    %vm1168 = vmor %vm1166, %vm1167
    %v1169 = vsel %vm1168, %v1160, %v1165
    %v1170 = vrsqrt.pop %v1159
    %v1171 = vmul.f32 %v1170, %v1159
    %v1172 = vmul.f32 %v1171, %v1170
    %v1173 = vmul.f32 0.5, %v1172
    %v1174 = vsub.f32 1.5, %v1173
    %v1175 = vmul.f32 %v1170, %v1174
    %vm1176 = vweird.f32 %v1159
    %vm1177 = vweird.f32 %v1170
    %vm1178 = vmor %vm1176, %vm1177
    %v1179 = vsel %vm1178, %v1170, %v1175
    %v1180 = vmul.f32 %v1146, %v1169
    %v1181 = vmul.f32 %v1147, %v1179
    %v1183 = vperm.slane %v1136, 0
    %v1185 = vmul.f32 %v1180, %v1183
    %v1186 = vmul.f32 %v1181, %v1183
    %v1188 = vperm.slane %v1137, 0
    %v1190 = vadd.f32 %v1185, %v1188
    %v1191 = vadd.f32 %v1186, %v1188
    %v1192 = vpack.c.bf16 %v1191, %v1190
    %s1193 = scalar_lea.vmem %s6, 64
    %v1194 = vld [vmem:[%s1193] sm:$0xff]
    %v1195 = vld [vmem:[%s1193 + $0x8] sm:$0xff]
    %v1196 = vld [vmem:[%s1193 + $0x10] sm:$0xff]
    %v1197 = vld [vmem:[%s1193 + $0x18] sm:$0xff]
    %v1198 = vld [vmem:[%s1193 + $0x20] sm:$0xff]
    %v1199 = vld [vmem:[%s1193 + $0x28] sm:$0xff]
    %v1200 = vld [vmem:[%s1193 + $0x30] sm:$0xff]
    %v1201 = vld [vmem:[%s1193 + $0x38] sm:$0xff]
    %s1202 = scalar_lea.vmem %s7, 2
    %v1203 = vld [vmem:[%s1202] sm:$0x3]
    %v1205 = vperm.slane %v1203, 0
    %v1206 = vperm.slane %v1203, 1
    %v1217 = vunpack.c.l.b16 %v1194
    %v1218 = vunpack.c.h.b16 %v1194
    %v1219 = vunpack.c.l.b16 %v1195
    %v1220 = vunpack.c.h.b16 %v1195
    %v1221 = vunpack.c.l.b16 %v1196
    %v1222 = vunpack.c.h.b16 %v1196
    %v1223 = vunpack.c.l.b16 %v1197
    %v1224 = vunpack.c.h.b16 %v1197
    %v1225 = vunpack.c.l.b16 %v1198
    %v1226 = vunpack.c.h.b16 %v1198
    %v1227 = vunpack.c.l.b16 %v1199
    %v1228 = vunpack.c.h.b16 %v1199
    %v1229 = vunpack.c.l.b16 %v1200
    %v1230 = vunpack.c.h.b16 %v1200
    %v1231 = vunpack.c.l.b16 %v1201
    %v1232 = vunpack.c.h.b16 %v1201
    %v1233 = vpack.c.b16 %v1219, %v1217
    %v1234 = vpack.c.b16 %v1220, %v1218
    %v1235 = vpack.c.b16 %v1223, %v1221
    %v1236 = vpack.c.b16 %v1224, %v1222
    %v1237 = vpack.c.b16 %v1227, %v1225
    %v1238 = vpack.c.b16 %v1228, %v1226
    %v1239 = vpack.c.b16 %v1231, %v1229
    %v1240 = vpack.c.b16 %v1232, %v1230
    %v1250 = vsel %vm138, %v1192, 0
    %1252 = vmatpush.bf16.msra.mxu0 0
    %1253 = vmatpush.bf16.msra.mxu0 0
    %1254 = vmatpush.bf16.msra.mxu0 0
    %1255 = vmatpush.bf16.msra.mxu0 0
    %1256 = vmatpush.bf16.msra.mxu0 %v1239
    %1257 = vmatpush.bf16.msra.mxu0 %v1237
    %1258 = vmatpush.bf16.msra.mxu0 %v1235
    %1259 = vmatpush.bf16.msra.mxu0 %v1233
    %1260 = vmatmul.bf16.gmra.mxu0 %v1250
    %v1261 = vpop.f32.mrf.mxu0
    %v1262 = vadd.f32 %v1205, %v1261
    %v1263 = vpop.f32.mrf.mxu0
    %v1264 = vadd.f32 %v1205, %v1263
    %1265 = vdwg.mxu0
    %1266 = vmatpush.bf16.msra.mxu0 0
    %1267 = vmatpush.bf16.msra.mxu0 0
    %1268 = vmatpush.bf16.msra.mxu0 0
    %1269 = vmatpush.bf16.msra.mxu0 0
    %1270 = vmatpush.bf16.msra.mxu0 %v1240
    %1271 = vmatpush.bf16.msra.mxu0 %v1238
    %1272 = vmatpush.bf16.msra.mxu0 %v1236
    %1273 = vmatpush.bf16.msra.mxu0 %v1234
    %1274 = vmatmul.bf16.gmra.mxu0 %v1250
    %v1275 = vpop.f32.mrf.mxu0
    %v1276 = vadd.f32 %v1206, %v1275
    %v1277 = vpop.f32.mrf.mxu0
    %v1278 = vadd.f32 %v1206, %v1277
    %1279 = vdwg.mxu0
    %v1280 = vpack.c.bf16 %v1276, %v1262
    %v1281 = vpack.c.bf16 %v1278, %v1264
    %s1282 = scalar_lea.vmem [#allocation2], 32
    %v1283 = vld [vmem:[%s1282] sm:$0xf]
    %v1284 = vld [vmem:[%s1282 + $0x4] sm:$0xf]
    %v1285 = vld [vmem:[%s1282 + $0x8] sm:$0xf]
    %v1286 = vld [vmem:[%s1282 + $0xc] sm:$0xf]
    %v1287 = vld [vmem:[%s1282 + $0x10] sm:$0xf]
    %v1288 = vld [vmem:[%s1282 + $0x14] sm:$0xf]
    %v1289 = vld [vmem:[%s1282 + $0x18] sm:$0xf]
    %v1290 = vld [vmem:[%s1282 + $0x1c] sm:$0xf]
    %v1293 = vrot.slane %v1280, 4
    %v1294 = vrot.slane %v1281, 4
    %v1295 = vunpack.c.l.b16 %v1280
    %v1296 = vpack.c.b16 %v1295, %v1295
    %1297 = vrot.lane.b32.xlu0 %v1296, 64
    %v1298 = vpop.permute.xlu0 %1297
    %v1300 = vsel %vm344, %v1280, 0
    %v1303 = vsel %vm344, %v1298, 0
    %1305 = vmatpush.bf16.xpose.msra.mxu0 0
    %1306 = vmatpush.bf16.xpose.msra.mxu0 0
    %1307 = vmatpush.bf16.xpose.msra.mxu0 0
    %1308 = vmatpush.bf16.xpose.msra.mxu0 0
    %1309 = vmatpush.bf16.xpose.msra.mxu0 0
    %1310 = vmatpush.bf16.xpose.msra.mxu0 0
    %1311 = vmatpush.bf16.xpose.msra.mxu0 0
    %1312 = vmatpush.bf16.xpose.msra.mxu0 %v1303
    %1313 = vmatmul.bf16.gmra.mxu0 %v1300
    %v1314 = vpop.f32.mrf.mxu0
    %v1315 = vadd.f32 0.0, %v1314
    %v1316 = vpop.f32.mrf.mxu0
    %1317 = vdwg.mxu0
    %v1318 = vunpack.c.l.b16 %v1281
    %v1319 = vpack.c.b16 %v1318, %v1318
    %1320 = vrot.lane.b32.xlu0 %v1319, 64
    %v1321 = vpop.permute.xlu0 %1320
    %v1323 = vsel %vm344, %v1281, 0
    %v1326 = vsel %vm344, %v1321, 0
    %1328 = vmatpush.bf16.xpose.msra.mxu0 0
    %1329 = vmatpush.bf16.xpose.msra.mxu0 0
    %1330 = vmatpush.bf16.xpose.msra.mxu0 0
    %1331 = vmatpush.bf16.xpose.msra.mxu0 0
    %1332 = vmatpush.bf16.xpose.msra.mxu0 0
    %1333 = vmatpush.bf16.xpose.msra.mxu0 0
    %1334 = vmatpush.bf16.xpose.msra.mxu0 0
    %1335 = vmatpush.bf16.xpose.msra.mxu0 %v1326
    %1336 = vmatmul.bf16.gmra.mxu0 %v1323
    %v1337 = vpop.f32.mrf.mxu0
    %v1338 = vadd.f32 0.0, %v1337
    %v1339 = vpop.f32.mrf.mxu0
    %1340 = vdwg.mxu0
    %v1341 = vmul.f32 %v1315, 0.25
    %v1342 = vmul.f32 %v1338, 0.25
    %v1343 = vadd.f32 %v1341, %v391
    %v1344 = vadd.f32 %v1342, %v392
    %v1345 = vsel %vm397, %v1343, -inf
    %1346 = vmax.xlane.f32.xlu0 %v1345
    %v1347 = vpop.xlane.xlu0 %1346
    %v1348 = vsel %vm397, %v1344, -inf
    %1349 = vmax.xlane.f32.xlu0 %v1348
    %v1350 = vpop.xlane.xlu0 %1349
    %v1351 = vsub.f32 %v1343, %v1347
    %v1352 = vsub.f32 %v1344, %v1350
    %v1353 = vmul.f32 %v1351, 1.442695
    %v1354 = vpow.pop %v1353
    %v1355 = vmul.f32 %v1352, 1.442695
    %v1356 = vpow.pop %v1355
    %v1357 = vsel %vm397, %v1354, 0.0
    %1358 = vadd.xlane.f32.xlu0 %v1357
    %v1359 = vpop.xlane.xlu0 %1358
    %v1360 = vsel %vm397, %v1356, 0.0
    %1361 = vadd.xlane.f32.xlu0 %v1360
    %v1362 = vpop.xlane.xlu0 %1361
    %v1363 = vrcp.pop %v1359
    %v1364 = vrcp.pop %v1362
    %v1365 = vmul.f32 %v1354, %v1363
    %v1366 = vmul.f32 %v1356, %v1364
    %v1367 = vpack.c.bf16 %v1365, %v1365
    %v1368 = vpack.c.bf16 %v1366, %v1366
    %v1370 = vsel %vm397, %v1367, 0
    %v1373 = vsel %vm425, %v1293, 0
    %1375 = vmatpush.bf16.msra.mxu0 0
    %1376 = vmatpush.bf16.msra.mxu0 0
    %1377 = vmatpush.bf16.msra.mxu0 0
    %1378 = vmatpush.bf16.msra.mxu0 0
    %1379 = vmatpush.bf16.msra.mxu0 0
    %1380 = vmatpush.bf16.msra.mxu0 0
    %1381 = vmatpush.bf16.msra.mxu0 0
    %1382 = vmatpush.bf16.msra.mxu0 %v1373
    %1383 = vmatmul.bf16.gmra.mxu0 %v1370
    %v1384 = vpop.f32.mrf.mxu0
    %v1385 = vadd.f32 0.0, %v1384
    %v1386 = vpop.f32.mrf.mxu0
    %1387 = vdwg.mxu0
    %v1389 = vsel %vm397, %v1368, 0
    %v1392 = vsel %vm425, %v1294, 0
    %1394 = vmatpush.bf16.msra.mxu0 0
    %1395 = vmatpush.bf16.msra.mxu0 0
    %1396 = vmatpush.bf16.msra.mxu0 0
    %1397 = vmatpush.bf16.msra.mxu0 0
    %1398 = vmatpush.bf16.msra.mxu0 0
    %1399 = vmatpush.bf16.msra.mxu0 0
    %1400 = vmatpush.bf16.msra.mxu0 0
    %1401 = vmatpush.bf16.msra.mxu0 %v1392
    %1402 = vmatmul.bf16.gmra.mxu0 %v1389
    %v1403 = vpop.f32.mrf.mxu0
    %v1404 = vadd.f32 0.0, %v1403
    %v1405 = vpop.f32.mrf.mxu0
    %1406 = vdwg.mxu0
    %v1407 = vpack.c.bf16 %v1404, %v1385
    %1408 = vrot.lane.b32.xlu0 %v1280, 112
    %v1409 = vpop.permute.xlu0 %1408
    %1410 = vrot.lane.b32.xlu0 %v1281, 112
    %v1411 = vpop.permute.xlu0 %1410
    %v1412 = vrot.slane %v1409, 4
    %v1413 = vrot.slane %v1411, 4
    %1414 = vrot.lane.b32.xlu0 %v1296, 112
    %v1415 = vpop.permute.xlu0 %1414
    %1416 = vrot.lane.b32.xlu0 %v1296, 48
    %v1417 = vpop.permute.xlu0 %1416
    %v1419 = vsel %vm344, %v1415, 0
    %v1422 = vsel %vm344, %v1417, 0
    %1424 = vmatpush.bf16.xpose.msra.mxu0 0
    %1425 = vmatpush.bf16.xpose.msra.mxu0 0
    %1426 = vmatpush.bf16.xpose.msra.mxu0 0
    %1427 = vmatpush.bf16.xpose.msra.mxu0 0
    %1428 = vmatpush.bf16.xpose.msra.mxu0 0
    %1429 = vmatpush.bf16.xpose.msra.mxu0 0
    %1430 = vmatpush.bf16.xpose.msra.mxu0 0
    %1431 = vmatpush.bf16.xpose.msra.mxu0 %v1422
    %1432 = vmatmul.bf16.gmra.mxu0 %v1419
    %v1433 = vpop.f32.mrf.mxu0
    %v1434 = vadd.f32 0.0, %v1433
    %v1435 = vpop.f32.mrf.mxu0
    %1436 = vdwg.mxu0
    %1437 = vrot.lane.b32.xlu0 %v1319, 112
    %v1438 = vpop.permute.xlu0 %1437
    %1439 = vrot.lane.b32.xlu0 %v1319, 48
    %v1440 = vpop.permute.xlu0 %1439
    %v1442 = vsel %vm344, %v1438, 0
    %v1445 = vsel %vm344, %v1440, 0
    %1447 = vmatpush.bf16.xpose.msra.mxu0 0
    %1448 = vmatpush.bf16.xpose.msra.mxu0 0
    %1449 = vmatpush.bf16.xpose.msra.mxu0 0
    %1450 = vmatpush.bf16.xpose.msra.mxu0 0
    %1451 = vmatpush.bf16.xpose.msra.mxu0 0
    %1452 = vmatpush.bf16.xpose.msra.mxu0 0
    %1453 = vmatpush.bf16.xpose.msra.mxu0 0
    %1454 = vmatpush.bf16.xpose.msra.mxu0 %v1445
    %1455 = vmatmul.bf16.gmra.mxu0 %v1442
    %v1456 = vpop.f32.mrf.mxu0
    %v1457 = vadd.f32 0.0, %v1456
    %v1458 = vpop.f32.mrf.mxu0
    %1459 = vdwg.mxu0
    %v1460 = vmul.f32 %v1434, 0.25
    %v1461 = vmul.f32 %v1457, 0.25
    %v1462 = vadd.f32 %v1460, %v391
    %v1463 = vadd.f32 %v1461, %v392
    %v1464 = vsel %vm397, %v1462, -inf
    %1465 = vmax.xlane.f32.xlu0 %v1464
    %v1466 = vpop.xlane.xlu0 %1465
    %v1467 = vsel %vm397, %v1463, -inf
    %1468 = vmax.xlane.f32.xlu0 %v1467
    %v1469 = vpop.xlane.xlu0 %1468
    %v1470 = vsub.f32 %v1462, %v1466
    %v1471 = vsub.f32 %v1463, %v1469
    %v1472 = vmul.f32 %v1470, 1.442695
    %v1473 = vpow.pop %v1472
    %v1474 = vmul.f32 %v1471, 1.442695
    %v1475 = vpow.pop %v1474
    %v1476 = vsel %vm397, %v1473, 0.0
    %1477 = vadd.xlane.f32.xlu0 %v1476
    %v1478 = vpop.xlane.xlu0 %1477
    %v1479 = vsel %vm397, %v1475, 0.0
    %1480 = vadd.xlane.f32.xlu0 %v1479
    %v1481 = vpop.xlane.xlu0 %1480
    %v1482 = vrcp.pop %v1478
    %v1483 = vrcp.pop %v1481
    %v1484 = vmul.f32 %v1473, %v1482
    %v1485 = vmul.f32 %v1475, %v1483
    %v1486 = vpack.c.bf16 %v1484, %v1484
    %v1487 = vpack.c.bf16 %v1485, %v1485
    %v1489 = vsel %vm397, %v1486, 0
    %v1492 = vsel %vm425, %v1412, 0
    %1494 = vmatpush.bf16.msra.mxu0 0
    %1495 = vmatpush.bf16.msra.mxu0 0
    %1496 = vmatpush.bf16.msra.mxu0 0
    %1497 = vmatpush.bf16.msra.mxu0 0
    %1498 = vmatpush.bf16.msra.mxu0 0
    %1499 = vmatpush.bf16.msra.mxu0 0
    %1500 = vmatpush.bf16.msra.mxu0 0
    %1501 = vmatpush.bf16.msra.mxu0 %v1492
    %1502 = vmatmul.bf16.gmra.mxu0 %v1489
    %v1503 = vpop.f32.mrf.mxu0
    %v1504 = vadd.f32 0.0, %v1503
    %v1505 = vpop.f32.mrf.mxu0
    %1506 = vdwg.mxu0
    %v1508 = vsel %vm397, %v1487, 0
    %v1511 = vsel %vm425, %v1413, 0
    %1513 = vmatpush.bf16.msra.mxu0 0
    %1514 = vmatpush.bf16.msra.mxu0 0
    %1515 = vmatpush.bf16.msra.mxu0 0
    %1516 = vmatpush.bf16.msra.mxu0 0
    %1517 = vmatpush.bf16.msra.mxu0 0
    %1518 = vmatpush.bf16.msra.mxu0 0
    %1519 = vmatpush.bf16.msra.mxu0 0
    %1520 = vmatpush.bf16.msra.mxu0 %v1511
    %1521 = vmatmul.bf16.gmra.mxu0 %v1508
    %v1522 = vpop.f32.mrf.mxu0
    %v1523 = vadd.f32 0.0, %v1522
    %v1524 = vpop.f32.mrf.mxu0
    %1525 = vdwg.mxu0
    %v1526 = vpack.c.bf16 %v1523, %v1504
    %v1529 = vunpack.c.l.b16 %v1285
    %v1530 = vunpack.c.l.b16 %v1286
    %v1531 = vpack.c.b16 %v1530, %v1529
    %v1534 = vsel %vm344, %v1526, 0
    %1536 = vmatpush.bf16.msra.mxu0 0
    %1537 = vmatpush.bf16.msra.mxu0 0
    %1538 = vmatpush.bf16.msra.mxu0 0
    %1539 = vmatpush.bf16.msra.mxu0 0
    %1540 = vmatpush.bf16.msra.mxu0 0
    %1541 = vmatpush.bf16.msra.mxu0 0
    %1542 = vmatpush.bf16.msra.mxu0 0
    %1543 = vmatpush.bf16.msra.mxu0 %v1531
    %1544 = vmatmul.bf16.gmra.mxu0 %v1534
    %v1545 = vpop.f32.mrf.mxu0
    %v1546 = vadd.f32 0.0, %v1545
    %v1547 = vpop.f32.mrf.mxu0
    %v1548 = vadd.f32 0.0, %v1547
    %1549 = vdwg.mxu0
    %v1552 = vunpack.c.l.b16 %v1283
    %v1553 = vunpack.c.l.b16 %v1284
    %v1554 = vpack.c.b16 %v1553, %v1552
    %v1557 = vsel %vm344, %v1407, 0
    %1559 = vmatpush.bf16.msra.mxu0 0
    %1560 = vmatpush.bf16.msra.mxu0 0
    %1561 = vmatpush.bf16.msra.mxu0 0
    %1562 = vmatpush.bf16.msra.mxu0 0
    %1563 = vmatpush.bf16.msra.mxu0 0
    %1564 = vmatpush.bf16.msra.mxu0 0
    %1565 = vmatpush.bf16.msra.mxu0 0
    %1566 = vmatpush.bf16.msra.mxu0 %v1554
    %1567 = vmatmul.bf16.gmra.mxu0 %v1557
    %v1568 = vpop.f32.mrf.mxu0
    %v1569 = vadd.f32 %v1546, %v1568
    %v1570 = vpop.f32.mrf.mxu0
    %v1571 = vadd.f32 %v1548, %v1570
    %1572 = vdwg.mxu0
    %1573 = vrot.lane.b32.xlu0 %v1280, 96
    %v1574 = vpop.permute.xlu0 %1573
    %1575 = vrot.lane.b32.xlu0 %v1281, 96
    %v1576 = vpop.permute.xlu0 %1575
    %v1577 = vrot.slane %v1574, 4
    %v1578 = vrot.slane %v1576, 4
    %1579 = vrot.lane.b32.xlu0 %v1296, 96
    %v1580 = vpop.permute.xlu0 %1579
    %1581 = vrot.lane.b32.xlu0 %v1296, 32
    %v1582 = vpop.permute.xlu0 %1581
    %v1584 = vsel %vm344, %v1580, 0
    %v1587 = vsel %vm344, %v1582, 0
    %1589 = vmatpush.bf16.xpose.msra.mxu0 0
    %1590 = vmatpush.bf16.xpose.msra.mxu0 0
    %1591 = vmatpush.bf16.xpose.msra.mxu0 0
    %1592 = vmatpush.bf16.xpose.msra.mxu0 0
    %1593 = vmatpush.bf16.xpose.msra.mxu0 0
    %1594 = vmatpush.bf16.xpose.msra.mxu0 0
    %1595 = vmatpush.bf16.xpose.msra.mxu0 0
    %1596 = vmatpush.bf16.xpose.msra.mxu0 %v1587
    %1597 = vmatmul.bf16.gmra.mxu0 %v1584
    %v1598 = vpop.f32.mrf.mxu0
    %v1599 = vadd.f32 0.0, %v1598
    %v1600 = vpop.f32.mrf.mxu0
    %1601 = vdwg.mxu0
    %1602 = vrot.lane.b32.xlu0 %v1319, 96
    %v1603 = vpop.permute.xlu0 %1602
    %1604 = vrot.lane.b32.xlu0 %v1319, 32
    %v1605 = vpop.permute.xlu0 %1604
    %v1607 = vsel %vm344, %v1603, 0
    %v1610 = vsel %vm344, %v1605, 0
    %1612 = vmatpush.bf16.xpose.msra.mxu0 0
    %1613 = vmatpush.bf16.xpose.msra.mxu0 0
    %1614 = vmatpush.bf16.xpose.msra.mxu0 0
    %1615 = vmatpush.bf16.xpose.msra.mxu0 0
    %1616 = vmatpush.bf16.xpose.msra.mxu0 0
    %1617 = vmatpush.bf16.xpose.msra.mxu0 0
    %1618 = vmatpush.bf16.xpose.msra.mxu0 0
    %1619 = vmatpush.bf16.xpose.msra.mxu0 %v1610
    %1620 = vmatmul.bf16.gmra.mxu0 %v1607
    %v1621 = vpop.f32.mrf.mxu0
    %v1622 = vadd.f32 0.0, %v1621
    %v1623 = vpop.f32.mrf.mxu0
    %1624 = vdwg.mxu0
    %v1625 = vmul.f32 %v1599, 0.25
    %v1626 = vmul.f32 %v1622, 0.25
    %v1627 = vadd.f32 %v1625, %v391
    %v1628 = vadd.f32 %v1626, %v392
    %v1629 = vsel %vm397, %v1627, -inf
    %1630 = vmax.xlane.f32.xlu0 %v1629
    %v1631 = vpop.xlane.xlu0 %1630
    %v1632 = vsel %vm397, %v1628, -inf
    %1633 = vmax.xlane.f32.xlu0 %v1632
    %v1634 = vpop.xlane.xlu0 %1633
    %v1635 = vsub.f32 %v1627, %v1631
    %v1636 = vsub.f32 %v1628, %v1634
    %v1637 = vmul.f32 %v1635, 1.442695
    %v1638 = vpow.pop %v1637
    %v1639 = vmul.f32 %v1636, 1.442695
    %v1640 = vpow.pop %v1639
    %v1641 = vsel %vm397, %v1638, 0.0
    %1642 = vadd.xlane.f32.xlu0 %v1641
    %v1643 = vpop.xlane.xlu0 %1642
    %v1644 = vsel %vm397, %v1640, 0.0
    %1645 = vadd.xlane.f32.xlu0 %v1644
    %v1646 = vpop.xlane.xlu0 %1645
    %v1647 = vrcp.pop %v1643
    %v1648 = vrcp.pop %v1646
    %v1649 = vmul.f32 %v1638, %v1647
    %v1650 = vmul.f32 %v1640, %v1648
    %v1651 = vpack.c.bf16 %v1649, %v1649
    %v1652 = vpack.c.bf16 %v1650, %v1650
    %v1654 = vsel %vm397, %v1651, 0
    %v1657 = vsel %vm425, %v1577, 0
    %1659 = vmatpush.bf16.msra.mxu0 0
    %1660 = vmatpush.bf16.msra.mxu0 0
    %1661 = vmatpush.bf16.msra.mxu0 0
    %1662 = vmatpush.bf16.msra.mxu0 0
    %1663 = vmatpush.bf16.msra.mxu0 0
    %1664 = vmatpush.bf16.msra.mxu0 0
    %1665 = vmatpush.bf16.msra.mxu0 0
    %1666 = vmatpush.bf16.msra.mxu0 %v1657
    %1667 = vmatmul.bf16.gmra.mxu0 %v1654
    %v1668 = vpop.f32.mrf.mxu0
    %v1669 = vadd.f32 0.0, %v1668
    %v1670 = vpop.f32.mrf.mxu0
    %1671 = vdwg.mxu0
    %v1673 = vsel %vm397, %v1652, 0
    %v1676 = vsel %vm425, %v1578, 0
    %1678 = vmatpush.bf16.msra.mxu0 0
    %1679 = vmatpush.bf16.msra.mxu0 0
    %1680 = vmatpush.bf16.msra.mxu0 0
    %1681 = vmatpush.bf16.msra.mxu0 0
    %1682 = vmatpush.bf16.msra.mxu0 0
    %1683 = vmatpush.bf16.msra.mxu0 0
    %1684 = vmatpush.bf16.msra.mxu0 0
    %1685 = vmatpush.bf16.msra.mxu0 %v1676
    %1686 = vmatmul.bf16.gmra.mxu0 %v1673
    %v1687 = vpop.f32.mrf.mxu0
    %v1688 = vadd.f32 0.0, %v1687
    %v1689 = vpop.f32.mrf.mxu0
    %1690 = vdwg.mxu0
    %v1691 = vpack.c.bf16 %v1688, %v1669
    %v1694 = vunpack.c.l.b16 %v1287
    %v1695 = vunpack.c.l.b16 %v1288
    %v1696 = vpack.c.b16 %v1695, %v1694
    %v1699 = vsel %vm344, %v1691, 0
    %1701 = vmatpush.bf16.msra.mxu0 0
    %1702 = vmatpush.bf16.msra.mxu0 0
    %1703 = vmatpush.bf16.msra.mxu0 0
    %1704 = vmatpush.bf16.msra.mxu0 0
    %1705 = vmatpush.bf16.msra.mxu0 0
    %1706 = vmatpush.bf16.msra.mxu0 0
    %1707 = vmatpush.bf16.msra.mxu0 0
    %1708 = vmatpush.bf16.msra.mxu0 %v1696
    %1709 = vmatmul.bf16.gmra.mxu0 %v1699
    %v1710 = vpop.f32.mrf.mxu0
    %v1711 = vadd.f32 0.0, %v1710
    %v1712 = vpop.f32.mrf.mxu0
    %v1713 = vadd.f32 0.0, %v1712
    %1714 = vdwg.mxu0
    %v1715 = vadd.f32 %v1569, %v1711
    %v1716 = vadd.f32 %v1571, %v1713
    %1717 = vrot.lane.b32.xlu0 %v1280, 80
    %v1718 = vpop.permute.xlu0 %1717
    %1719 = vrot.lane.b32.xlu0 %v1281, 80
    %v1720 = vpop.permute.xlu0 %1719
    %v1721 = vrot.slane %v1718, 4
    %v1722 = vrot.slane %v1720, 4
    %1723 = vrot.lane.b32.xlu0 %v1296, 80
    %v1724 = vpop.permute.xlu0 %1723
    %1725 = vrot.lane.b32.xlu0 %v1296, 16
    %v1726 = vpop.permute.xlu0 %1725
    %v1728 = vsel %vm344, %v1724, 0
    %v1731 = vsel %vm344, %v1726, 0
    %1733 = vmatpush.bf16.xpose.msra.mxu0 0
    %1734 = vmatpush.bf16.xpose.msra.mxu0 0
    %1735 = vmatpush.bf16.xpose.msra.mxu0 0
    %1736 = vmatpush.bf16.xpose.msra.mxu0 0
    %1737 = vmatpush.bf16.xpose.msra.mxu0 0
    %1738 = vmatpush.bf16.xpose.msra.mxu0 0
    %1739 = vmatpush.bf16.xpose.msra.mxu0 0
    %1740 = vmatpush.bf16.xpose.msra.mxu0 %v1731
    %1741 = vmatmul.bf16.gmra.mxu0 %v1728
    %v1742 = vpop.f32.mrf.mxu0
    %v1743 = vadd.f32 0.0, %v1742
    %v1744 = vpop.f32.mrf.mxu0
    %1745 = vdwg.mxu0
    %1746 = vrot.lane.b32.xlu0 %v1319, 80
    %v1747 = vpop.permute.xlu0 %1746
    %1748 = vrot.lane.b32.xlu0 %v1319, 16
    %v1749 = vpop.permute.xlu0 %1748
    %v1751 = vsel %vm344, %v1747, 0
    %v1754 = vsel %vm344, %v1749, 0
    %1756 = vmatpush.bf16.xpose.msra.mxu0 0
    %1757 = vmatpush.bf16.xpose.msra.mxu0 0
    %1758 = vmatpush.bf16.xpose.msra.mxu0 0
    %1759 = vmatpush.bf16.xpose.msra.mxu0 0
    %1760 = vmatpush.bf16.xpose.msra.mxu0 0
    %1761 = vmatpush.bf16.xpose.msra.mxu0 0
    %1762 = vmatpush.bf16.xpose.msra.mxu0 0
    %1763 = vmatpush.bf16.xpose.msra.mxu0 %v1754
    %1764 = vmatmul.bf16.gmra.mxu0 %v1751
    %v1765 = vpop.f32.mrf.mxu0
    %v1766 = vadd.f32 0.0, %v1765
    %v1767 = vpop.f32.mrf.mxu0
    %1768 = vdwg.mxu0
    %v1769 = vmul.f32 %v1743, 0.25
    %v1770 = vmul.f32 %v1766, 0.25
    %v1771 = vadd.f32 %v1769, %v391
    %v1772 = vadd.f32 %v1770, %v392
    %v1773 = vsel %vm397, %v1771, -inf
    %1774 = vmax.xlane.f32.xlu0 %v1773
    %v1775 = vpop.xlane.xlu0 %1774
    %v1776 = vsel %vm397, %v1772, -inf
    %1777 = vmax.xlane.f32.xlu0 %v1776
    %v1778 = vpop.xlane.xlu0 %1777
    %v1779 = vsub.f32 %v1771, %v1775
    %v1780 = vsub.f32 %v1772, %v1778
    %v1781 = vmul.f32 %v1779, 1.442695
    %v1782 = vpow.pop %v1781
    %v1783 = vmul.f32 %v1780, 1.442695
    %v1784 = vpow.pop %v1783
    %v1785 = vsel %vm397, %v1782, 0.0
    %1786 = vadd.xlane.f32.xlu0 %v1785
    %v1787 = vpop.xlane.xlu0 %1786
    %v1788 = vsel %vm397, %v1784, 0.0
    %1789 = vadd.xlane.f32.xlu0 %v1788
    %v1790 = vpop.xlane.xlu0 %1789
    %v1791 = vrcp.pop %v1787
    %v1792 = vrcp.pop %v1790
    %v1793 = vmul.f32 %v1782, %v1791
    %v1794 = vmul.f32 %v1784, %v1792
    %v1795 = vpack.c.bf16 %v1793, %v1793
    %v1796 = vpack.c.bf16 %v1794, %v1794
    %v1798 = vsel %vm397, %v1795, 0
    %v1801 = vsel %vm425, %v1721, 0
    %1803 = vmatpush.bf16.msra.mxu0 0
    %1804 = vmatpush.bf16.msra.mxu0 0
    %1805 = vmatpush.bf16.msra.mxu0 0
    %1806 = vmatpush.bf16.msra.mxu0 0
    %1807 = vmatpush.bf16.msra.mxu0 0
    %1808 = vmatpush.bf16.msra.mxu0 0
    %1809 = vmatpush.bf16.msra.mxu0 0
    %1810 = vmatpush.bf16.msra.mxu0 %v1801
    %1811 = vmatmul.bf16.gmra.mxu0 %v1798
    %v1812 = vpop.f32.mrf.mxu0
    %v1813 = vadd.f32 0.0, %v1812
    %v1814 = vpop.f32.mrf.mxu0
    %1815 = vdwg.mxu0
    %v1817 = vsel %vm397, %v1796, 0
    %v1820 = vsel %vm425, %v1722, 0
    %1822 = vmatpush.bf16.msra.mxu0 0
    %1823 = vmatpush.bf16.msra.mxu0 0
    %1824 = vmatpush.bf16.msra.mxu0 0
    %1825 = vmatpush.bf16.msra.mxu0 0
    %1826 = vmatpush.bf16.msra.mxu0 0
    %1827 = vmatpush.bf16.msra.mxu0 0
    %1828 = vmatpush.bf16.msra.mxu0 0
    %1829 = vmatpush.bf16.msra.mxu0 %v1820
    %1830 = vmatmul.bf16.gmra.mxu0 %v1817
    %v1831 = vpop.f32.mrf.mxu0
    %v1832 = vadd.f32 0.0, %v1831
    %v1833 = vpop.f32.mrf.mxu0
    %1834 = vdwg.mxu0
    %v1835 = vpack.c.bf16 %v1832, %v1813
    %v1838 = vunpack.c.l.b16 %v1289
    %v1839 = vunpack.c.l.b16 %v1290
    %v1840 = vpack.c.b16 %v1839, %v1838
    %v1843 = vsel %vm344, %v1835, 0
    %1845 = vmatpush.bf16.msra.mxu0 0
    %1846 = vmatpush.bf16.msra.mxu0 0
    %1847 = vmatpush.bf16.msra.mxu0 0
    %1848 = vmatpush.bf16.msra.mxu0 0
    %1849 = vmatpush.bf16.msra.mxu0 0
    %1850 = vmatpush.bf16.msra.mxu0 0
    %1851 = vmatpush.bf16.msra.mxu0 0
    %1852 = vmatpush.bf16.msra.mxu0 %v1840
    %1853 = vmatmul.bf16.gmra.mxu0 %v1843
    %v1854 = vpop.f32.mrf.mxu0
    %v1855 = vadd.f32 0.0, %v1854
    %v1856 = vpop.f32.mrf.mxu0
    %v1857 = vadd.f32 0.0, %v1856
    %1858 = vdwg.mxu0
    %v1859 = vadd.f32 %v1715, %v1855
    %v1860 = vadd.f32 %v1716, %v1857
    %s1861 = scalar_lea.vmem %s9, 1
    %v1862 = vld [vmem:[%s1861] sm:$0x1]
    %v1864 = vperm.slane %v1862, 0
    %v1866 = vadd.f32 %v1859, %v1864
    %v1867 = vadd.f32 %v1860, %v1864
    %v1868 = vadd.f32 %v1190, %v1866
    %v1869 = vadd.f32 %v1191, %v1867
    %s1870 = scalar_lea.vmem %s10, 1
    %v1871 = vld [vmem:[%s1870] sm:$0x1]
    %s1872 = scalar_lea.vmem %s11, 1
    %v1873 = vld [vmem:[%s1872] sm:$0x1]
    %v1874 = vsel %vm138, %v1868, 0.0
    %1875 = vadd.xlane.f32.xlu0 %v1874
    %v1876 = vpop.xlane.xlu0 %1875
    %v1877 = vsel %vm138, %v1869, 0.0
    %1878 = vadd.xlane.f32.xlu0 %v1877
    %v1879 = vpop.xlane.xlu0 %1878
    %v1880 = vmul.f32 %v1876, %v185
    %v1881 = vmul.f32 %v1879, %v185
    %v1882 = vsub.f32 %v1868, %v1880
    %v1883 = vsub.f32 %v1869, %v1881
    %v1884 = vmul.f32 %v1882, %v1882
    %v1885 = vmul.f32 %v1883, %v1883
    %v1886 = vsel %vm138, %v1884, 0.0
    %1887 = vadd.xlane.f32.xlu0 %v1886
    %v1888 = vpop.xlane.xlu0 %1887
    %v1889 = vsel %vm138, %v1885, 0.0
    %1890 = vadd.xlane.f32.xlu0 %v1889
    %v1891 = vpop.xlane.xlu0 %1890
    %v1892 = vmul.f32 %v1888, %v185
    %v1893 = vmul.f32 %v1891, %v185
    %v1894 = vadd.f32 %v1892, 1e-12
    %v1895 = vadd.f32 %v1893, 1e-12
    %v1896 = vrsqrt.pop %v1894
    %v1897 = vmul.f32 %v1896, %v1894
    %v1898 = vmul.f32 %v1897, %v1896
    %v1899 = vmul.f32 0.5, %v1898
    %v1900 = vsub.f32 1.5, %v1899
    %v1901 = vmul.f32 %v1896, %v1900
    %vm1902 = vweird.f32 %v1894
    %vm1903 = vweird.f32 %v1896
    %vm1904 = vmor %vm1902, %vm1903
    %v1905 = vsel %vm1904, %v1896, %v1901
    %v1906 = vrsqrt.pop %v1895
    %v1907 = vmul.f32 %v1906, %v1895
    %v1908 = vmul.f32 %v1907, %v1906
    %v1909 = vmul.f32 0.5, %v1908
    %v1910 = vsub.f32 1.5, %v1909
    %v1911 = vmul.f32 %v1906, %v1910
    %vm1912 = vweird.f32 %v1895
    %vm1913 = vweird.f32 %v1906
    %vm1914 = vmor %vm1912, %vm1913
    %v1915 = vsel %vm1914, %v1906, %v1911
    %v1916 = vmul.f32 %v1882, %v1905
    %v1917 = vmul.f32 %v1883, %v1915
    %v1919 = vperm.slane %v1871, 0
    %v1921 = vmul.f32 %v1916, %v1919
    %v1922 = vmul.f32 %v1917, %v1919
    %v1924 = vperm.slane %v1873, 0
    %v1926 = vadd.f32 %v1921, %v1924
    %v1927 = vadd.f32 %v1922, %v1924
    %v1928 = vpack.c.bf16 %v1927, %v1926
    %s1929 = scalar_lea.vmem [#allocation5], 32
    %v1930 = vld [vmem:[%s1929] sm:$0xf]
    %v1931 = vld [vmem:[%s1929 + $0x4] sm:$0xf]
    %v1932 = vld [vmem:[%s1929 + $0x8] sm:$0xf]
    %v1933 = vld [vmem:[%s1929 + $0xc] sm:$0xf]
    %v1934 = vld [vmem:[%s1929 + $0x10] sm:$0xf]
    %v1935 = vld [vmem:[%s1929 + $0x14] sm:$0xf]
    %v1936 = vld [vmem:[%s1929 + $0x18] sm:$0xf]
    %v1937 = vld [vmem:[%s1929 + $0x1c] sm:$0xf]
    %s1938 = scalar_lea.vmem %s13, 1
    %v1939 = vld [vmem:[%s1938] sm:$0x1]
    %v1941 = vperm.slane %v1939, 0
    %v1951 = vunpack.c.l.b16 %v1930
    %v1952 = vunpack.c.l.b16 %v1931
    %v1953 = vunpack.c.l.b16 %v1932
    %v1954 = vunpack.c.l.b16 %v1933
    %v1955 = vunpack.c.l.b16 %v1934
    %v1956 = vunpack.c.l.b16 %v1935
    %v1957 = vunpack.c.l.b16 %v1936
    %v1958 = vunpack.c.l.b16 %v1937
    %v1959 = vpack.c.b16 %v1952, %v1951
    %v1960 = vpack.c.b16 %v1954, %v1953
    %v1961 = vpack.c.b16 %v1956, %v1955
    %v1962 = vpack.c.b16 %v1958, %v1957
    %v1968 = vsel %vm138, %v1928, 0
    %1970 = vmatpush.bf16.msra.mxu0 0
    %1971 = vmatpush.bf16.msra.mxu0 0
    %1972 = vmatpush.bf16.msra.mxu0 0
    %1973 = vmatpush.bf16.msra.mxu0 0
    %1974 = vmatpush.bf16.msra.mxu0 %v1962
    %1975 = vmatpush.bf16.msra.mxu0 %v1961
    %1976 = vmatpush.bf16.msra.mxu0 %v1960
    %1977 = vmatpush.bf16.msra.mxu0 %v1959
    %1978 = vmatmul.bf16.gmra.mxu0 %v1968
    %v1979 = vpop.f32.mrf.mxu0
    %v1980 = vadd.f32 %v1941, %v1979
    %v1981 = vpop.f32.mrf.mxu0
    %v1982 = vadd.f32 %v1941, %v1981
    %1983 = vdwg.mxu0
    %v1984 = vmul.f32 %v1980, %v1980
    %v1985 = vmul.f32 %v1982, %v1982
    %v1986 = vmul.f32 %v1980, %v1984
    %v1987 = vmul.f32 %v1982, %v1985
    %v1988 = vmul.f32 %v1986, 0.044715
    %v1989 = vmul.f32 %v1987, 0.044715
    %v1990 = vadd.f32 %v1980, %v1988
    %v1991 = vadd.f32 %v1982, %v1989
    %v1992 = vmul.f32 %v1990, 0.7978846
    %v1993 = vmul.f32 %v1991, 0.7978846
    %v1994 = vtanh.pop %v1992
    %v1995 = vtanh.pop %v1993
    %v1996 = vadd.f32 %v1994, 1.0
    %v1997 = vadd.f32 %v1995, 1.0
    %v1998 = vmul.f32 %v1996, 0.5
    %v1999 = vmul.f32 %v1997, 0.5
    %v2000 = vmul.f32 %v1980, %v1998
    %v2001 = vmul.f32 %v1982, %v1999
    %v2002 = vpack.c.bf16 %v2001, %v2000
    %s2003 = scalar_lea.vmem %s14, 64
    %v2004 = vld [vmem:[%s2003] sm:$0xf]
    %v2005 = vld [vmem:[%s2003 + $0x4] sm:$0xf]
    %v2006 = vld [vmem:[%s2003 + $0x8] sm:$0xf]
    %v2007 = vld [vmem:[%s2003 + $0xc] sm:$0xf]
    %v2008 = vld [vmem:[%s2003 + $0x10] sm:$0xf]
    %v2009 = vld [vmem:[%s2003 + $0x14] sm:$0xf]
    %v2010 = vld [vmem:[%s2003 + $0x18] sm:$0xf]
    %v2011 = vld [vmem:[%s2003 + $0x1c] sm:$0xf]
    %v2012 = vld [vmem:[%s2003 + $0x20] sm:$0xf]
    %v2013 = vld [vmem:[%s2003 + $0x24] sm:$0xf]
    %v2014 = vld [vmem:[%s2003 + $0x28] sm:$0xf]
    %v2015 = vld [vmem:[%s2003 + $0x2c] sm:$0xf]
    %v2016 = vld [vmem:[%s2003 + $0x30] sm:$0xf]
    %v2017 = vld [vmem:[%s2003 + $0x34] sm:$0xf]
    %v2018 = vld [vmem:[%s2003 + $0x38] sm:$0xf]
    %v2019 = vld [vmem:[%s2003 + $0x3c] sm:$0xf]
    %s2020 = scalar_lea.vmem %s15, 1
    %v2021 = vld [vmem:[%s2020] sm:$0x1]
    %v2023 = vperm.slane %v2021, 0
    %v2041 = vunpack.c.l.b16 %v2004
    %v2042 = vunpack.c.l.b16 %v2005
    %v2043 = vunpack.c.l.b16 %v2006
    %v2044 = vunpack.c.l.b16 %v2007
    %v2045 = vunpack.c.l.b16 %v2008
    %v2046 = vunpack.c.l.b16 %v2009
    %v2047 = vunpack.c.l.b16 %v2010
    %v2048 = vunpack.c.l.b16 %v2011
    %v2049 = vunpack.c.l.b16 %v2012
    %v2050 = vunpack.c.l.b16 %v2013
    %v2051 = vunpack.c.l.b16 %v2014
    %v2052 = vunpack.c.l.b16 %v2015
    %v2053 = vunpack.c.l.b16 %v2016
    %v2054 = vunpack.c.l.b16 %v2017
    %v2055 = vunpack.c.l.b16 %v2018
    %v2056 = vunpack.c.l.b16 %v2019
    %v2057 = vpack.c.b16 %v2042, %v2041
    %v2058 = vpack.c.b16 %v2044, %v2043
    %v2059 = vpack.c.b16 %v2046, %v2045
    %v2060 = vpack.c.b16 %v2048, %v2047
    %v2061 = vpack.c.b16 %v2050, %v2049
    %v2062 = vpack.c.b16 %v2052, %v2051
    %v2063 = vpack.c.b16 %v2054, %v2053
    %v2064 = vpack.c.b16 %v2056, %v2055
    %2073 = vmatpush.bf16.msra.mxu0 %v2064
    %2074 = vmatpush.bf16.msra.mxu0 %v2063
    %2075 = vmatpush.bf16.msra.mxu0 %v2062
    %2076 = vmatpush.bf16.msra.mxu0 %v2061
    %2077 = vmatpush.bf16.msra.mxu0 %v2060
    %2078 = vmatpush.bf16.msra.mxu0 %v2059
    %2079 = vmatpush.bf16.msra.mxu0 %v2058
    %2080 = vmatpush.bf16.msra.mxu0 %v2057
    %2081 = vmatmul.bf16.gmra.mxu0 %v2002
    %v2082 = vpop.f32.mrf.mxu0
    %v2083 = vadd.f32 %v2023, %v2082
    %v2084 = vpop.f32.mrf.mxu0
    %v2085 = vadd.f32 %v2023, %v2084
    %2086 = vdwg.mxu0
    %v2087 = vadd.f32 %v1926, %v2083
    %v2088 = vadd.f32 %v1927, %v2085
    %s2089 = scalar_lea.vmem %s16, 1
    %v2090 = vld [vmem:[%s2089] sm:$0x1]
    %s2091 = scalar_lea.vmem %s17, 1
    %v2092 = vld [vmem:[%s2091] sm:$0x1]
    %v2093 = vsel %vm138, %v2087, 0.0
    %2094 = vadd.xlane.f32.xlu0 %v2093
    %v2095 = vpop.xlane.xlu0 %2094
    %v2096 = vsel %vm138, %v2088, 0.0
    %2097 = vadd.xlane.f32.xlu0 %v2096
    %v2098 = vpop.xlane.xlu0 %2097
    %v2099 = vmul.f32 %v2095, %v185
    %v2100 = vmul.f32 %v2098, %v185
    %v2101 = vsub.f32 %v2087, %v2099
    %v2102 = vsub.f32 %v2088, %v2100
    %v2103 = vmul.f32 %v2101, %v2101
    %v2104 = vmul.f32 %v2102, %v2102
    %v2105 = vsel %vm138, %v2103, 0.0
    %2106 = vadd.xlane.f32.xlu0 %v2105
    %v2107 = vpop.xlane.xlu0 %2106
    %v2108 = vsel %vm138, %v2104, 0.0
    %2109 = vadd.xlane.f32.xlu0 %v2108
    %v2110 = vpop.xlane.xlu0 %2109
    %v2111 = vmul.f32 %v2107, %v185
    %v2112 = vmul.f32 %v2110, %v185
    %v2113 = vadd.f32 %v2111, 1e-12
    %v2114 = vadd.f32 %v2112, 1e-12
    %v2115 = vrsqrt.pop %v2113
    %v2116 = vmul.f32 %v2115, %v2113
    %v2117 = vmul.f32 %v2116, %v2115
    %v2118 = vmul.f32 0.5, %v2117
    %v2119 = vsub.f32 1.5, %v2118
    %v2120 = vmul.f32 %v2115, %v2119
    %vm2121 = vweird.f32 %v2113
    %vm2122 = vweird.f32 %v2115
    %vm2123 = vmor %vm2121, %vm2122
    %v2124 = vsel %vm2123, %v2115, %v2120
    %v2125 = vrsqrt.pop %v2114
    %v2126 = vmul.f32 %v2125, %v2114
    %v2127 = vmul.f32 %v2126, %v2125
    %v2128 = vmul.f32 0.5, %v2127
    %v2129 = vsub.f32 1.5, %v2128
    %v2130 = vmul.f32 %v2125, %v2129
    %vm2131 = vweird.f32 %v2114
    %vm2132 = vweird.f32 %v2125
    %vm2133 = vmor %vm2131, %vm2132
    %v2134 = vsel %vm2133, %v2125, %v2130
    %v2135 = vmul.f32 %v2101, %v2124
    %v2136 = vmul.f32 %v2102, %v2134
    %v2138 = vperm.slane %v2090, 0
    %v2140 = vmul.f32 %v2135, %v2138
    %v2141 = vmul.f32 %v2136, %v2138
    %v2143 = vperm.slane %v2092, 0
    %v2145 = vadd.f32 %v2140, %v2143
    %v2146 = vadd.f32 %v2141, %v2143
    %v2147 = vpack.c.bf16 %v2145, %v2145
    %v2148 = vpack.c.bf16 %v2146, %v2146
    %v2149 = vld [vmem:[#allocation7] sm:$0xf]
    %v2150 = vld [vmem:[#allocation7 + $0x4] sm:$0xf]
    %v2151 = vld [vmem:[#allocation7 + $0x8] sm:$0xf]
    %v2152 = vld [vmem:[#allocation7 + $0xc] sm:$0xf]
    %v2153 = vld [vmem:[#allocation7 + $0x10] sm:$0xf]
    %v2154 = vld [vmem:[#allocation7 + $0x14] sm:$0xf]
    %v2155 = vld [vmem:[#allocation7 + $0x18] sm:$0xf]
    %v2156 = vld [vmem:[#allocation7 + $0x1c] sm:$0xf]
    %v2157 = vld [vmem:[%s19] sm:$0x1]
    %v2159 = vperm.slane %v2157, 0
    %v2163 = vunpack.c.l.b16 %v2147
    %v2164 = vunpack.c.l.b16 %v2148
    %v2165 = vrot.slane %v2164, 7
    %vm2166 = vcmask 1041409
    %v2167 = vsel %vm2166, %v2165, %v2163
    %v2168 = vpack.c.b16 %v2167, %v2167
    %v2177 = vunpack.c.l.b16 %v2149
    %v2178 = vunpack.c.l.b16 %v2150
    %v2179 = vunpack.c.l.b16 %v2151
    %v2180 = vunpack.c.l.b16 %v2152
    %v2181 = vunpack.c.l.b16 %v2153
    %v2182 = vunpack.c.l.b16 %v2154
    %v2183 = vunpack.c.l.b16 %v2155
    %v2184 = vunpack.c.l.b16 %v2156
    %v2185 = vpack.c.b16 %v2178, %v2177
    %v2186 = vpack.c.b16 %v2180, %v2179
    %v2187 = vpack.c.b16 %v2182, %v2181
    %v2188 = vpack.c.b16 %v2184, %v2183
    %v2194 = vsel %vm138, %v2168, 0
    %2196 = vmatpush.bf16.msra.mxu0 0
    %2197 = vmatpush.bf16.msra.mxu0 0
    %2198 = vmatpush.bf16.msra.mxu0 0
    %2199 = vmatpush.bf16.msra.mxu0 0
    %2200 = vmatpush.bf16.msra.mxu0 %v2188
    %2201 = vmatpush.bf16.msra.mxu0 %v2187
    %2202 = vmatpush.bf16.msra.mxu0 %v2186
    %2203 = vmatpush.bf16.msra.mxu0 %v2185
    %2204 = vmatmul.bf16.gmra.mxu0 %v2194
    %v2205 = vpop.f32.mrf.mxu0
    %v2206 = vadd.f32 %v2159, %v2205
    %v2207 = vpop.f32.mrf.mxu0
    %2208 = vdwg.mxu0
    %2209 = vst [vmem:[#allocation8] sm:$0x3] %v2206
    // Predicated region
    $region94: #{sentiment_classifier_forward.1} parent=1 // pred_check
      _
    $region95: #{sentiment_classifier_forward.1} parent=1 // pred_check_branch
      %2211 = sbr.rel (0) target = $region97
    $region96: #{sentiment_classifier_forward.1} parent=1 // pred_region
      %2213 = vsyncadd [#allocation4], 0
      %s2215 = sshll.u32 [#allocation8], 4
      %s2216 = int_to_ptr.vmem [resolvable:$true] %s2215
      %s2217 = sshll.u32 %s20, 4
      %s2218 = int_to_ptr.hbm [resolvable:$true] %s2217
      %2220 = dma.vmem_to_hbm [thread:$0]  %s2216, 32, %s2218, [#allocation4]
    $region97: #{sentiment_classifier_forward.1} parent=1 // pred_fallthru
      _
    // Predicated region
    $region98: #{sentiment_classifier_forward.1} parent=1 // pred_check
      _
    $region99: #{sentiment_classifier_forward.1} parent=1 // pred_check_branch
      %2222 = sbr.rel (0) target = $region101
    $region100: #{sentiment_classifier_forward.1} parent=1 // pred_region
      %2224 = dma.done [#allocation4], 32
    $region101: #{sentiment_classifier_forward.1} parent=1 // pred_fallthru
      _
    %2225 = vsyncpa [#allocation3], 1
    %2226 = vsyncpa [#allocation6], 1
    %2227 = vsyncpa [#allocation4], 1

</llo_original>
